<compile_context>
chip_gen: v7x
topology: tpu7x:2x2x1
jax: 0.10.0
libtpu: 0.0.40
codegen_flags: <defaults>
</compile_context>

<pallas_src>
import jax
import jax.numpy as jnp
from jax.experimental import pallas as pl
from jax.experimental.pallas import tpu as pltpu


# ---------------------------------------------------------------------------
# in-kernel helpers
# ---------------------------------------------------------------------------
def _store_padded(pad_ref, interior):
    """Write `interior` into the centre of pad_ref, zeroing only the 1-px halo."""
    _, hp, wp, c = pad_ref.shape
    h, w = hp - 2, wp - 2
    dt = pad_ref.dtype
    pad_ref[:, 0:1, :, :] = jnp.zeros((1, 1, wp, c), dt)
    pad_ref[:, hp - 1:hp, :, :] = jnp.zeros((1, 1, wp, c), dt)
    pad_ref[:, 1:h + 1, 0:1, :] = jnp.zeros((1, h, 1, c), dt)
    pad_ref[:, 1:h + 1, wp - 1:wp, :] = jnp.zeros((1, h, 1, c), dt)
    pad_ref[:, 1:h + 1, 1:w + 1, :] = interior.astype(dt)


def _conv3x3_im2col(pad_ref, cols_ref, w_ref):
    """3x3 'SAME' conv as ONE MXU matmul.

    pad_ref : (1, H+2, W+2, C)  f32  spatially padded activation tile
    cols_ref: (H*W, 9*C)        bf16 im2col scratch
    w_ref   : (9*C, Fp)         bf16 flattened HWIO weights
    returns : (H*W, Fp)         f32
    """
    _, hp, wp, c = pad_ref.shape
    h, w = hp - 2, wp - 2
    m = h * w
    t = 0
    for dy in range(3):
        for dx in range(3):
            cols_ref[:, t * c:(t + 1) * c] = (
                pad_ref[:, dy:dy + h, dx:dx + w, :]
                .reshape(m, c).astype(cols_ref.dtype))
            t += 1
    return jnp.dot(cols_ref[...], w_ref[...],
                   preferred_element_type=jnp.float32)


# ---------------------------------------------------------------------------
# phase kernels
# ---------------------------------------------------------------------------
def conv1_kernel(x_ref, w1_ref, y1_ref, s_ref, ss_ref, xpad_ref, cols_ref):
    """conv1(x) + partial BN1 statistics for one image."""
    _, h, w, _ = x_ref.shape
    fp = y1_ref.shape[-1]
    m = h * w
    _store_padded(xpad_ref, x_ref[...])
    y = _conv3x3_im2col(xpad_ref, cols_ref, w1_ref)          # (m, fp) f32
    y1_ref[...] = y.reshape(1, h, w, fp)
    s_ref[...] = jnp.sum(y, axis=0, keepdims=True).reshape(1, 1, fp)
    ss_ref[...] = jnp.sum(y * y, axis=0, keepdims=True).reshape(1, 1, fp)


def conv2_kernel(y1_ref, sc1_ref, sh1_ref, w2_ref, y2_ref, s_ref, ss_ref,
                 hpad_ref, cols_ref):
    """BN1 + ReLU + conv2 + partial BN2 statistics for one image."""
    _, h, w, fp = y1_ref.shape
    m = h * w
    hh = jnp.maximum(
        y1_ref[...].reshape(m, fp) * sc1_ref[...] + sh1_ref[...], 0.0)
    _store_padded(hpad_ref, hh.reshape(1, h, w, fp))
    y = _conv3x3_im2col(hpad_ref, cols_ref, w2_ref)          # (m, fp) f32
    y2_ref[...] = y.reshape(1, h, w, fp)
    s_ref[...] = jnp.sum(y, axis=0, keepdims=True).reshape(1, 1, fp)
    ss_ref[...] = jnp.sum(y * y, axis=0, keepdims=True).reshape(1, 1, fp)


def output_kernel(y2_ref, sc2_ref, sh2_ref, x_ref, wi_ref, bi_ref, out_ref):
    """BN2 + 1x1-conv identity + residual add + ReLU for one image."""
    _, h, w, cin = x_ref.shape
    fp = y2_ref.shape[-1]
    m = h * w
    ident = jnp.dot(x_ref[...].reshape(m, cin).astype(jnp.bfloat16),
                    wi_ref[...], preferred_element_type=jnp.float32)
    ident = ident + bi_ref[...]
    y = y2_ref[...].reshape(m, fp) * sc2_ref[...] + sh2_ref[...]
    out_ref[...] = jnp.maximum(y + ident, 0.0).reshape(1, h, w, fp)


# ---------------------------------------------------------------------------
# wrapper
# ---------------------------------------------------------------------------
def resblock_forward(x_nchw, p):
    eps = 1e-5
    x = jnp.transpose(x_nchw, (0, 2, 3, 1)).astype(jnp.float32)   # NCHW -> NHWC
    n, h, w, cin = x.shape
    f = p["w1"].shape[-1]
    fp = ((f + 127) // 128) * 128          # lane-dense feature width (>=128)

    def padf(a, axis):                     # pad the F-sized axis up to fp
        cfg = [(0, 0)] * a.ndim
        cfg[axis] = (0, fp - f)
        return jnp.pad(a, cfg)

    # Weights: pad output (and conv2 input) channels to fp, flatten HWIO ->
    # (9*C, fp) in the same (dy, dx, cin) order the im2col buffer uses; bf16.
    w1 = padf(p["w1"], 3).reshape(9 * cin, fp).astype(jnp.bfloat16)
    w2 = padf(padf(p["w2"], 3), 2).reshape(9 * fp, fp).astype(jnp.bfloat16)
    wi = padf(p["wi"], 1).astype(jnp.bfloat16)
    bi = padf(p["bi"], 1).astype(jnp.float32)
    g1, b1 = padf(p["g1"], 1), padf(p["b1"], 1)          # padded gammas are 0
    g2, b2 = padf(p["g2"], 1), padf(p["b2"], 1)          # -> padded lanes stay 0

    cparams = pltpu.CompilerParams(
        dimension_semantics=("parallel",),               # v7x: both TensorCores
        vmem_limit_bytes=32 * 1024 * 1024)               # safe on v5e/v6e/v7x

    # ---- phase 1: conv1 + per-image sum / sumsq -------------------------------
    y1, s1, ss1 = pl.pallas_call(
        conv1_kernel,
        out_shape=(jax.ShapeDtypeStruct((n, h, w, fp), jnp.float32),
                   jax.ShapeDtypeStruct((n, 1, fp), jnp.float32),
                   jax.ShapeDtypeStruct((n, 1, fp), jnp.float32)),
        grid=(n,),
        in_specs=[pl.BlockSpec((1, h, w, cin), lambda i: (i, 0, 0, 0)),
                  pl.BlockSpec((9 * cin, fp), lambda i: (0, 0))],
        out_specs=(pl.BlockSpec((1, h, w, fp), lambda i: (i, 0, 0, 0)),
                   pl.BlockSpec((1, 1, fp), lambda i: (i, 0, 0)),
                   pl.BlockSpec((1, 1, fp), lambda i: (i, 0, 0))),
        scratch_shapes=[pltpu.VMEM((1, h + 2, w + 2, cin), jnp.float32),
                        pltpu.VMEM((h * w, 9 * cin), jnp.bfloat16)],
        compiler_params=cparams,
    )(x, w1)

    cnt = float(n * h * w)
    mu1 = jnp.sum(s1, axis=0) / cnt                                  # (1, fp)
    var1 = jnp.maximum(jnp.sum(ss1, axis=0) / cnt - mu1 * mu1, 0.0)
    sc1 = g1 * jax.lax.rsqrt(var1 + eps)
    sh1 = b1 - mu1 * sc1

    # ---- phase 2: BN1 + ReLU + conv2 + per-image sum / sumsq ------------------
    y2, s2, ss2 = pl.pallas_call(
        conv2_kernel,
        out_shape=(jax.ShapeDtypeStruct((n, h, w, fp), jnp.float32),
                   jax.ShapeDtypeStruct((n, 1, fp), jnp.float32),
                   jax.ShapeDtypeStruct((n, 1, fp), jnp.float32)),
        grid=(n,),
        in_specs=[pl.BlockSpec((1, h, w, fp), lambda i: (i, 0, 0, 0)),
                  pl.BlockSpec((1, fp), lambda i: (0, 0)),
                  pl.BlockSpec((1, fp), lambda i: (0, 0)),
                  pl.BlockSpec((9 * fp, fp), lambda i: (0, 0))],
        out_specs=(pl.BlockSpec((1, h, w, fp), lambda i: (i, 0, 0, 0)),
                   pl.BlockSpec((1, 1, fp), lambda i: (i, 0, 0)),
                   pl.BlockSpec((1, 1, fp), lambda i: (i, 0, 0))),
        scratch_shapes=[pltpu.VMEM((1, h + 2, w + 2, fp), jnp.float32),
                        pltpu.VMEM((h * w, 9 * fp), jnp.bfloat16)],
        compiler_params=cparams,
    )(y1, sc1, sh1, w2)

    mu2 = jnp.sum(s2, axis=0) / cnt
    var2 = jnp.maximum(jnp.sum(ss2, axis=0) / cnt - mu2 * mu2, 0.0)
    sc2 = g2 * jax.lax.rsqrt(var2 + eps)
    sh2 = b2 - mu2 * sc2

    # ---- phase 3: BN2 + identity (1x1 conv) + add + ReLU ----------------------
    out_p = pl.pallas_call(
        output_kernel,
        out_shape=jax.ShapeDtypeStruct((n, h, w, fp), jnp.float32),
        grid=(n,),
        in_specs=[pl.BlockSpec((1, h, w, fp), lambda i: (i, 0, 0, 0)),
                  pl.BlockSpec((1, fp), lambda i: (0, 0)),
                  pl.BlockSpec((1, fp), lambda i: (0, 0)),
                  pl.BlockSpec((1, h, w, cin), lambda i: (i, 0, 0, 0)),
                  pl.BlockSpec((cin, fp), lambda i: (0, 0)),
                  pl.BlockSpec((1, fp), lambda i: (0, 0))],
        out_specs=pl.BlockSpec((1, h, w, fp), lambda i: (i, 0, 0, 0)),
        compiler_params=cparams,
    )(y2, sc2, sh2, x, wi, bi)

    # drop the padded feature lanes and go back to NCHW (fuses into one copy)
    return jnp.transpose(out_p[..., :f], (0, 3, 1, 2))


# ---------------------------------------------------------------------------
# pure-JAX reference (matmul_dtype=float32 reproduces full f32 PyTorch math,
# matmul_dtype=bfloat16 matches the kernel's mixed-precision MXU path)
# ---------------------------------------------------------------------------
def resblock_reference(x_nchw, p, matmul_dtype=jnp.float32):
    x = jnp.transpose(x_nchw, (0, 2, 3, 1)).astype(jnp.float32)
    f = p["w1"].shape[-1]

    def conv3x3(a, w):
        return jax.lax.conv_general_dilated(
            a.astype(matmul_dtype), w.astype(matmul_dtype), (1, 1), "SAME",
            dimension_numbers=("NHWC", "HWIO", "NHWC"),
            preferred_element_type=jnp.float32)

    def bn(a, g, b):
        mu = jnp.mean(a, axis=(0, 1, 2), keepdims=True)
        var = jnp.mean((a - mu) ** 2, axis=(0, 1, 2), keepdims=True)
        return ((a - mu) * jax.lax.rsqrt(var + 1e-5) *
                g.reshape(1, 1, 1, f) + b.reshape(1, 1, 1, f))

    h = jax.nn.relu(bn(conv3x3(x, p["w1"]), p["g1"], p["b1"]))
    y = bn(conv3x3(h, p["w2"]), p["g2"], p["b2"])
    ident = jnp.einsum("nhwc,cf->nhwf",
                       x.astype(matmul_dtype), p["wi"].astype(matmul_dtype),
                       preferred_element_type=jnp.float32)
    ident = ident + p["bi"].reshape(1, 1, 1, f)
    out = jax.nn.relu(y + ident)
    return jnp.transpose(out, (0, 3, 1, 2))


def init_params(key, in_channels, n_feat):
    k1, k2, k3, k4 = jax.random.split(key, 4)
    return {
        # conv weights in HWIO
        "w1": 0.1 * jax.random.normal(k1, (3, 3, in_channels, n_feat), jnp.float32),
        "w2": 0.1 * jax.random.normal(k2, (3, 3, n_feat, n_feat), jnp.float32),
        # BatchNorm affine params (PyTorch default init: weight=1, bias=0)
        "g1": jnp.ones((1, n_feat), jnp.float32),
        "b1": jnp.zeros((1, n_feat), jnp.float32),
        "g2": jnp.ones((1, n_feat), jnp.float32),
        "b2": jnp.zeros((1, n_feat), jnp.float32),
        # 1x1 identity-transform conv (with bias)
        "wi": 0.1 * jax.random.normal(k3, (in_channels, n_feat), jnp.float32),
        "bi": 0.1 * jax.random.normal(k4, (1, n_feat), jnp.float32),
    }


if __name__ == "__main__":
    key = jax.random.PRNGKey(0)
    kx, kp = jax.random.split(key)

    N, Cin, H, W = 2, 4, 16, 16
    n_feat = 8

    x = jax.random.normal(kx, (N, Cin, H, W), jnp.float32)
    params = init_params(kp, Cin, n_feat)

    fwd = jax.jit(resblock_forward)
    out = jax.block_until_ready(fwd(x, params))

    # numerics-matched reference (bf16 matmul inputs, f32 accumulation) -> tight
    ref_bf16 = jax.block_until_ready(
        resblock_reference(x, params, matmul_dtype=jnp.bfloat16))
    # full-f32 reference (PyTorch semantics) -> loose bound for the bf16 MXU path
    ref_f32 = jax.block_until_ready(
        resblock_reference(x, params, matmul_dtype=jnp.float32))

    assert out.shape == (N, n_feat, H, W), out.shape
    assert jnp.allclose(out, ref_bf16, atol=5e-3, rtol=5e-3), \
        float(jnp.max(jnp.abs(out - ref_bf16)))
    assert jnp.allclose(out, ref_f32, atol=1e-1, rtol=1e-1), \
        float(jnp.max(jnp.abs(out - ref_f32)))

    print("KERNEL_OK")
</pallas_src>

<mosaic_0001>
module attributes {stable_mosaic.version = 11 : i64} {
  func.func @conv2_kernel(%arg0: i32, %arg1: memref<1x16x16x128xf32, #tpu.memory_space<vmem>>, %arg2: memref<1x128xf32, #tpu.memory_space<vmem>>, %arg3: memref<1x128xf32, #tpu.memory_space<vmem>>, %arg4: memref<1152x128xbf16, #tpu.memory_space<vmem>>, %arg5: memref<1x16x16x128xf32, #tpu.memory_space<vmem>>, %arg6: memref<1x1x128xf32, #tpu.memory_space<vmem>>, %arg7: memref<1x1x128xf32, #tpu.memory_space<vmem>>, %arg8: memref<1x18x18x128xf32, #tpu.memory_space<vmem>>, %arg9: memref<256x1152xbf16, #tpu.memory_space<vmem>>) attributes {dimension_semantics = [#tpu.dimension_semantics<parallel>], iteration_bounds = array<i64: 2>, scalar_prefetch = 0 : i64, scratch_operands = 2 : i64, tpu.core_type = #tpu.core_type<tc>, window_params = [{transform_indices = @transform_0, window_bounds = array<i64: 1, 16, 16, 128>}, {pipeline_mode = #tpu.pipeline_mode<synchronous>, transform_indices = @transform_1, window_bounds = array<i64: 1, 128>}, {pipeline_mode = #tpu.pipeline_mode<synchronous>, transform_indices = @transform_2, window_bounds = array<i64: 1, 128>}, {pipeline_mode = #tpu.pipeline_mode<synchronous>, transform_indices = @transform_3, window_bounds = array<i64: 1152, 128>}, {transform_indices = @transform_4, window_bounds = array<i64: 1, 16, 16, 128>}, {transform_indices = @transform_5, window_bounds = array<i64: 1, 1, 128>}, {transform_indices = @transform_6, window_bounds = array<i64: 1, 1, 128>}]} {
    %c0 = arith.constant 0 : index
    %c0_0 = arith.constant 0 : index
    %c0_1 = arith.constant 0 : index
    %c0_2 = arith.constant 0 : index
    %0 = vector.load %arg1[%c0, %c0_0, %c0_1, %c0_2] : memref<1x16x16x128xf32, #tpu.memory_space<vmem>>, vector<1x16x16x128xf32>
    %1 = vector.shape_cast %0 : vector<1x16x16x128xf32> to vector<256x128xf32>
    %c0_3 = arith.constant 0 : index
    %c0_4 = arith.constant 0 : index
    %2 = vector.load %arg2[%c0_3, %c0_4] : memref<1x128xf32, #tpu.memory_space<vmem>>, vector<1x128xf32>
    %3 = vector.broadcast %2 : vector<1x128xf32> to vector<256x128xf32>
    %4 = arith.mulf %1, %3 : vector<256x128xf32>
    %c0_5 = arith.constant 0 : index
    %c0_6 = arith.constant 0 : index
    %5 = vector.load %arg3[%c0_5, %c0_6] : memref<1x128xf32, #tpu.memory_space<vmem>>, vector<1x128xf32>
    %6 = vector.broadcast %5 : vector<1x128xf32> to vector<256x128xf32>
    %7 = arith.addf %4, %6 : vector<256x128xf32>
    %cst = arith.constant 0.000000e+00 : f32
    %8 = vector.broadcast %cst : f32 to vector<256x128xf32>
    %9 = arith.maximumf %7, %8 : vector<256x128xf32>
    %10 = vector.shape_cast %9 : vector<256x128xf32> to vector<1x16x16x128xf32>
    %cst_7 = arith.constant 0.000000e+00 : f32
    %11 = vector.broadcast %cst_7 : f32 to vector<1x1x18x128xf32>
    %c0_8 = arith.constant 0 : index
    %c0_9 = arith.constant 0 : index
    %c0_10 = arith.constant 0 : index
    %c0_11 = arith.constant 0 : index
    %12 = vector.load %arg8[%c0_8, %c0_9, %c0_10, %c0_11] : memref<1x18x18x128xf32, #tpu.memory_space<vmem>>, vector<1x1x18x128xf32>
    tpu.vector_store %arg8[%c0_8, %c0_9, %c0_10, %c0_11], %11 {strides = array<i32>} : memref<1x18x18x128xf32, #tpu.memory_space<vmem>>, vector<1x1x18x128xf32>,
    %cst_12 = arith.constant 0.000000e+00 : f32
    %13 = vector.broadcast %cst_12 : f32 to vector<1x1x18x128xf32>
    %c0_13 = arith.constant 0 : index
    %c17 = arith.constant 17 : index
    %c0_14 = arith.constant 0 : index
    %c0_15 = arith.constant 0 : index
    %14 = vector.load %arg8[%c0_13, %c17, %c0_14, %c0_15] : memref<1x18x18x128xf32, #tpu.memory_space<vmem>>, vector<1x1x18x128xf32>
    tpu.vector_store %arg8[%c0_13, %c17, %c0_14, %c0_15], %13 {strides = array<i32>} : memref<1x18x18x128xf32, #tpu.memory_space<vmem>>, vector<1x1x18x128xf32>,
    %cst_16 = arith.constant 0.000000e+00 : f32
    %15 = vector.broadcast %cst_16 : f32 to vector<1x16x1x128xf32>
    %c0_17 = arith.constant 0 : index
    %c1 = arith.constant 1 : index
    %c0_18 = arith.constant 0 : index
    %c0_19 = arith.constant 0 : index
    %16 = vector.load %arg8[%c0_17, %c1, %c0_18, %c0_19] : memref<1x18x18x128xf32, #tpu.memory_space<vmem>>, vector<1x16x1x128xf32>
    tpu.vector_store %arg8[%c0_17, %c1, %c0_18, %c0_19], %15 {strides = array<i32>} : memref<1x18x18x128xf32, #tpu.memory_space<vmem>>, vector<1x16x1x128xf32>,
    %cst_20 = arith.constant 0.000000e+00 : f32
    %17 = vector.broadcast %cst_20 : f32 to vector<1x16x1x128xf32>
    %c0_21 = arith.constant 0 : index
    %c1_22 = arith.constant 1 : index
    %c17_23 = arith.constant 17 : index
    %c0_24 = arith.constant 0 : index
    %18 = vector.load %arg8[%c0_21, %c1_22, %c17_23, %c0_24] : memref<1x18x18x128xf32, #tpu.memory_space<vmem>>, vector<1x16x1x128xf32>
    tpu.vector_store %arg8[%c0_21, %c1_22, %c17_23, %c0_24], %17 {strides = array<i32>} : memref<1x18x18x128xf32, #tpu.memory_space<vmem>>, vector<1x16x1x128xf32>,
    %c0_25 = arith.constant 0 : index
    %c1_26 = arith.constant 1 : index
    %c1_27 = arith.constant 1 : index
    %c0_28 = arith.constant 0 : index
    %19 = vector.load %arg8[%c0_25, %c1_26, %c1_27, %c0_28] : memref<1x18x18x128xf32, #tpu.memory_space<vmem>>, vector<1x16x16x128xf32>
    tpu.vector_store %arg8[%c0_25, %c1_26, %c1_27, %c0_28], %10 {strides = array<i32>} : memref<1x18x18x128xf32, #tpu.memory_space<vmem>>, vector<1x16x16x128xf32>,
    %c0_29 = arith.constant 0 : index
    %c0_30 = arith.constant 0 : index
    %c0_31 = arith.constant 0 : index
    %c0_32 = arith.constant 0 : index
    %20 = vector.load %arg8[%c0_29, %c0_30, %c0_31, %c0_32] : memref<1x18x18x128xf32, #tpu.memory_space<vmem>>, vector<1x16x16x128xf32>
    %21 = vector.shape_cast %20 : vector<1x16x16x128xf32> to vector<256x128xf32>
    %22 = arith.truncf %21 : vector<256x128xf32> to vector<256x128xbf16>
    %c0_33 = arith.constant 0 : index
    %c0_34 = arith.constant 0 : index
    %23 = vector.load %arg9[%c0_33, %c0_34] : memref<256x1152xbf16, #tpu.memory_space<vmem>>, vector<256x128xbf16>
    tpu.vector_store %arg9[%c0_33, %c0_34], %22 {strides = array<i32>} : memref<256x1152xbf16, #tpu.memory_space<vmem>>, vector<256x128xbf16>,
    %c0_35 = arith.constant 0 : index
    %c0_36 = arith.constant 0 : index
    %c1_37 = arith.constant 1 : index
    %c0_38 = arith.constant 0 : index
    %24 = vector.load %arg8[%c0_35, %c0_36, %c1_37, %c0_38] : memref<1x18x18x128xf32, #tpu.memory_space<vmem>>, vector<1x16x16x128xf32>
    %25 = vector.shape_cast %24 : vector<1x16x16x128xf32> to vector<256x128xf32>
    %26 = arith.truncf %25 : vector<256x128xf32> to vector<256x128xbf16>
    %c0_39 = arith.constant 0 : index
    %c128 = arith.constant 128 : index
    %27 = vector.load %arg9[%c0_39, %c128] : memref<256x1152xbf16, #tpu.memory_space<vmem>>, vector<256x128xbf16>
    tpu.vector_store %arg9[%c0_39, %c128], %26 {strides = array<i32>} : memref<256x1152xbf16, #tpu.memory_space<vmem>>, vector<256x128xbf16>,
    %c0_40 = arith.constant 0 : index
    %c0_41 = arith.constant 0 : index
    %c2 = arith.constant 2 : index
    %c0_42 = arith.constant 0 : index
    %28 = vector.load %arg8[%c0_40, %c0_41, %c2, %c0_42] : memref<1x18x18x128xf32, #tpu.memory_space<vmem>>, vector<1x16x16x128xf32>
    %29 = vector.shape_cast %28 : vector<1x16x16x128xf32> to vector<256x128xf32>
    %30 = arith.truncf %29 : vector<256x128xf32> to vector<256x128xbf16>
    %c0_43 = arith.constant 0 : index
    %c256 = arith.constant 256 : index
    %31 = vector.load %arg9[%c0_43, %c256] : memref<256x1152xbf16, #tpu.memory_space<vmem>>, vector<256x128xbf16>
    tpu.vector_store %arg9[%c0_43, %c256], %30 {strides = array<i32>} : memref<256x1152xbf16, #tpu.memory_space<vmem>>, vector<256x128xbf16>,
    %c0_44 = arith.constant 0 : index
    %c1_45 = arith.constant 1 : index
    %c0_46 = arith.constant 0 : index
    %c0_47 = arith.constant 0 : index
    %32 = vector.load %arg8[%c0_44, %c1_45, %c0_46, %c0_47] : memref<1x18x18x128xf32, #tpu.memory_space<vmem>>, vector<1x16x16x128xf32>
    %33 = vector.shape_cast %32 : vector<1x16x16x128xf32> to vector<256x128xf32>
    %34 = arith.truncf %33 : vector<256x128xf32> to vector<256x128xbf16>
    %c0_48 = arith.constant 0 : index
    %c384 = arith.constant 384 : index
    %35 = vector.load %arg9[%c0_48, %c384] : memref<256x1152xbf16, #tpu.memory_space<vmem>>, vector<256x128xbf16>
    tpu.vector_store %arg9[%c0_48, %c384], %34 {strides = array<i32>} : memref<256x1152xbf16, #tpu.memory_space<vmem>>, vector<256x128xbf16>,
    %c0_49 = arith.constant 0 : index
    %c1_50 = arith.constant 1 : index
    %c1_51 = arith.constant 1 : index
    %c0_52 = arith.constant 0 : index
    %36 = vector.load %arg8[%c0_49, %c1_50, %c1_51, %c0_52] : memref<1x18x18x128xf32, #tpu.memory_space<vmem>>, vector<1x16x16x128xf32>
    %37 = vector.shape_cast %36 : vector<1x16x16x128xf32> to vector<256x128xf32>
    %38 = arith.truncf %37 : vector<256x128xf32> to vector<256x128xbf16>
    %c0_53 = arith.constant 0 : index
    %c512 = arith.constant 512 : index
    %39 = vector.load %arg9[%c0_53, %c512] : memref<256x1152xbf16, #tpu.memory_space<vmem>>, vector<256x128xbf16>
    tpu.vector_store %arg9[%c0_53, %c512], %38 {strides = array<i32>} : memref<256x1152xbf16, #tpu.memory_space<vmem>>, vector<256x128xbf16>,
    %c0_54 = arith.constant 0 : index
    %c1_55 = arith.constant 1 : index
    %c2_56 = arith.constant 2 : index
    %c0_57 = arith.constant 0 : index
    %40 = vector.load %arg8[%c0_54, %c1_55, %c2_56, %c0_57] : memref<1x18x18x128xf32, #tpu.memory_space<vmem>>, vector<1x16x16x128xf32>
    %41 = vector.shape_cast %40 : vector<1x16x16x128xf32> to vector<256x128xf32>
    %42 = arith.truncf %41 : vector<256x128xf32> to vector<256x128xbf16>
    %c0_58 = arith.constant 0 : index
    %c640 = arith.constant 640 : index
    %43 = vector.load %arg9[%c0_58, %c640] : memref<256x1152xbf16, #tpu.memory_space<vmem>>, vector<256x128xbf16>
    tpu.vector_store %arg9[%c0_58, %c640], %42 {strides = array<i32>} : memref<256x1152xbf16, #tpu.memory_space<vmem>>, vector<256x128xbf16>,
    %c0_59 = arith.constant 0 : index
    %c2_60 = arith.constant 2 : index
    %c0_61 = arith.constant 0 : index
    %c0_62 = arith.constant 0 : index
    %44 = vector.load %arg8[%c0_59, %c2_60, %c0_61, %c0_62] : memref<1x18x18x128xf32, #tpu.memory_space<vmem>>, vector<1x16x16x128xf32>
    %45 = vector.shape_cast %44 : vector<1x16x16x128xf32> to vector<256x128xf32>
    %46 = arith.truncf %45 : vector<256x128xf32> to vector<256x128xbf16>
    %c0_63 = arith.constant 0 : index
    %c768 = arith.constant 768 : index
    %47 = vector.load %arg9[%c0_63, %c768] : memref<256x1152xbf16, #tpu.memory_space<vmem>>, vector<256x128xbf16>
    tpu.vector_store %arg9[%c0_63, %c768], %46 {strides = array<i32>} : memref<256x1152xbf16, #tpu.memory_space<vmem>>, vector<256x128xbf16>,
    %c0_64 = arith.constant 0 : index
    %c2_65 = arith.constant 2 : index
    %c1_66 = arith.constant 1 : index
    %c0_67 = arith.constant 0 : index
    %48 = vector.load %arg8[%c0_64, %c2_65, %c1_66, %c0_67] : memref<1x18x18x128xf32, #tpu.memory_space<vmem>>, vector<1x16x16x128xf32>
    %49 = vector.shape_cast %48 : vector<1x16x16x128xf32> to vector<256x128xf32>
    %50 = arith.truncf %49 : vector<256x128xf32> to vector<256x128xbf16>
    %c0_68 = arith.constant 0 : index
    %c896 = arith.constant 896 : index
    %51 = vector.load %arg9[%c0_68, %c896] : memref<256x1152xbf16, #tpu.memory_space<vmem>>, vector<256x128xbf16>
    tpu.vector_store %arg9[%c0_68, %c896], %50 {strides = array<i32>} : memref<256x1152xbf16, #tpu.memory_space<vmem>>, vector<256x128xbf16>,
    %c0_69 = arith.constant 0 : index
    %c2_70 = arith.constant 2 : index
    %c2_71 = arith.constant 2 : index
    %c0_72 = arith.constant 0 : index
    %52 = vector.load %arg8[%c0_69, %c2_70, %c2_71, %c0_72] : memref<1x18x18x128xf32, #tpu.memory_space<vmem>>, vector<1x16x16x128xf32>
    %53 = vector.shape_cast %52 : vector<1x16x16x128xf32> to vector<256x128xf32>
    %54 = arith.truncf %53 : vector<256x128xf32> to vector<256x128xbf16>
    %c0_73 = arith.constant 0 : index
    %c1024 = arith.constant 1024 : index
    %55 = vector.load %arg9[%c0_73, %c1024] : memref<256x1152xbf16, #tpu.memory_space<vmem>>, vector<256x128xbf16>
    tpu.vector_store %arg9[%c0_73, %c1024], %54 {strides = array<i32>} : memref<256x1152xbf16, #tpu.memory_space<vmem>>, vector<256x128xbf16>,
    %c0_74 = arith.constant 0 : index
    %c0_75 = arith.constant 0 : index
    %56 = vector.load %arg9[%c0_74, %c0_75] : memref<256x1152xbf16, #tpu.memory_space<vmem>>, vector<256x1152xbf16>
    %c0_76 = arith.constant 0 : index
    %c0_77 = arith.constant 0 : index
    %57 = vector.load %arg4[%c0_76, %c0_77] : memref<1152x128xbf16, #tpu.memory_space<vmem>>, vector<1152x128xbf16>
    %cst_78 = arith.constant dense<0.000000e+00> : vector<256x128xf32>
    %58 = tpu.matmul %56, %57, %cst_78 {dimension_numbers = #tpu.dot_dimension_numbers<[1], [0], [0], [1], [0, 0, 1, 1], [], []>} : vector<256x1152xbf16>, vector<1152x128xbf16>, vector<256x128xf32> -> vector<256x128xf32>
    %59 = vector.shape_cast %58 : vector<256x128xf32> to vector<1x16x16x128xf32>
    %c0_79 = arith.constant 0 : index
    %c0_80 = arith.constant 0 : index
    %c0_81 = arith.constant 0 : index
    %c0_82 = arith.constant 0 : index
    %60 = vector.load %arg5[%c0_79, %c0_80, %c0_81, %c0_82] : memref<1x16x16x128xf32, #tpu.memory_space<vmem>>, vector<1x16x16x128xf32>
    tpu.vector_store %arg5[%c0_79, %c0_80, %c0_81, %c0_82], %59 {strides = array<i32>} : memref<1x16x16x128xf32, #tpu.memory_space<vmem>>, vector<1x16x16x128xf32>,
    %cst_83 = arith.constant dense<0.000000e+00> : vector<128xf32>
    %61 = vector.multi_reduction <add>, %58, %cst_83 [0] : vector<256x128xf32> to vector<128xf32>
    %62 = vector.shape_cast %61 : vector<128xf32> to vector<1x128xf32>
    %63 = vector.shape_cast %62 : vector<1x128xf32> to vector<1x1x128xf32>
    %c0_84 = arith.constant 0 : index
    %c0_85 = arith.constant 0 : index
    %c0_86 = arith.constant 0 : index
    %64 = vector.load %arg6[%c0_84, %c0_85, %c0_86] : memref<1x1x128xf32, #tpu.memory_space<vmem>>, vector<1x1x128xf32>
    tpu.vector_store %arg6[%c0_84, %c0_85, %c0_86], %63 {strides = array<i32>} : memref<1x1x128xf32, #tpu.memory_space<vmem>>, vector<1x1x128xf32>,
    %65 = arith.mulf %58, %58 : vector<256x128xf32>
    %cst_87 = arith.constant dense<0.000000e+00> : vector<128xf32>
    %66 = vector.multi_reduction <add>, %65, %cst_87 [0] : vector<256x128xf32> to vector<128xf32>
    %67 = vector.shape_cast %66 : vector<128xf32> to vector<1x128xf32>
    %68 = vector.shape_cast %67 : vector<1x128xf32> to vector<1x1x128xf32>
    %c0_88 = arith.constant 0 : index
    %c0_89 = arith.constant 0 : index
    %c0_90 = arith.constant 0 : index
    %69 = vector.load %arg7[%c0_88, %c0_89, %c0_90] : memref<1x1x128xf32, #tpu.memory_space<vmem>>, vector<1x1x128xf32>
    tpu.vector_store %arg7[%c0_88, %c0_89, %c0_90], %68 {strides = array<i32>} : memref<1x1x128xf32, #tpu.memory_space<vmem>>, vector<1x1x128xf32>,
    return
  }
  func.func @transform_0(%arg0: i32) -> (i32, i32, i32, i32) {
    %c0_i32 = arith.constant 0 : i32
    %c0_i32_0 = arith.constant 0 : i32
    %c0_i32_1 = arith.constant 0 : i32
    %c0_i32_2 = arith.constant 0 : i32
    return %arg0, %c0_i32, %c0_i32_0, %c0_i32_1 : i32, i32, i32, i32
  }
  func.func @transform_1(%arg0: i32) -> (i32, i32) {
    %c0_i32 = arith.constant 0 : i32
    %c0_i32_0 = arith.constant 0 : i32
    %c0_i32_1 = arith.constant 0 : i32
    return %c0_i32, %c0_i32_0 : i32, i32
  }
  func.func @transform_2(%arg0: i32) -> (i32, i32) {
    %c0_i32 = arith.constant 0 : i32
    %c0_i32_0 = arith.constant 0 : i32
    %c0_i32_1 = arith.constant 0 : i32
    return %c0_i32, %c0_i32_0 : i32, i32
  }
  func.func @transform_3(%arg0: i32) -> (i32, i32) {
    %c0_i32 = arith.constant 0 : i32
    %c0_i32_0 = arith.constant 0 : i32
    %c0_i32_1 = arith.constant 0 : i32
    return %c0_i32, %c0_i32_0 : i32, i32
  }
  func.func @transform_4(%arg0: i32) -> (i32, i32, i32, i32) {
    %c0_i32 = arith.constant 0 : i32
    %c0_i32_0 = arith.constant 0 : i32
    %c0_i32_1 = arith.constant 0 : i32
    %c0_i32_2 = arith.constant 0 : i32
    return %arg0, %c0_i32, %c0_i32_0, %c0_i32_1 : i32, i32, i32, i32
  }
  func.func @transform_5(%arg0: i32) -> (i32, i32, i32) {
    %c0_i32 = arith.constant 0 : i32
    %c0_i32_0 = arith.constant 0 : i32
    %c0_i32_1 = arith.constant 0 : i32
    return %arg0, %c0_i32, %c0_i32_0 : i32, i32, i32
  }
  func.func @transform_6(%arg0: i32) -> (i32, i32, i32) {
    %c0_i32 = arith.constant 0 : i32
    %c0_i32_0 = arith.constant 0 : i32
    %c0_i32_1 = arith.constant 0 : i32
    return %arg0, %c0_i32, %c0_i32_0 : i32, i32, i32
  }
}

module attributes {stable_mosaic.version = 11 : i64} {
  func.func @conv1_kernel(%arg0: i32, %arg1: memref<1x16x16x4xf32, #tpu.memory_space<vmem>>, %arg2: memref<36x128xbf16, #tpu.memory_space<vmem>>, %arg3: memref<1x16x16x128xf32, #tpu.memory_space<vmem>>, %arg4: memref<1x1x128xf32, #tpu.memory_space<vmem>>, %arg5: memref<1x1x128xf32, #tpu.memory_space<vmem>>, %arg6: memref<1x18x18x4xf32, #tpu.memory_space<vmem>>, %arg7: memref<256x36xbf16, #tpu.memory_space<vmem>>) attributes {dimension_semantics = [#tpu.dimension_semantics<parallel>], iteration_bounds = array<i64: 2>, scalar_prefetch = 0 : i64, scratch_operands = 2 : i64, tpu.core_type = #tpu.core_type<tc>, window_params = [{transform_indices = @transform_0, window_bounds = array<i64: 1, 16, 16, 4>}, {pipeline_mode = #tpu.pipeline_mode<synchronous>, transform_indices = @transform_1, window_bounds = array<i64: 36, 128>}, {transform_indices = @transform_2, window_bounds = array<i64: 1, 16, 16, 128>}, {transform_indices = @transform_3, window_bounds = array<i64: 1, 1, 128>}, {transform_indices = @transform_4, window_bounds = array<i64: 1, 1, 128>}]} {
    %c0 = arith.constant 0 : index
    %c0_0 = arith.constant 0 : index
    %c0_1 = arith.constant 0 : index
    %c0_2 = arith.constant 0 : index
    %0 = vector.load %arg1[%c0, %c0_0, %c0_1, %c0_2] : memref<1x16x16x4xf32, #tpu.memory_space<vmem>>, vector<1x16x16x4xf32>
    %cst = arith.constant 0.000000e+00 : f32
    %1 = vector.broadcast %cst : f32 to vector<1x1x18x4xf32>
    %c0_3 = arith.constant 0 : index
    %c0_4 = arith.constant 0 : index
    %c0_5 = arith.constant 0 : index
    %c0_6 = arith.constant 0 : index
    %2 = vector.load %arg6[%c0_3, %c0_4, %c0_5, %c0_6] : memref<1x18x18x4xf32, #tpu.memory_space<vmem>>, vector<1x1x18x4xf32>
    tpu.vector_store %arg6[%c0_3, %c0_4, %c0_5, %c0_6], %1 {strides = array<i32>} : memref<1x18x18x4xf32, #tpu.memory_space<vmem>>, vector<1x1x18x4xf32>,
    %cst_7 = arith.constant 0.000000e+00 : f32
    %3 = vector.broadcast %cst_7 : f32 to vector<1x1x18x4xf32>
    %c0_8 = arith.constant 0 : index
    %c17 = arith.constant 17 : index
    %c0_9 = arith.constant 0 : index
    %c0_10 = arith.constant 0 : index
    %4 = vector.load %arg6[%c0_8, %c17, %c0_9, %c0_10] : memref<1x18x18x4xf32, #tpu.memory_space<vmem>>, vector<1x1x18x4xf32>
    tpu.vector_store %arg6[%c0_8, %c17, %c0_9, %c0_10], %3 {strides = array<i32>} : memref<1x18x18x4xf32, #tpu.memory_space<vmem>>, vector<1x1x18x4xf32>,
    %cst_11 = arith.constant 0.000000e+00 : f32
    %5 = vector.broadcast %cst_11 : f32 to vector<1x16x1x4xf32>
    %c0_12 = arith.constant 0 : index
    %c1 = arith.constant 1 : index
    %c0_13 = arith.constant 0 : index
    %c0_14 = arith.constant 0 : index
    %6 = vector.load %arg6[%c0_12, %c1, %c0_13, %c0_14] : memref<1x18x18x4xf32, #tpu.memory_space<vmem>>, vector<1x16x1x4xf32>
    tpu.vector_store %arg6[%c0_12, %c1, %c0_13, %c0_14], %5 {strides = array<i32>} : memref<1x18x18x4xf32, #tpu.memory_space<vmem>>, vector<1x16x1x4xf32>,
    %cst_15 = arith.constant 0.000000e+00 : f32
    %7 = vector.broadcast %cst_15 : f32 to vector<1x16x1x4xf32>
    %c0_16 = arith.constant 0 : index
    %c1_17 = arith.constant 1 : index
    %c17_18 = arith.constant 17 : index
    %c0_19 = arith.constant 0 : index
    %8 = vector.load %arg6[%c0_16, %c1_17, %c17_18, %c0_19] : memref<1x18x18x4xf32, #tpu.memory_space<vmem>>, vector<1x16x1x4xf32>
    tpu.vector_store %arg6[%c0_16, %c1_17, %c17_18, %c0_19], %7 {strides = array<i32>} : memref<1x18x18x4xf32, #tpu.memory_space<vmem>>, vector<1x16x1x4xf32>,
    %c0_20 = arith.constant 0 : index
    %c1_21 = arith.constant 1 : index
    %c1_22 = arith.constant 1 : index
    %c0_23 = arith.constant 0 : index
    %9 = vector.load %arg6[%c0_20, %c1_21, %c1_22, %c0_23] : memref<1x18x18x4xf32, #tpu.memory_space<vmem>>, vector<1x16x16x4xf32>
    tpu.vector_store %arg6[%c0_20, %c1_21, %c1_22, %c0_23], %0 {strides = array<i32>} : memref<1x18x18x4xf32, #tpu.memory_space<vmem>>, vector<1x16x16x4xf32>,
    %c0_24 = arith.constant 0 : index
    %c0_25 = arith.constant 0 : index
    %c0_26 = arith.constant 0 : index
    %c0_27 = arith.constant 0 : index
    %10 = vector.load %arg6[%c0_24, %c0_25, %c0_26, %c0_27] : memref<1x18x18x4xf32, #tpu.memory_space<vmem>>, vector<1x16x16x4xf32>
    %11 = vector.shape_cast %10 : vector<1x16x16x4xf32> to vector<256x4xf32>
    %12 = arith.truncf %11 : vector<256x4xf32> to vector<256x4xbf16>
    %c0_28 = arith.constant 0 : index
    %c0_29 = arith.constant 0 : index
    %13 = vector.load %arg7[%c0_28, %c0_29] : memref<256x36xbf16, #tpu.memory_space<vmem>>, vector<256x4xbf16>
    tpu.vector_store %arg7[%c0_28, %c0_29], %12 {strides = array<i32>} : memref<256x36xbf16, #tpu.memory_space<vmem>>, vector<256x4xbf16>,
    %c0_30 = arith.constant 0 : index
    %c0_31 = arith.constant 0 : index
    %c1_32 = arith.constant 1 : index
    %c0_33 = arith.constant 0 : index
    %14 = vector.load %arg6[%c0_30, %c0_31, %c1_32, %c0_33] : memref<1x18x18x4xf32, #tpu.memory_space<vmem>>, vector<1x16x16x4xf32>
    %15 = vector.shape_cast %14 : vector<1x16x16x4xf32> to vector<256x4xf32>
    %16 = arith.truncf %15 : vector<256x4xf32> to vector<256x4xbf16>
    %c0_34 = arith.constant 0 : index
    %c4 = arith.constant 4 : index
    %17 = vector.load %arg7[%c0_34, %c4] : memref<256x36xbf16, #tpu.memory_space<vmem>>, vector<256x4xbf16>
    tpu.vector_store %arg7[%c0_34, %c4], %16 {strides = array<i32>} : memref<256x36xbf16, #tpu.memory_space<vmem>>, vector<256x4xbf16>,
    %c0_35 = arith.constant 0 : index
    %c0_36 = arith.constant 0 : index
    %c2 = arith.constant 2 : index
    %c0_37 = arith.constant 0 : index
    %18 = vector.load %arg6[%c0_35, %c0_36, %c2, %c0_37] : memref<1x18x18x4xf32, #tpu.memory_space<vmem>>, vector<1x16x16x4xf32>
    %19 = vector.shape_cast %18 : vector<1x16x16x4xf32> to vector<256x4xf32>
    %20 = arith.truncf %19 : vector<256x4xf32> to vector<256x4xbf16>
    %c0_38 = arith.constant 0 : index
    %c8 = arith.constant 8 : index
    %21 = vector.load %arg7[%c0_38, %c8] : memref<256x36xbf16, #tpu.memory_space<vmem>>, vector<256x4xbf16>
    tpu.vector_store %arg7[%c0_38, %c8], %20 {strides = array<i32>} : memref<256x36xbf16, #tpu.memory_space<vmem>>, vector<256x4xbf16>,
    %c0_39 = arith.constant 0 : index
    %c1_40 = arith.constant 1 : index
    %c0_41 = arith.constant 0 : index
    %c0_42 = arith.constant 0 : index
    %22 = vector.load %arg6[%c0_39, %c1_40, %c0_41, %c0_42] : memref<1x18x18x4xf32, #tpu.memory_space<vmem>>, vector<1x16x16x4xf32>
    %23 = vector.shape_cast %22 : vector<1x16x16x4xf32> to vector<256x4xf32>
    %24 = arith.truncf %23 : vector<256x4xf32> to vector<256x4xbf16>
    %c0_43 = arith.constant 0 : index
    %c12 = arith.constant 12 : index
    %25 = vector.load %arg7[%c0_43, %c12] : memref<256x36xbf16, #tpu.memory_space<vmem>>, vector<256x4xbf16>
    tpu.vector_store %arg7[%c0_43, %c12], %24 {strides = array<i32>} : memref<256x36xbf16, #tpu.memory_space<vmem>>, vector<256x4xbf16>,
    %c0_44 = arith.constant 0 : index
    %c1_45 = arith.constant 1 : index
    %c1_46 = arith.constant 1 : index
    %c0_47 = arith.constant 0 : index
    %26 = vector.load %arg6[%c0_44, %c1_45, %c1_46, %c0_47] : memref<1x18x18x4xf32, #tpu.memory_space<vmem>>, vector<1x16x16x4xf32>
    %27 = vector.shape_cast %26 : vector<1x16x16x4xf32> to vector<256x4xf32>
    %28 = arith.truncf %27 : vector<256x4xf32> to vector<256x4xbf16>
    %c0_48 = arith.constant 0 : index
    %c16 = arith.constant 16 : index
    %29 = vector.load %arg7[%c0_48, %c16] : memref<256x36xbf16, #tpu.memory_space<vmem>>, vector<256x4xbf16>
    tpu.vector_store %arg7[%c0_48, %c16], %28 {strides = array<i32>} : memref<256x36xbf16, #tpu.memory_space<vmem>>, vector<256x4xbf16>,
    %c0_49 = arith.constant 0 : index
    %c1_50 = arith.constant 1 : index
    %c2_51 = arith.constant 2 : index
    %c0_52 = arith.constant 0 : index
    %30 = vector.load %arg6[%c0_49, %c1_50, %c2_51, %c0_52] : memref<1x18x18x4xf32, #tpu.memory_space<vmem>>, vector<1x16x16x4xf32>
    %31 = vector.shape_cast %30 : vector<1x16x16x4xf32> to vector<256x4xf32>
    %32 = arith.truncf %31 : vector<256x4xf32> to vector<256x4xbf16>
    %c0_53 = arith.constant 0 : index
    %c20 = arith.constant 20 : index
    %33 = vector.load %arg7[%c0_53, %c20] : memref<256x36xbf16, #tpu.memory_space<vmem>>, vector<256x4xbf16>
    tpu.vector_store %arg7[%c0_53, %c20], %32 {strides = array<i32>} : memref<256x36xbf16, #tpu.memory_space<vmem>>, vector<256x4xbf16>,
    %c0_54 = arith.constant 0 : index
    %c2_55 = arith.constant 2 : index
    %c0_56 = arith.constant 0 : index
    %c0_57 = arith.constant 0 : index
    %34 = vector.load %arg6[%c0_54, %c2_55, %c0_56, %c0_57] : memref<1x18x18x4xf32, #tpu.memory_space<vmem>>, vector<1x16x16x4xf32>
    %35 = vector.shape_cast %34 : vector<1x16x16x4xf32> to vector<256x4xf32>
    %36 = arith.truncf %35 : vector<256x4xf32> to vector<256x4xbf16>
    %c0_58 = arith.constant 0 : index
    %c24 = arith.constant 24 : index
    %37 = vector.load %arg7[%c0_58, %c24] : memref<256x36xbf16, #tpu.memory_space<vmem>>, vector<256x4xbf16>
    tpu.vector_store %arg7[%c0_58, %c24], %36 {strides = array<i32>} : memref<256x36xbf16, #tpu.memory_space<vmem>>, vector<256x4xbf16>,
    %c0_59 = arith.constant 0 : index
    %c2_60 = arith.constant 2 : index
    %c1_61 = arith.constant 1 : index
    %c0_62 = arith.constant 0 : index
    %38 = vector.load %arg6[%c0_59, %c2_60, %c1_61, %c0_62] : memref<1x18x18x4xf32, #tpu.memory_space<vmem>>, vector<1x16x16x4xf32>
    %39 = vector.shape_cast %38 : vector<1x16x16x4xf32> to vector<256x4xf32>
    %40 = arith.truncf %39 : vector<256x4xf32> to vector<256x4xbf16>
    %c0_63 = arith.constant 0 : index
    %c28 = arith.constant 28 : index
    %41 = vector.load %arg7[%c0_63, %c28] : memref<256x36xbf16, #tpu.memory_space<vmem>>, vector<256x4xbf16>
    tpu.vector_store %arg7[%c0_63, %c28], %40 {strides = array<i32>} : memref<256x36xbf16, #tpu.memory_space<vmem>>, vector<256x4xbf16>,
    %c0_64 = arith.constant 0 : index
    %c2_65 = arith.constant 2 : index
    %c2_66 = arith.constant 2 : index
    %c0_67 = arith.constant 0 : index
    %42 = vector.load %arg6[%c0_64, %c2_65, %c2_66, %c0_67] : memref<1x18x18x4xf32, #tpu.memory_space<vmem>>, vector<1x16x16x4xf32>
    %43 = vector.shape_cast %42 : vector<1x16x16x4xf32> to vector<256x4xf32>
    %44 = arith.truncf %43 : vector<256x4xf32> to vector<256x4xbf16>
    %c0_68 = arith.constant 0 : index
    %c32 = arith.constant 32 : index
    %45 = vector.load %arg7[%c0_68, %c32] : memref<256x36xbf16, #tpu.memory_space<vmem>>, vector<256x4xbf16>
    tpu.vector_store %arg7[%c0_68, %c32], %44 {strides = array<i32>} : memref<256x36xbf16, #tpu.memory_space<vmem>>, vector<256x4xbf16>,
    %c0_69 = arith.constant 0 : index
    %c0_70 = arith.constant 0 : index
    %46 = vector.load %arg7[%c0_69, %c0_70] : memref<256x36xbf16, #tpu.memory_space<vmem>>, vector<256x36xbf16>
    %c0_71 = arith.constant 0 : index
    %c0_72 = arith.constant 0 : index
    %47 = vector.load %arg2[%c0_71, %c0_72] : memref<36x128xbf16, #tpu.memory_space<vmem>>, vector<36x128xbf16>
    %cst_73 = arith.constant dense<0.000000e+00> : vector<256x128xf32>
    %48 = tpu.matmul %46, %47, %cst_73 {dimension_numbers = #tpu.dot_dimension_numbers<[1], [0], [0], [1], [0, 0, 1, 1], [], []>} : vector<256x36xbf16>, vector<36x128xbf16>, vector<256x128xf32> -> vector<256x128xf32>
    %49 = vector.shape_cast %48 : vector<256x128xf32> to vector<1x16x16x128xf32>
    %c0_74 = arith.constant 0 : index
    %c0_75 = arith.constant 0 : index
    %c0_76 = arith.constant 0 : index
    %c0_77 = arith.constant 0 : index
    %50 = vector.load %arg3[%c0_74, %c0_75, %c0_76, %c0_77] : memref<1x16x16x128xf32, #tpu.memory_space<vmem>>, vector<1x16x16x128xf32>
    tpu.vector_store %arg3[%c0_74, %c0_75, %c0_76, %c0_77], %49 {strides = array<i32>} : memref<1x16x16x128xf32, #tpu.memory_space<vmem>>, vector<1x16x16x128xf32>,
    %cst_78 = arith.constant dense<0.000000e+00> : vector<128xf32>
    %51 = vector.multi_reduction <add>, %48, %cst_78 [0] : vector<256x128xf32> to vector<128xf32>
    %52 = vector.shape_cast %51 : vector<128xf32> to vector<1x128xf32>
    %53 = vector.shape_cast %52 : vector<1x128xf32> to vector<1x1x128xf32>
    %c0_79 = arith.constant 0 : index
    %c0_80 = arith.constant 0 : index
    %c0_81 = arith.constant 0 : index
    %54 = vector.load %arg4[%c0_79, %c0_80, %c0_81] : memref<1x1x128xf32, #tpu.memory_space<vmem>>, vector<1x1x128xf32>
    tpu.vector_store %arg4[%c0_79, %c0_80, %c0_81], %53 {strides = array<i32>} : memref<1x1x128xf32, #tpu.memory_space<vmem>>, vector<1x1x128xf32>,
    %55 = arith.mulf %48, %48 : vector<256x128xf32>
    %cst_82 = arith.constant dense<0.000000e+00> : vector<128xf32>
    %56 = vector.multi_reduction <add>, %55, %cst_82 [0] : vector<256x128xf32> to vector<128xf32>
    %57 = vector.shape_cast %56 : vector<128xf32> to vector<1x128xf32>
    %58 = vector.shape_cast %57 : vector<1x128xf32> to vector<1x1x128xf32>
    %c0_83 = arith.constant 0 : index
    %c0_84 = arith.constant 0 : index
    %c0_85 = arith.constant 0 : index
    %59 = vector.load %arg5[%c0_83, %c0_84, %c0_85] : memref<1x1x128xf32, #tpu.memory_space<vmem>>, vector<1x1x128xf32>
    tpu.vector_store %arg5[%c0_83, %c0_84, %c0_85], %58 {strides = array<i32>} : memref<1x1x128xf32, #tpu.memory_space<vmem>>, vector<1x1x128xf32>,
    return
  }
  func.func @transform_0(%arg0: i32) -> (i32, i32, i32, i32) {
    %c0_i32 = arith.constant 0 : i32
    %c0_i32_0 = arith.constant 0 : i32
    %c0_i32_1 = arith.constant 0 : i32
    %c0_i32_2 = arith.constant 0 : i32
    return %arg0, %c0_i32, %c0_i32_0, %c0_i32_1 : i32, i32, i32, i32
  }
  func.func @transform_1(%arg0: i32) -> (i32, i32) {
    %c0_i32 = arith.constant 0 : i32
    %c0_i32_0 = arith.constant 0 : i32
    %c0_i32_1 = arith.constant 0 : i32
    return %c0_i32, %c0_i32_0 : i32, i32
  }
  func.func @transform_2(%arg0: i32) -> (i32, i32, i32, i32) {
    %c0_i32 = arith.constant 0 : i32
    %c0_i32_0 = arith.constant 0 : i32
    %c0_i32_1 = arith.constant 0 : i32
    %c0_i32_2 = arith.constant 0 : i32
    return %arg0, %c0_i32, %c0_i32_0, %c0_i32_1 : i32, i32, i32, i32
  }
  func.func @transform_3(%arg0: i32) -> (i32, i32, i32) {
    %c0_i32 = arith.constant 0 : i32
    %c0_i32_0 = arith.constant 0 : i32
    %c0_i32_1 = arith.constant 0 : i32
    return %arg0, %c0_i32, %c0_i32_0 : i32, i32, i32
  }
  func.func @transform_4(%arg0: i32) -> (i32, i32, i32) {
    %c0_i32 = arith.constant 0 : i32
    %c0_i32_0 = arith.constant 0 : i32
    %c0_i32_1 = arith.constant 0 : i32
    return %arg0, %c0_i32, %c0_i32_0 : i32, i32, i32
  }
}

module attributes {stable_mosaic.version = 11 : i64} {
  func.func @output_kernel(%arg0: i32, %arg1: memref<1x16x16x128xf32, #tpu.memory_space<vmem>>, %arg2: memref<1x128xf32, #tpu.memory_space<vmem>>, %arg3: memref<1x128xf32, #tpu.memory_space<vmem>>, %arg4: memref<1x16x16x4xf32, #tpu.memory_space<vmem>>, %arg5: memref<4x128xbf16, #tpu.memory_space<vmem>>, %arg6: memref<1x128xf32, #tpu.memory_space<vmem>>, %arg7: memref<1x16x16x128xf32, #tpu.memory_space<vmem>>) attributes {dimension_semantics = [#tpu.dimension_semantics<parallel>], iteration_bounds = array<i64: 2>, scalar_prefetch = 0 : i64, scratch_operands = 0 : i64, tpu.core_type = #tpu.core_type<tc>, window_params = [{transform_indices = @transform_0, window_bounds = array<i64: 1, 16, 16, 128>}, {pipeline_mode = #tpu.pipeline_mode<synchronous>, transform_indices = @transform_1, window_bounds = array<i64: 1, 128>}, {pipeline_mode = #tpu.pipeline_mode<synchronous>, transform_indices = @transform_2, window_bounds = array<i64: 1, 128>}, {transform_indices = @transform_3, window_bounds = array<i64: 1, 16, 16, 4>}, {pipeline_mode = #tpu.pipeline_mode<synchronous>, transform_indices = @transform_4, window_bounds = array<i64: 4, 128>}, {pipeline_mode = #tpu.pipeline_mode<synchronous>, transform_indices = @transform_5, window_bounds = array<i64: 1, 128>}, {transform_indices = @transform_6, window_bounds = array<i64: 1, 16, 16, 128>}]} {
    %c0 = arith.constant 0 : index
    %c0_0 = arith.constant 0 : index
    %c0_1 = arith.constant 0 : index
    %c0_2 = arith.constant 0 : index
    %0 = vector.load %arg4[%c0, %c0_0, %c0_1, %c0_2] : memref<1x16x16x4xf32, #tpu.memory_space<vmem>>, vector<1x16x16x4xf32>
    %1 = vector.shape_cast %0 : vector<1x16x16x4xf32> to vector<256x4xf32>
    %2 = arith.truncf %1 : vector<256x4xf32> to vector<256x4xbf16>
    %c0_3 = arith.constant 0 : index
    %c0_4 = arith.constant 0 : index
    %3 = vector.load %arg5[%c0_3, %c0_4] : memref<4x128xbf16, #tpu.memory_space<vmem>>, vector<4x128xbf16>
    %cst = arith.constant dense<0.000000e+00> : vector<256x128xf32>
    %4 = tpu.matmul %2, %3, %cst {dimension_numbers = #tpu.dot_dimension_numbers<[1], [0], [0], [1], [0, 0, 1, 1], [], []>} : vector<256x4xbf16>, vector<4x128xbf16>, vector<256x128xf32> -> vector<256x128xf32>
    %c0_5 = arith.constant 0 : index
    %c0_6 = arith.constant 0 : index
    %5 = vector.load %arg6[%c0_5, %c0_6] : memref<1x128xf32, #tpu.memory_space<vmem>>, vector<1x128xf32>
    %6 = vector.broadcast %5 : vector<1x128xf32> to vector<256x128xf32>
    %7 = arith.addf %4, %6 : vector<256x128xf32>
    %c0_7 = arith.constant 0 : index
    %c0_8 = arith.constant 0 : index
    %c0_9 = arith.constant 0 : index
    %c0_10 = arith.constant 0 : index
    %8 = vector.load %arg1[%c0_7, %c0_8, %c0_9, %c0_10] : memref<1x16x16x128xf32, #tpu.memory_space<vmem>>, vector<1x16x16x128xf32>
    %9 = vector.shape_cast %8 : vector<1x16x16x128xf32> to vector<256x128xf32>
    %c0_11 = arith.constant 0 : index
    %c0_12 = arith.constant 0 : index
    %10 = vector.load %arg2[%c0_11, %c0_12] : memref<1x128xf32, #tpu.memory_space<vmem>>, vector<1x128xf32>
    %11 = vector.broadcast %10 : vector<1x128xf32> to vector<256x128xf32>
    %12 = arith.mulf %9, %11 : vector<256x128xf32>
    %c0_13 = arith.constant 0 : index
    %c0_14 = arith.constant 0 : index
    %13 = vector.load %arg3[%c0_13, %c0_14] : memref<1x128xf32, #tpu.memory_space<vmem>>, vector<1x128xf32>
    %14 = vector.broadcast %13 : vector<1x128xf32> to vector<256x128xf32>
    %15 = arith.addf %12, %14 : vector<256x128xf32>
    %16 = arith.addf %15, %7 : vector<256x128xf32>
    %cst_15 = arith.constant 0.000000e+00 : f32
    %17 = vector.broadcast %cst_15 : f32 to vector<256x128xf32>
    %18 = arith.maximumf %16, %17 : vector<256x128xf32>
    %19 = vector.shape_cast %18 : vector<256x128xf32> to vector<1x16x16x128xf32>
    %c0_16 = arith.constant 0 : index
    %c0_17 = arith.constant 0 : index
    %c0_18 = arith.constant 0 : index
    %c0_19 = arith.constant 0 : index
    %20 = vector.load %arg7[%c0_16, %c0_17, %c0_18, %c0_19] : memref<1x16x16x128xf32, #tpu.memory_space<vmem>>, vector<1x16x16x128xf32>
    tpu.vector_store %arg7[%c0_16, %c0_17, %c0_18, %c0_19], %19 {strides = array<i32>} : memref<1x16x16x128xf32, #tpu.memory_space<vmem>>, vector<1x16x16x128xf32>,
    return
  }
  func.func @transform_0(%arg0: i32) -> (i32, i32, i32, i32) {
    %c0_i32 = arith.constant 0 : i32
    %c0_i32_0 = arith.constant 0 : i32
    %c0_i32_1 = arith.constant 0 : i32
    %c0_i32_2 = arith.constant 0 : i32
    return %arg0, %c0_i32, %c0_i32_0, %c0_i32_1 : i32, i32, i32, i32
  }
  func.func @transform_1(%arg0: i32) -> (i32, i32) {
    %c0_i32 = arith.constant 0 : i32
    %c0_i32_0 = arith.constant 0 : i32
    %c0_i32_1 = arith.constant 0 : i32
    return %c0_i32, %c0_i32_0 : i32, i32
  }
  func.func @transform_2(%arg0: i32) -> (i32, i32) {
    %c0_i32 = arith.constant 0 : i32
    %c0_i32_0 = arith.constant 0 : i32
    %c0_i32_1 = arith.constant 0 : i32
    return %c0_i32, %c0_i32_0 : i32, i32
  }
  func.func @transform_3(%arg0: i32) -> (i32, i32, i32, i32) {
    %c0_i32 = arith.constant 0 : i32
    %c0_i32_0 = arith.constant 0 : i32
    %c0_i32_1 = arith.constant 0 : i32
    %c0_i32_2 = arith.constant 0 : i32
    return %arg0, %c0_i32, %c0_i32_0, %c0_i32_1 : i32, i32, i32, i32
  }
  func.func @transform_4(%arg0: i32) -> (i32, i32) {
    %c0_i32 = arith.constant 0 : i32
    %c0_i32_0 = arith.constant 0 : i32
    %c0_i32_1 = arith.constant 0 : i32
    return %c0_i32, %c0_i32_0 : i32, i32
  }
  func.func @transform_5(%arg0: i32) -> (i32, i32) {
    %c0_i32 = arith.constant 0 : i32
    %c0_i32_0 = arith.constant 0 : i32
    %c0_i32_1 = arith.constant 0 : i32
    return %c0_i32, %c0_i32_0 : i32, i32
  }
  func.func @transform_6(%arg0: i32) -> (i32, i32, i32, i32) {
    %c0_i32 = arith.constant 0 : i32
    %c0_i32_0 = arith.constant 0 : i32
    %c0_i32_1 = arith.constant 0 : i32
    %c0_i32_2 = arith.constant 0 : i32
    return %arg0, %c0_i32, %c0_i32_0, %c0_i32_1 : i32, i32, i32, i32
  }
}

</mosaic_0001>

<llo_original>
// kernel: resblock_forward.5
$region0: #{resblock_forward.5}
  #allocation0 [shape = 'u32[]', space=smem, size = 0x4, offset = 0x4, fixed_abs, tag = 'smem constant byte address 0x4 - core index']
  #allocation1 [shape = 'u32[144,128]{1,0:T(1,128)}', space=vmem, size = 0x12000, scoped, tag = 'internal scratch']
  %s0 = inlined_call_operand.vmem [shape: f32[2,16,16,128], index: 0, kind: input, shape index: {}]
  %s1 = inlined_call_operand.vmem [shape: f32[1,128], index: 1, kind: input, shape index: {}]
  %s2 = inlined_call_operand.vmem [shape: f32[1,128], index: 2, kind: input, shape index: {}]
  %s3 = inlined_call_operand.vmem [shape: f32[2,16,16,4], index: 3, kind: input, shape index: {}]
  %s4 = inlined_call_operand.vmem [shape: bf16[4,128], index: 4, kind: input, shape index: {}]
  %s5 = inlined_call_operand.vmem [shape: f32[1,128], index: 5, kind: input, shape index: {}]
  %s6 = inlined_call_operand.vmem [shape: f32[2,16,16,128], index: 6, kind: output, shape index: {}]
  %s7 = sld [smem:[#allocation0]]
  $region57: #{resblock_forward.5} parent=0
    _
  %s9 = ssub.s32 1, %s7
  %s10 = scalar_select 0, %s9, %s7
  loop: start=0, step=1, limit=4
  $region2: #{resblock_forward.5} parent=0 // loop_pre_header
    _
  $region3: #{resblock_forward.5} parent=0 // loop_header
    %s12 = sphi 0, %s16
    %p13 = scmp.ge.s32.totalorder %s12, 4
    %s22 = sphi 0, %s24
    %s25 = sphi 0, %s22
    %s26 = sphi 0, %s25
    %s42 = sphi 0, %s26
    %s46 = sphi 0, %s46
    %s48 = sphi 0, %s46
    %s49 = sphi 0, %s48
    %s63 = sphi 0, %s49
    %s67 = sphi 0, %s67
    %s69 = sphi 0, %s67
    %s70 = sphi 0, %s69
    %s84 = sphi 0, %s70
    %s90 = sphi 0, %s92
    %s93 = sphi 0, %s90
    %s94 = sphi 0, %s93
    %s110 = sphi 0, %s94
    %s114 = sphi 0, %s114
    %s116 = sphi 0, %s114
    %s117 = sphi 0, %s116
    %s131 = sphi 0, %s117
    %s135 = sphi 0, %s135
    %s137 = sphi 0, %s135
    %s138 = sphi 0, %s137
    %s152 = sphi 0, %s138
    %s158 = sphi 0, %s160
    %s161 = sphi 0, %s158
    %s162 = sphi 0, %s161
    %s178 = sphi 0, %s162
  $region4: #{resblock_forward.5} parent=0 // loop_header_branch
    %15 = sbr.rel (%p13) target = $region8
  $region5: #{resblock_forward.5} parent=0 // loop_body
    %s17 = ssub.s32 %s12, 1
    %s18 = ssub.s32 %s12, 2
    %s19 = sadd.s32 %s12, 1
    %s20 = ssub.s32 %s12, %s19
    %p21 = scmp.eq.s32.totalorder %s20, 0
    %s23 = sadd.s32 %s22, 1
    %s24 = scalar_select %p21, %s22, %s23
    %p27 = pneg %p21
    %p28 = scmp.eq.s32.totalorder %s12, 1
    %p29 = por %p27, %p28
    %p30 = scmp.ne.s32.totalorder %s22, %s25
    %p31 = scmp.eq.s32.totalorder %s12, 0
    %p32 = por %p30, %p31
    %p33 = scmp.ne.s32.totalorder %s22, %s25
    %p34 = scmp.eq.s32.totalorder %s17, 1
    %p35 = por %p33, %p34
    %p36 = scmp.ne.s32.totalorder %s25, %s26
    %p37 = scmp.eq.s32.totalorder %s17, 0
    %p38 = por %p36, %p37
    %p39 = scmp.ne.s32.totalorder %s25, %s26
    %p40 = scmp.eq.s32.totalorder %s18, 1
    %p41 = por %p39, %p40
    %p43 = scmp.ne.s32.totalorder %s26, %s42
    %p44 = scmp.eq.s32.totalorder %s18, 0
    %p45 = por %p43, %p44
    %s47 = sadd.s32 %s46, 1
    %p50 = scmp.eq.s32.totalorder %s12, 1
    %p51 = scmp.ne.s32.totalorder %s46, %s48
    %p52 = scmp.eq.s32.totalorder %s12, 0
    %p53 = por %p51, %p52
    %p54 = scmp.ne.s32.totalorder %s46, %s48
    %p55 = scmp.eq.s32.totalorder %s17, 1
    %p56 = por %p54, %p55
    %p57 = scmp.ne.s32.totalorder %s48, %s49
    %p58 = scmp.eq.s32.totalorder %s17, 0
    %p59 = por %p57, %p58
    %p60 = scmp.ne.s32.totalorder %s48, %s49
    %p61 = scmp.eq.s32.totalorder %s18, 1
    %p62 = por %p60, %p61
    %p64 = scmp.ne.s32.totalorder %s49, %s63
    %p65 = scmp.eq.s32.totalorder %s18, 0
    %p66 = por %p64, %p65
    %s68 = sadd.s32 %s67, 1
    %p71 = scmp.eq.s32.totalorder %s12, 1
    %p72 = scmp.ne.s32.totalorder %s67, %s69
    %p73 = scmp.eq.s32.totalorder %s12, 0
    %p74 = por %p72, %p73
    %p75 = scmp.ne.s32.totalorder %s67, %s69
    %p76 = scmp.eq.s32.totalorder %s17, 1
    %p77 = por %p75, %p76
    %p78 = scmp.ne.s32.totalorder %s69, %s70
    %p79 = scmp.eq.s32.totalorder %s17, 0
    %p80 = por %p78, %p79
    %p81 = scmp.ne.s32.totalorder %s69, %s70
    %p82 = scmp.eq.s32.totalorder %s18, 1
    %p83 = por %p81, %p82
    %p85 = scmp.ne.s32.totalorder %s70, %s84
    %p86 = scmp.eq.s32.totalorder %s18, 0
    %p87 = por %p85, %p86
    %s88 = ssub.s32 %s12, %s19
    %p89 = scmp.eq.s32.totalorder %s88, 0
    %s91 = sadd.s32 %s90, 1
    %s92 = scalar_select %p89, %s90, %s91
    %p95 = pneg %p89
    %p96 = scmp.eq.s32.totalorder %s12, 1
    %p97 = por %p95, %p96
    %p98 = scmp.ne.s32.totalorder %s90, %s93
    %p99 = scmp.eq.s32.totalorder %s12, 0
    %p100 = por %p98, %p99
    %p101 = scmp.ne.s32.totalorder %s90, %s93
    %p102 = scmp.eq.s32.totalorder %s17, 1
    %p103 = por %p101, %p102
    %p104 = scmp.ne.s32.totalorder %s93, %s94
    %p105 = scmp.eq.s32.totalorder %s17, 0
    %p106 = por %p104, %p105
    %p107 = scmp.ne.s32.totalorder %s93, %s94
    %p108 = scmp.eq.s32.totalorder %s18, 1
    %p109 = por %p107, %p108
    %p111 = scmp.ne.s32.totalorder %s94, %s110
    %p112 = scmp.eq.s32.totalorder %s18, 0
    %p113 = por %p111, %p112
    %s115 = sadd.s32 %s114, 1
    %p118 = scmp.eq.s32.totalorder %s12, 1
    %p119 = scmp.ne.s32.totalorder %s114, %s116
    %p120 = scmp.eq.s32.totalorder %s12, 0
    %p121 = por %p119, %p120
    %p122 = scmp.ne.s32.totalorder %s114, %s116
    %p123 = scmp.eq.s32.totalorder %s17, 1
    %p124 = por %p122, %p123
    %p125 = scmp.ne.s32.totalorder %s116, %s117
    %p126 = scmp.eq.s32.totalorder %s17, 0
    %p127 = por %p125, %p126
    %p128 = scmp.ne.s32.totalorder %s116, %s117
    %p129 = scmp.eq.s32.totalorder %s18, 1
    %p130 = por %p128, %p129
    %p132 = scmp.ne.s32.totalorder %s117, %s131
    %p133 = scmp.eq.s32.totalorder %s18, 0
    %p134 = por %p132, %p133
    %s136 = sadd.s32 %s135, 1
    %p139 = scmp.eq.s32.totalorder %s12, 1
    %p140 = scmp.ne.s32.totalorder %s135, %s137
    %p141 = scmp.eq.s32.totalorder %s12, 0
    %p142 = por %p140, %p141
    %p143 = scmp.ne.s32.totalorder %s135, %s137
    %p144 = scmp.eq.s32.totalorder %s17, 1
    %p145 = por %p143, %p144
    %p146 = scmp.ne.s32.totalorder %s137, %s138
    %p147 = scmp.eq.s32.totalorder %s17, 0
    %p148 = por %p146, %p147
    %p149 = scmp.ne.s32.totalorder %s137, %s138
    %p150 = scmp.eq.s32.totalorder %s18, 1
    %p151 = por %p149, %p150
    %p153 = scmp.ne.s32.totalorder %s138, %s152
    %p154 = scmp.eq.s32.totalorder %s18, 0
    %p155 = por %p153, %p154
    %s156 = ssub.s32 %s12, %s19
    %p157 = scmp.eq.s32.totalorder %s156, 0
    %s159 = sadd.s32 %s158, 1
    %s160 = scalar_select %p157, %s158, %s159
    %p163 = pneg %p157
    %p164 = scmp.eq.s32.totalorder %s12, 1
    %p165 = por %p163, %p164
    %p166 = scmp.ne.s32.totalorder %s158, %s161
    %p167 = scmp.eq.s32.totalorder %s12, 0
    %p168 = por %p166, %p167
    %p169 = scmp.ne.s32.totalorder %s158, %s161
    %p170 = scmp.eq.s32.totalorder %s17, 1
    %p171 = por %p169, %p170
    %p172 = scmp.ne.s32.totalorder %s161, %s162
    %p173 = scmp.eq.s32.totalorder %s17, 0
    %p174 = por %p172, %p173
    %p175 = scmp.ne.s32.totalorder %s161, %s162
    %p176 = scmp.eq.s32.totalorder %s18, 1
    %p177 = por %p175, %p176
    %p179 = scmp.ne.s32.totalorder %s162, %s178
    %p180 = scmp.eq.s32.totalorder %s18, 0
    %p181 = por %p179, %p180
    %p182 = scmp.le.s32.totalorder 1, %s12
    %p183 = scmp.lt.s32.totalorder %s12, 3
    %p184 = pnand %p182, %p183
    %p185 = pneg %p184
    // Predicated region
    $region9: #{resblock_forward.5} parent=5 // pred_check
      _
    $region10: #{resblock_forward.5} parent=5 // pred_check_branch
      %187 = sbr.rel (%p184) target = $region12
    $region11: #{resblock_forward.5} parent=5 // pred_region
      %s188 = ssub.s32 %s12, 1
      // Predicated region
      $region13: #{resblock_forward.5} parent=11 // pred_check
        %p189 = pneg %p59
      $region14: #{resblock_forward.5} parent=11 // pred_check_branch
        %191 = sbr.rel (%p189) target = $region16
      $region15: #{resblock_forward.5} parent=11 // pred_region
        _
      $region16: #{resblock_forward.5} parent=11 // pred_fallthru
        _
      // Predicated region
      $region17: #{resblock_forward.5} parent=11 // pred_check
        %p192 = pneg %p80
      $region18: #{resblock_forward.5} parent=11 // pred_check_branch
        %194 = sbr.rel (%p192) target = $region20
      $region19: #{resblock_forward.5} parent=11 // pred_region
        _
      $region20: #{resblock_forward.5} parent=11 // pred_fallthru
        _
      // Predicated region
      $region21: #{resblock_forward.5} parent=11 // pred_check
        %p195 = pneg %p127
      $region22: #{resblock_forward.5} parent=11 // pred_check_branch
        %197 = sbr.rel (%p195) target = $region24
      $region23: #{resblock_forward.5} parent=11 // pred_region
        _
      $region24: #{resblock_forward.5} parent=11 // pred_fallthru
        _
      // Predicated region
      $region25: #{resblock_forward.5} parent=11 // pred_check
        %p198 = pneg %p148
      $region26: #{resblock_forward.5} parent=11 // pred_check_branch
        %200 = sbr.rel (%p198) target = $region28
      $region27: #{resblock_forward.5} parent=11 // pred_region
        _
      $region28: #{resblock_forward.5} parent=11 // pred_fallthru
        _
    $region12: #{resblock_forward.5} parent=5 // pred_fallthru
      _
    %p201 = scmp.lt.s32.totalorder %s12, 2
    // Predicated region
    $region29: #{resblock_forward.5} parent=5 // pred_check
      %p202 = pneg %p201
    $region30: #{resblock_forward.5} parent=5 // pred_check_branch
      %204 = sbr.rel (%p202) target = $region32
    $region31: #{resblock_forward.5} parent=5 // pred_region
      // Predicated region
      $region33: #{resblock_forward.5} parent=31 // pred_check
        %p205 = pneg %p32
      $region34: #{resblock_forward.5} parent=31 // pred_check_branch
        %207 = sbr.rel (%p205) target = $region36
      $region35: #{resblock_forward.5} parent=31 // pred_region
        %p208 = scmp.lt.s32.totalorder %s12, 1
        %s209 = scalar_select %p208, %s12, 1
        %s210 = smul.addr %s209, 32
        %s211 = smul.addr %s210, 8
        %s212 = scalar_lea.vmem %s0, %s211
      $region36: #{resblock_forward.5} parent=31 // pred_fallthru
        _
      // Predicated region
      $region37: #{resblock_forward.5} parent=31 // pred_check
        %p213 = pneg %p100
      $region38: #{resblock_forward.5} parent=31 // pred_check_branch
        %215 = sbr.rel (%p213) target = $region40
      $region39: #{resblock_forward.5} parent=31 // pred_region
        %p216 = scmp.lt.s32.totalorder %s12, 1
        %s217 = scalar_select %p216, %s12, 1
        %s218 = smul.addr %s217, 32
        %s219 = smul.addr %s218, 8
        %s220 = scalar_lea.vmem %s3, %s219
      $region40: #{resblock_forward.5} parent=31 // pred_fallthru
        _
    $region32: #{resblock_forward.5} parent=5 // pred_fallthru
      _
    %p221 = scmp.le.s32.totalorder 1, %s12
    %p222 = scmp.lt.s32.totalorder %s12, 3
    %p223 = pnand %p221, %p222
    %p224 = pneg %p223
    // Predicated region
    $region41: #{resblock_forward.5} parent=5 // pred_check
      _
    $region42: #{resblock_forward.5} parent=5 // pred_check_branch
      %226 = sbr.rel (%p223) target = $region44
    $region43: #{resblock_forward.5} parent=5 // pred_region
      %s227 = ssub.s32 %s12, 1
      %p228 = scmp.lt.s32.totalorder %s17, 1
      %s229 = scalar_select %p228, %s17, 1
      %s230 = smul.addr %s229, 32
      %s231 = smul.addr %s230, 8
      %s232 = scalar_lea.vmem %s0, %s231
      %p233 = pneg %p38
      %p234 = pneg %p35
      %p235 = pneg %p59
      %p236 = pneg %p56
      %p237 = pneg %p80
      %p238 = pneg %p77
      %p239 = scmp.lt.s32.totalorder %s17, 1
      %s240 = scalar_select %p239, %s17, 1
      %s241 = smul.addr %s240, 32
      %s242 = smul.addr %s241, 8
      %s243 = scalar_lea.vmem %s3, %s242
      %p244 = pneg %p106
      %p245 = pneg %p103
      %p246 = pneg %p127
      %p247 = pneg %p124
      %p248 = pneg %p148
      %p249 = pneg %p145
      %p250 = pneg %p174
      %p251 = pneg %p171
      %p252 = scmp.lt.s32.totalorder %s17, 1
      %s253 = scalar_select %p252, %s17, 1
      %s254 = smul.addr %s253, 32
      %s255 = smul.addr %s254, 8
      %s256 = scalar_lea.vmem %s6, %s255
      %p257 = scmp.lt.s32.totalorder %s17, 1
      %s258 = scalar_select %p257, %s17, 1
      %s259 = smul.addr %s258, 32
      %s260 = smul.addr %s259, 8
      %s261 = scalar_lea.vmem %s0, %s260
      %p262 = scmp.lt.s32.totalorder %s17, 1
      %s263 = scalar_select %p262, %s17, 1
      %s264 = smul.addr %s263, 32
      %s265 = smul.addr %s264, 8
      %s266 = scalar_lea.vmem %s3, %s265
      %p267 = scmp.lt.s32.totalorder %s17, 1
      %s268 = scalar_select %p267, %s17, 1
      %s269 = smul.addr %s268, 32
      %s270 = smul.addr %s269, 8
      %s271 = scalar_lea.vmem %s6, %s270
      %v273 = vld [vmem:[%s266] sm:$0xff]
      %v274 = vld [vmem:[%s266 + $0x8] sm:$0xff]
      %v275 = vld [vmem:[%s266 + $0x10] sm:$0xff]
      %v276 = vld [vmem:[%s266 + $0x18] sm:$0xff]
      %v277 = vld [vmem:[%s266 + $0x20] sm:$0xff]
      %v278 = vld [vmem:[%s266 + $0x28] sm:$0xff]
      %v279 = vld [vmem:[%s266 + $0x30] sm:$0xff]
      %v280 = vld [vmem:[%s266 + $0x38] sm:$0xff]
      %v281 = vld [vmem:[%s266 + $0x40] sm:$0xff]
      %v282 = vld [vmem:[%s266 + $0x48] sm:$0xff]
      %v283 = vld [vmem:[%s266 + $0x50] sm:$0xff]
      %v284 = vld [vmem:[%s266 + $0x58] sm:$0xff]
      %v285 = vld [vmem:[%s266 + $0x60] sm:$0xff]
      %v286 = vld [vmem:[%s266 + $0x68] sm:$0xff]
      %v287 = vld [vmem:[%s266 + $0x70] sm:$0xff]
      %v288 = vld [vmem:[%s266 + $0x78] sm:$0xff]
      %v289 = vld [vmem:[%s266 + $0x80] sm:$0xff]
      %v290 = vld [vmem:[%s266 + $0x88] sm:$0xff]
      %v291 = vld [vmem:[%s266 + $0x90] sm:$0xff]
      %v292 = vld [vmem:[%s266 + $0x98] sm:$0xff]
      %v293 = vld [vmem:[%s266 + $0xa0] sm:$0xff]
      %v294 = vld [vmem:[%s266 + $0xa8] sm:$0xff]
      %v295 = vld [vmem:[%s266 + $0xb0] sm:$0xff]
      %v296 = vld [vmem:[%s266 + $0xb8] sm:$0xff]
      %v297 = vld [vmem:[%s266 + $0xc0] sm:$0xff]
      %v298 = vld [vmem:[%s266 + $0xc8] sm:$0xff]
      %v299 = vld [vmem:[%s266 + $0xd0] sm:$0xff]
      %v300 = vld [vmem:[%s266 + $0xd8] sm:$0xff]
      %v301 = vld [vmem:[%s266 + $0xe0] sm:$0xff]
      %v302 = vld [vmem:[%s266 + $0xe8] sm:$0xff]
      %v303 = vld [vmem:[%s266 + $0xf0] sm:$0xff]
      %v304 = vld [vmem:[%s266 + $0xf8] sm:$0xff]
      %v305 = vpack.c.bf16 %v274, %v273
      %v306 = vpack.c.bf16 %v276, %v275
      %v307 = vpack.c.bf16 %v278, %v277
      %v308 = vpack.c.bf16 %v280, %v279
      %v309 = vpack.c.bf16 %v282, %v281
      %v310 = vpack.c.bf16 %v284, %v283
      %v311 = vpack.c.bf16 %v286, %v285
      %v312 = vpack.c.bf16 %v288, %v287
      %v313 = vpack.c.bf16 %v290, %v289
      %v314 = vpack.c.bf16 %v292, %v291
      %v315 = vpack.c.bf16 %v294, %v293
      %v316 = vpack.c.bf16 %v296, %v295
      %v317 = vpack.c.bf16 %v298, %v297
      %v318 = vpack.c.bf16 %v300, %v299
      %v319 = vpack.c.bf16 %v302, %v301
      %v320 = vpack.c.bf16 %v304, %v303
      %v321 = vld [vmem:[%s4] sm:$0x3]
      %v322 = vld [vmem:[%s5] sm:$0x1]
      %v324 = vlaneseq
      %v325 = vshrl.u32 %v324, 7
      %v326 = vsub.s32 0, %v325
      %v327 = vrot.slane %v322, %v326
      %vm329 = vcmask 31744
      %v331 = vsel %vm329, %v305, 0
      %v334 = vsel %vm329, %v306, 0
      %v337 = vsel %vm329, %v307, 0
      %v340 = vsel %vm329, %v308, 0
      %v343 = vsel %vm329, %v309, 0
      %v346 = vsel %vm329, %v310, 0
      %v349 = vsel %vm329, %v311, 0
      %v352 = vsel %vm329, %v312, 0
      %v355 = vsel %vm329, %v313, 0
      %v358 = vsel %vm329, %v314, 0
      %v361 = vsel %vm329, %v315, 0
      %v364 = vsel %vm329, %v316, 0
      %v367 = vsel %vm329, %v317, 0
      %v370 = vsel %vm329, %v318, 0
      %v373 = vsel %vm329, %v319, 0
      %v376 = vsel %vm329, %v320, 0
      %vm378 = vcmask 1041408
      %v380 = vsel %vm378, %v321, 0
      %382 = vmatprep.subr.bf16.mxu0 0
      %383 = vmatpush1.bf16.msra.mxu0 %v380
      %384 = vmatprep.subr.bf16.mxu0 0
      %385 = vmatpush1.bf16.msra.mxu0 0
      %386 = vmatprep.subr.bf16.mxu0 0
      %387 = vmatpush1.bf16.msra.mxu0 0
      %388 = vmatprep.subr.bf16.mxu0 0
      %389 = vmatpush1.bf16.msra.mxu0 0
      %390 = vmatprep.subr.bf16.mxu0 0
      %391 = vmatpush1.bf16.msra.mxu0 0
      %392 = vmatprep.subr.bf16.mxu0 0
      %393 = vmatpush1.bf16.msra.mxu0 0
      %394 = vmatprep.subr.bf16.mxu0 0
      %395 = vmatpush1.bf16.msra.mxu0 0
      %396 = vmatprep.subr.bf16.mxu0 0
      %397 = vmatpush1.bf16.msra.mxu0 0
      %398 = vmatprep.subr.bf16.mxu0 0
      %399 = vmatpush1.bf16.msra.mxu0 0
      %400 = vmatprep.subr.bf16.mxu0 0
      %401 = vmatpush1.bf16.msra.mxu0 0
      %402 = vmatprep.subr.bf16.mxu0 0
      %403 = vmatpush1.bf16.msra.mxu0 0
      %404 = vmatprep.subr.bf16.mxu0 0
      %405 = vmatpush1.bf16.msra.mxu0 0
      %406 = vmatprep.subr.bf16.mxu0 0
      %407 = vmatpush1.bf16.msra.mxu0 0
      %408 = vmatprep.subr.bf16.mxu0 0
      %409 = vmatpush1.bf16.msra.mxu0 0
      %410 = vmatprep.subr.bf16.mxu0 0
      %411 = vmatpush1.bf16.msra.mxu0 0
      %412 = vmatprep.subr.bf16.mxu0 0
      %413 = vmatpush1.bf16.msra.mxu0 0
      %414 = vmatprep.mubr.bf16.mxu0 0
      %415 = vmatmul.mubr.bf16.gmra.mrb[0].mxu0 %v331
      %v416 = vpop.f32.mrb[0].mxu0
      %v417 = vadd.f32 %v327, %v416
      %v418 = vpop.f32.mrb[0].mxu0
      %v419 = vpop.f32.mrb[0].mxu0
      %v420 = vadd.f32 %v327, %v419
      %v421 = vpop.f32.mrb[0].mxu0
      %422 = vmatprep.mubr.bf16.mxu0 0
      %423 = vmatmul.mubr.bf16.gmra.mrb[0].mxu0 %v334
      %v424 = vpop.f32.mrb[0].mxu0
      %v425 = vadd.f32 %v327, %v424
      %v426 = vpop.f32.mrb[0].mxu0
      %v427 = vpop.f32.mrb[0].mxu0
      %v428 = vadd.f32 %v327, %v427
      %v429 = vpop.f32.mrb[0].mxu0
      %430 = vmatprep.mubr.bf16.mxu0 0
      %431 = vmatmul.mubr.bf16.gmra.mrb[0].mxu0 %v337
      %v432 = vpop.f32.mrb[0].mxu0
      %v433 = vadd.f32 %v327, %v432
      %v434 = vpop.f32.mrb[0].mxu0
      %v435 = vpop.f32.mrb[0].mxu0
      %v436 = vadd.f32 %v327, %v435
      %v437 = vpop.f32.mrb[0].mxu0
      %438 = vmatprep.mubr.bf16.mxu0 0
      %439 = vmatmul.mubr.bf16.gmra.mrb[0].mxu0 %v340
      %v440 = vpop.f32.mrb[0].mxu0
      %v441 = vadd.f32 %v327, %v440
      %v442 = vpop.f32.mrb[0].mxu0
      %v443 = vpop.f32.mrb[0].mxu0
      %v444 = vadd.f32 %v327, %v443
      %v445 = vpop.f32.mrb[0].mxu0
      %446 = vmatprep.mubr.bf16.mxu0 0
      %447 = vmatmul.mubr.bf16.gmra.mrb[0].mxu0 %v343
      %v448 = vpop.f32.mrb[0].mxu0
      %v449 = vadd.f32 %v327, %v448
      %v450 = vpop.f32.mrb[0].mxu0
      %v451 = vpop.f32.mrb[0].mxu0
      %v452 = vadd.f32 %v327, %v451
      %v453 = vpop.f32.mrb[0].mxu0
      %454 = vmatprep.mubr.bf16.mxu0 0
      %455 = vmatmul.mubr.bf16.gmra.mrb[0].mxu0 %v346
      %v456 = vpop.f32.mrb[0].mxu0
      %v457 = vadd.f32 %v327, %v456
      %v458 = vpop.f32.mrb[0].mxu0
      %v459 = vpop.f32.mrb[0].mxu0
      %v460 = vadd.f32 %v327, %v459
      %v461 = vpop.f32.mrb[0].mxu0
      %462 = vmatprep.mubr.bf16.mxu0 0
      %463 = vmatmul.mubr.bf16.gmra.mrb[0].mxu0 %v349
      %v464 = vpop.f32.mrb[0].mxu0
      %v465 = vadd.f32 %v327, %v464
      %v466 = vpop.f32.mrb[0].mxu0
      %v467 = vpop.f32.mrb[0].mxu0
      %v468 = vadd.f32 %v327, %v467
      %v469 = vpop.f32.mrb[0].mxu0
      %470 = vmatprep.mubr.bf16.mxu0 0
      %471 = vmatmul.mubr.bf16.gmra.mrb[0].mxu0 %v352
      %v472 = vpop.f32.mrb[0].mxu0
      %v473 = vadd.f32 %v327, %v472
      %v474 = vpop.f32.mrb[0].mxu0
      %v475 = vpop.f32.mrb[0].mxu0
      %v476 = vadd.f32 %v327, %v475
      %v477 = vpop.f32.mrb[0].mxu0
      %478 = vmatprep.mubr.bf16.mxu0 0
      %479 = vmatmul.mubr.bf16.gmra.mrb[0].mxu0 %v355
      %v480 = vpop.f32.mrb[0].mxu0
      %v481 = vadd.f32 %v327, %v480
      %v482 = vpop.f32.mrb[0].mxu0
      %v483 = vpop.f32.mrb[0].mxu0
      %v484 = vadd.f32 %v327, %v483
      %v485 = vpop.f32.mrb[0].mxu0
      %486 = vmatprep.mubr.bf16.mxu0 0
      %487 = vmatmul.mubr.bf16.gmra.mrb[0].mxu0 %v358
      %v488 = vpop.f32.mrb[0].mxu0
      %v489 = vadd.f32 %v327, %v488
      %v490 = vpop.f32.mrb[0].mxu0
      %v491 = vpop.f32.mrb[0].mxu0
      %v492 = vadd.f32 %v327, %v491
      %v493 = vpop.f32.mrb[0].mxu0
      %494 = vmatprep.mubr.bf16.mxu0 0
      %495 = vmatmul.mubr.bf16.gmra.mrb[0].mxu0 %v361
      %v496 = vpop.f32.mrb[0].mxu0
      %v497 = vadd.f32 %v327, %v496
      %v498 = vpop.f32.mrb[0].mxu0
      %v499 = vpop.f32.mrb[0].mxu0
      %v500 = vadd.f32 %v327, %v499
      %v501 = vpop.f32.mrb[0].mxu0
      %502 = vmatprep.mubr.bf16.mxu0 0
      %503 = vmatmul.mubr.bf16.gmra.mrb[0].mxu0 %v364
      %v504 = vpop.f32.mrb[0].mxu0
      %v505 = vadd.f32 %v327, %v504
      %v506 = vpop.f32.mrb[0].mxu0
      %v507 = vpop.f32.mrb[0].mxu0
      %v508 = vadd.f32 %v327, %v507
      %v509 = vpop.f32.mrb[0].mxu0
      %510 = vmatprep.mubr.bf16.mxu0 0
      %511 = vmatmul.mubr.bf16.gmra.mrb[0].mxu0 %v367
      %v512 = vpop.f32.mrb[0].mxu0
      %v513 = vadd.f32 %v327, %v512
      %v514 = vpop.f32.mrb[0].mxu0
      %v515 = vpop.f32.mrb[0].mxu0
      %v516 = vadd.f32 %v327, %v515
      %v517 = vpop.f32.mrb[0].mxu0
      %518 = vmatprep.mubr.bf16.mxu0 0
      %519 = vmatmul.mubr.bf16.gmra.mrb[0].mxu0 %v370
      %v520 = vpop.f32.mrb[0].mxu0
      %v521 = vadd.f32 %v327, %v520
      %v522 = vpop.f32.mrb[0].mxu0
      %v523 = vpop.f32.mrb[0].mxu0
      %v524 = vadd.f32 %v327, %v523
      %v525 = vpop.f32.mrb[0].mxu0
      %526 = vmatprep.mubr.bf16.mxu0 0
      %527 = vmatmul.mubr.bf16.gmra.mrb[0].mxu0 %v373
      %v528 = vpop.f32.mrb[0].mxu0
      %v529 = vadd.f32 %v327, %v528
      %v530 = vpop.f32.mrb[0].mxu0
      %v531 = vpop.f32.mrb[0].mxu0
      %v532 = vadd.f32 %v327, %v531
      %v533 = vpop.f32.mrb[0].mxu0
      %534 = vmatprep.mubr.bf16.mxu0 0
      %535 = vmatmul.mubr.bf16.gmra.mrb[0].mxu0 %v376
      %v536 = vpop.f32.mrb[0].mxu0
      %v537 = vadd.f32 %v327, %v536
      %v538 = vpop.f32.mrb[0].mxu0
      %v539 = vpop.f32.mrb[0].mxu0
      %v540 = vadd.f32 %v327, %v539
      %v541 = vpop.f32.mrb[0].mxu0
      %542 = vdwg.mxu0
      %v543 = vld [vmem:[%s261] sm:$0xff]
      %v544 = vld [vmem:[%s261 + $0x8] sm:$0xff]
      %v545 = vld [vmem:[%s261 + $0x10] sm:$0xff]
      %v546 = vld [vmem:[%s261 + $0x18] sm:$0xff]
      %v547 = vld [vmem:[%s261 + $0x20] sm:$0xff]
      %v548 = vld [vmem:[%s261 + $0x28] sm:$0xff]
      %v549 = vld [vmem:[%s261 + $0x30] sm:$0xff]
      %v550 = vld [vmem:[%s261 + $0x38] sm:$0xff]
      %v551 = vld [vmem:[%s261 + $0x40] sm:$0xff]
      %v552 = vld [vmem:[%s261 + $0x48] sm:$0xff]
      %v553 = vld [vmem:[%s261 + $0x50] sm:$0xff]
      %v554 = vld [vmem:[%s261 + $0x58] sm:$0xff]
      %v555 = vld [vmem:[%s261 + $0x60] sm:$0xff]
      %v556 = vld [vmem:[%s261 + $0x68] sm:$0xff]
      %v557 = vld [vmem:[%s261 + $0x70] sm:$0xff]
      %v558 = vld [vmem:[%s261 + $0x78] sm:$0xff]
      %v559 = vld [vmem:[%s261 + $0x80] sm:$0xff]
      %v560 = vld [vmem:[%s261 + $0x88] sm:$0xff]
      %v561 = vld [vmem:[%s261 + $0x90] sm:$0xff]
      %v562 = vld [vmem:[%s261 + $0x98] sm:$0xff]
      %v563 = vld [vmem:[%s261 + $0xa0] sm:$0xff]
      %v564 = vld [vmem:[%s261 + $0xa8] sm:$0xff]
      %v565 = vld [vmem:[%s261 + $0xb0] sm:$0xff]
      %v566 = vld [vmem:[%s261 + $0xb8] sm:$0xff]
      %v567 = vld [vmem:[%s261 + $0xc0] sm:$0xff]
      %v568 = vld [vmem:[%s261 + $0xc8] sm:$0xff]
      %v569 = vld [vmem:[%s261 + $0xd0] sm:$0xff]
      %v570 = vld [vmem:[%s261 + $0xd8] sm:$0xff]
      %v571 = vld [vmem:[%s261 + $0xe0] sm:$0xff]
      %v572 = vld [vmem:[%s261 + $0xe8] sm:$0xff]
      %v573 = vld [vmem:[%s261 + $0xf0] sm:$0xff]
      %v574 = vld [vmem:[%s261 + $0xf8] sm:$0xff]
      %v575 = vld [vmem:[%s1] sm:$0x1]
      %v577 = vlaneseq
      %v578 = vshrl.u32 %v577, 7
      %v579 = vsub.s32 0, %v578
      %v580 = vrot.slane %v575, %v579
      %v582 = vmul.f32 %v543, %v580
      %v583 = vmul.f32 %v544, %v580
      %v584 = vmul.f32 %v545, %v580
      %v585 = vmul.f32 %v546, %v580
      %v586 = vmul.f32 %v547, %v580
      %v587 = vmul.f32 %v548, %v580
      %v588 = vmul.f32 %v549, %v580
      %v589 = vmul.f32 %v550, %v580
      %v590 = vmul.f32 %v551, %v580
      %v591 = vmul.f32 %v552, %v580
      %v592 = vmul.f32 %v553, %v580
      %v593 = vmul.f32 %v554, %v580
      %v594 = vmul.f32 %v555, %v580
      %v595 = vmul.f32 %v556, %v580
      %v596 = vmul.f32 %v557, %v580
      %v597 = vmul.f32 %v558, %v580
      %v598 = vmul.f32 %v559, %v580
      %v599 = vmul.f32 %v560, %v580
      %v600 = vmul.f32 %v561, %v580
      %v601 = vmul.f32 %v562, %v580
      %v602 = vmul.f32 %v563, %v580
      %v603 = vmul.f32 %v564, %v580
      %v604 = vmul.f32 %v565, %v580
      %v605 = vmul.f32 %v566, %v580
      %v606 = vmul.f32 %v567, %v580
      %v607 = vmul.f32 %v568, %v580
      %v608 = vmul.f32 %v569, %v580
      %v609 = vmul.f32 %v570, %v580
      %v610 = vmul.f32 %v571, %v580
      %v611 = vmul.f32 %v572, %v580
      %v612 = vmul.f32 %v573, %v580
      %v613 = vmul.f32 %v574, %v580
      %v614 = vld [vmem:[%s2] sm:$0x1]
      %v616 = vlaneseq
      %v617 = vshrl.u32 %v616, 7
      %v618 = vsub.s32 0, %v617
      %v619 = vrot.slane %v614, %v618
      %v621 = vadd.f32 %v582, %v619
      %v622 = vadd.f32 %v583, %v619
      %v623 = vadd.f32 %v584, %v619
      %v624 = vadd.f32 %v585, %v619
      %v625 = vadd.f32 %v586, %v619
      %v626 = vadd.f32 %v587, %v619
      %v627 = vadd.f32 %v588, %v619
      %v628 = vadd.f32 %v589, %v619
      %v629 = vadd.f32 %v590, %v619
      %v630 = vadd.f32 %v591, %v619
      %v631 = vadd.f32 %v592, %v619
      %v632 = vadd.f32 %v593, %v619
      %v633 = vadd.f32 %v594, %v619
      %v634 = vadd.f32 %v595, %v619
      %v635 = vadd.f32 %v596, %v619
      %v636 = vadd.f32 %v597, %v619
      %v637 = vadd.f32 %v598, %v619
      %v638 = vadd.f32 %v599, %v619
      %v639 = vadd.f32 %v600, %v619
      %v640 = vadd.f32 %v601, %v619
      %v641 = vadd.f32 %v602, %v619
      %v642 = vadd.f32 %v603, %v619
      %v643 = vadd.f32 %v604, %v619
      %v644 = vadd.f32 %v605, %v619
      %v645 = vadd.f32 %v606, %v619
      %v646 = vadd.f32 %v607, %v619
      %v647 = vadd.f32 %v608, %v619
      %v648 = vadd.f32 %v609, %v619
      %v649 = vadd.f32 %v610, %v619
      %v650 = vadd.f32 %v611, %v619
      %v651 = vadd.f32 %v612, %v619
      %v652 = vadd.f32 %v613, %v619
      %v653 = vadd.f32 %v621, %v417
      %v654 = vadd.f32 %v622, %v420
      %v655 = vadd.f32 %v623, %v425
      %v656 = vadd.f32 %v624, %v428
      %v657 = vadd.f32 %v625, %v433
      %v658 = vadd.f32 %v626, %v436
      %v659 = vadd.f32 %v627, %v441
      %v660 = vadd.f32 %v628, %v444
      %v661 = vadd.f32 %v629, %v449
      %v662 = vadd.f32 %v630, %v452
      %v663 = vadd.f32 %v631, %v457
      %v664 = vadd.f32 %v632, %v460
      %v665 = vadd.f32 %v633, %v465
      %v666 = vadd.f32 %v634, %v468
      %v667 = vadd.f32 %v635, %v473
      %v668 = vadd.f32 %v636, %v476
      %v669 = vadd.f32 %v637, %v481
      %v670 = vadd.f32 %v638, %v484
      %v671 = vadd.f32 %v639, %v489
      %v672 = vadd.f32 %v640, %v492
      %v673 = vadd.f32 %v641, %v497
      %v674 = vadd.f32 %v642, %v500
      %v675 = vadd.f32 %v643, %v505
      %v676 = vadd.f32 %v644, %v508
      %v677 = vadd.f32 %v645, %v513
      %v678 = vadd.f32 %v646, %v516
      %v679 = vadd.f32 %v647, %v521
      %v680 = vadd.f32 %v648, %v524
      %v681 = vadd.f32 %v649, %v529
      %v682 = vadd.f32 %v650, %v532
      %v683 = vadd.f32 %v651, %v537
      %v684 = vadd.f32 %v652, %v540
      %v685 = vmax.f32 %v653, 0.0
      %v686 = vmax.f32 %v654, 0.0
      %v687 = vmax.f32 %v655, 0.0
      %v688 = vmax.f32 %v656, 0.0
      %v689 = vmax.f32 %v657, 0.0
      %v690 = vmax.f32 %v658, 0.0
      %v691 = vmax.f32 %v659, 0.0
      %v692 = vmax.f32 %v660, 0.0
      %v693 = vmax.f32 %v661, 0.0
      %v694 = vmax.f32 %v662, 0.0
      %v695 = vmax.f32 %v663, 0.0
      %v696 = vmax.f32 %v664, 0.0
      %v697 = vmax.f32 %v665, 0.0
      %v698 = vmax.f32 %v666, 0.0
      %v699 = vmax.f32 %v667, 0.0
      %v700 = vmax.f32 %v668, 0.0
      %v701 = vmax.f32 %v669, 0.0
      %v702 = vmax.f32 %v670, 0.0
      %v703 = vmax.f32 %v671, 0.0
      %v704 = vmax.f32 %v672, 0.0
      %v705 = vmax.f32 %v673, 0.0
      %v706 = vmax.f32 %v674, 0.0
      %v707 = vmax.f32 %v675, 0.0
      %v708 = vmax.f32 %v676, 0.0
      %v709 = vmax.f32 %v677, 0.0
      %v710 = vmax.f32 %v678, 0.0
      %v711 = vmax.f32 %v679, 0.0
      %v712 = vmax.f32 %v680, 0.0
      %v713 = vmax.f32 %v681, 0.0
      %v714 = vmax.f32 %v682, 0.0
      %v715 = vmax.f32 %v683, 0.0
      %v716 = vmax.f32 %v684, 0.0
      %717 = vst [vmem:[%s271] sm:$0xff] %v685
      %718 = vst [vmem:[%s271 + $0x8] sm:$0xff] %v686
      %719 = vst [vmem:[%s271 + $0x10] sm:$0xff] %v687
      %720 = vst [vmem:[%s271 + $0x18] sm:$0xff] %v688
      %721 = vst [vmem:[%s271 + $0x20] sm:$0xff] %v689
      %722 = vst [vmem:[%s271 + $0x28] sm:$0xff] %v690
      %723 = vst [vmem:[%s271 + $0x30] sm:$0xff] %v691
      %724 = vst [vmem:[%s271 + $0x38] sm:$0xff] %v692
      %725 = vst [vmem:[%s271 + $0x40] sm:$0xff] %v693
      %726 = vst [vmem:[%s271 + $0x48] sm:$0xff] %v694
      %727 = vst [vmem:[%s271 + $0x50] sm:$0xff] %v695
      %728 = vst [vmem:[%s271 + $0x58] sm:$0xff] %v696
      %729 = vst [vmem:[%s271 + $0x60] sm:$0xff] %v697
      %730 = vst [vmem:[%s271 + $0x68] sm:$0xff] %v698
      %731 = vst [vmem:[%s271 + $0x70] sm:$0xff] %v699
      %732 = vst [vmem:[%s271 + $0x78] sm:$0xff] %v700
      %733 = vst [vmem:[%s271 + $0x80] sm:$0xff] %v701
      %734 = vst [vmem:[%s271 + $0x88] sm:$0xff] %v702
      %735 = vst [vmem:[%s271 + $0x90] sm:$0xff] %v703
      %736 = vst [vmem:[%s271 + $0x98] sm:$0xff] %v704
      %737 = vst [vmem:[%s271 + $0xa0] sm:$0xff] %v705
      %738 = vst [vmem:[%s271 + $0xa8] sm:$0xff] %v706
      %739 = vst [vmem:[%s271 + $0xb0] sm:$0xff] %v707
      %740 = vst [vmem:[%s271 + $0xb8] sm:$0xff] %v708
      %741 = vst [vmem:[%s271 + $0xc0] sm:$0xff] %v709
      %742 = vst [vmem:[%s271 + $0xc8] sm:$0xff] %v710
      %743 = vst [vmem:[%s271 + $0xd0] sm:$0xff] %v711
      %744 = vst [vmem:[%s271 + $0xd8] sm:$0xff] %v712
      %745 = vst [vmem:[%s271 + $0xe0] sm:$0xff] %v713
      %746 = vst [vmem:[%s271 + $0xe8] sm:$0xff] %v714
      %747 = vst [vmem:[%s271 + $0xf0] sm:$0xff] %v715
      %748 = vst [vmem:[%s271 + $0xf8] sm:$0xff] %v716
      %p749 = scmp.lt.s32.totalorder %s17, 1
      %s750 = scalar_select %p749, %s17, 1
      %s751 = smul.addr %s750, 32
      %s752 = smul.addr %s751, 8
      %s753 = scalar_lea.vmem %s6, %s752
      // Predicated region
      $region45: #{resblock_forward.5} parent=43 // pred_check
        %p754 = pneg %p171
      $region46: #{resblock_forward.5} parent=43 // pred_check_branch
        %756 = sbr.rel (%p754) target = $region48
      $region47: #{resblock_forward.5} parent=43 // pred_region
        _
      $region48: #{resblock_forward.5} parent=43 // pred_fallthru
        _
    $region44: #{resblock_forward.5} parent=5 // pred_fallthru
      _
    %p757 = scmp.le.s32.totalorder 2, %s12
    // Predicated region
    $region49: #{resblock_forward.5} parent=5 // pred_check
      %p758 = pneg %p757
    $region50: #{resblock_forward.5} parent=5 // pred_check_branch
      %760 = sbr.rel (%p758) target = $region52
    $region51: #{resblock_forward.5} parent=5 // pred_region
      %s761 = ssub.s32 %s12, 2
      // Predicated region
      $region53: #{resblock_forward.5} parent=51 // pred_check
        %p762 = pneg %p177
      $region54: #{resblock_forward.5} parent=51 // pred_check_branch
        %764 = sbr.rel (%p762) target = $region56
      $region55: #{resblock_forward.5} parent=51 // pred_region
        %p765 = scmp.lt.s32.totalorder %s18, 1
        %s766 = scalar_select %p765, %s18, 1
        %s767 = smul.addr %s766, 32
        %s768 = smul.addr %s767, 8
        %s769 = scalar_lea.vmem %s6, %s768
      $region56: #{resblock_forward.5} parent=51 // pred_fallthru
        _
    $region52: #{resblock_forward.5} parent=5 // pred_fallthru
      _
  $region6: #{resblock_forward.5} parent=0 // loop_footer
    %s16 = sadd.s32 1, %s12
  $region7: #{resblock_forward.5} parent=0 // loop_footer_branch
    %11 = sbr.rel target = $region3
  $region8: #{resblock_forward.5} parent=0 // loop_exit
    _

// kernel: resblock_forward.3
$region0: #{resblock_forward.3}
  #allocation0 [shape = 'u32[]', space=smem, size = 0x4, offset = 0x4, fixed_abs, tag = 'smem constant byte address 0x4 - core index']
  #allocation1 [shape = 'u32[144,128]{1,0:T(1,128)}', space=vmem, size = 0x12000, scoped, tag = 'internal scratch']
  #allocation2 [shape = 'f32[1,18,18,4]{3,2,1,0:T(8,128)}', space=vmem, size = 0x36000, scoped, tag = 'scratch operand']
  #allocation3 [shape = 'bf16[256,36]{1,0:T(16,128)(2,1)}', space=vmem, size = 0x10000, scoped, tag = 'scratch operand']
  %s0 = inlined_call_operand.vmem [shape: f32[2,16,16,4], index: 0, kind: input, shape index: {}]
  %s1 = inlined_call_operand.vmem [shape: bf16[36,128], index: 1, kind: input, shape index: {}]
  %s2 = inlined_call_operand.vmem [shape: f32[2,16,16,128], index: 2, kind: output, shape index: {0}]
  %s3 = inlined_call_operand.vmem [shape: f32[2,1,128], index: 3, kind: output, shape index: {1}]
  %s4 = inlined_call_operand.vmem [shape: f32[2,1,128], index: 4, kind: output, shape index: {2}]
  %5 = xla_tuple %s2, %s3, %s4
  %s6 = sld [smem:[#allocation0]]
  $region57: #{resblock_forward.3} parent=0
    _
  %s8 = ssub.s32 1, %s6
  %s9 = scalar_select 0, %s8, %s6
  loop: start=0, step=1, limit=4
  $region2: #{resblock_forward.3} parent=0 // loop_pre_header
    _
  $region3: #{resblock_forward.3} parent=0 // loop_header
    %s11 = sphi 0, %s15
    %p12 = scmp.ge.s32.totalorder %s11, 4
    %s21 = sphi 0, %s23
    %s24 = sphi 0, %s21
    %s25 = sphi 0, %s24
    %s41 = sphi 0, %s25
    %s45 = sphi 0, %s45
    %s47 = sphi 0, %s45
    %s48 = sphi 0, %s47
    %s62 = sphi 0, %s48
    %s68 = sphi 0, %s70
    %s71 = sphi 0, %s68
    %s72 = sphi 0, %s71
    %s88 = sphi 0, %s72
    %s94 = sphi 0, %s96
    %s97 = sphi 0, %s94
    %s98 = sphi 0, %s97
    %s114 = sphi 0, %s98
    %s120 = sphi 0, %s122
    %s123 = sphi 0, %s120
    %s124 = sphi 0, %s123
    %s140 = sphi 0, %s124
  $region4: #{resblock_forward.3} parent=0 // loop_header_branch
    %14 = sbr.rel (%p12) target = $region8
  $region5: #{resblock_forward.3} parent=0 // loop_body
    %s16 = ssub.s32 %s11, 1
    %s17 = ssub.s32 %s11, 2
    %s18 = sadd.s32 %s11, 1
    %s19 = ssub.s32 %s11, %s18
    %p20 = scmp.eq.s32.totalorder %s19, 0
    %s22 = sadd.s32 %s21, 1
    %s23 = scalar_select %p20, %s21, %s22
    %p26 = pneg %p20
    %p27 = scmp.eq.s32.totalorder %s11, 1
    %p28 = por %p26, %p27
    %p29 = scmp.ne.s32.totalorder %s21, %s24
    %p30 = scmp.eq.s32.totalorder %s11, 0
    %p31 = por %p29, %p30
    %p32 = scmp.ne.s32.totalorder %s21, %s24
    %p33 = scmp.eq.s32.totalorder %s16, 1
    %p34 = por %p32, %p33
    %p35 = scmp.ne.s32.totalorder %s24, %s25
    %p36 = scmp.eq.s32.totalorder %s16, 0
    %p37 = por %p35, %p36
    %p38 = scmp.ne.s32.totalorder %s24, %s25
    %p39 = scmp.eq.s32.totalorder %s17, 1
    %p40 = por %p38, %p39
    %p42 = scmp.ne.s32.totalorder %s25, %s41
    %p43 = scmp.eq.s32.totalorder %s17, 0
    %p44 = por %p42, %p43
    %s46 = sadd.s32 %s45, 1
    %p49 = scmp.eq.s32.totalorder %s11, 1
    %p50 = scmp.ne.s32.totalorder %s45, %s47
    %p51 = scmp.eq.s32.totalorder %s11, 0
    %p52 = por %p50, %p51
    %p53 = scmp.ne.s32.totalorder %s45, %s47
    %p54 = scmp.eq.s32.totalorder %s16, 1
    %p55 = por %p53, %p54
    %p56 = scmp.ne.s32.totalorder %s47, %s48
    %p57 = scmp.eq.s32.totalorder %s16, 0
    %p58 = por %p56, %p57
    %p59 = scmp.ne.s32.totalorder %s47, %s48
    %p60 = scmp.eq.s32.totalorder %s17, 1
    %p61 = por %p59, %p60
    %p63 = scmp.ne.s32.totalorder %s48, %s62
    %p64 = scmp.eq.s32.totalorder %s17, 0
    %p65 = por %p63, %p64
    %s66 = ssub.s32 %s11, %s18
    %p67 = scmp.eq.s32.totalorder %s66, 0
    %s69 = sadd.s32 %s68, 1
    %s70 = scalar_select %p67, %s68, %s69
    %p73 = pneg %p67
    %p74 = scmp.eq.s32.totalorder %s11, 1
    %p75 = por %p73, %p74
    %p76 = scmp.ne.s32.totalorder %s68, %s71
    %p77 = scmp.eq.s32.totalorder %s11, 0
    %p78 = por %p76, %p77
    %p79 = scmp.ne.s32.totalorder %s68, %s71
    %p80 = scmp.eq.s32.totalorder %s16, 1
    %p81 = por %p79, %p80
    %p82 = scmp.ne.s32.totalorder %s71, %s72
    %p83 = scmp.eq.s32.totalorder %s16, 0
    %p84 = por %p82, %p83
    %p85 = scmp.ne.s32.totalorder %s71, %s72
    %p86 = scmp.eq.s32.totalorder %s17, 1
    %p87 = por %p85, %p86
    %p89 = scmp.ne.s32.totalorder %s72, %s88
    %p90 = scmp.eq.s32.totalorder %s17, 0
    %p91 = por %p89, %p90
    %s92 = ssub.s32 %s11, %s18
    %p93 = scmp.eq.s32.totalorder %s92, 0
    %s95 = sadd.s32 %s94, 1
    %s96 = scalar_select %p93, %s94, %s95
    %p99 = pneg %p93
    %p100 = scmp.eq.s32.totalorder %s11, 1
    %p101 = por %p99, %p100
    %p102 = scmp.ne.s32.totalorder %s94, %s97
    %p103 = scmp.eq.s32.totalorder %s11, 0
    %p104 = por %p102, %p103
    %p105 = scmp.ne.s32.totalorder %s94, %s97
    %p106 = scmp.eq.s32.totalorder %s16, 1
    %p107 = por %p105, %p106
    %p108 = scmp.ne.s32.totalorder %s97, %s98
    %p109 = scmp.eq.s32.totalorder %s16, 0
    %p110 = por %p108, %p109
    %p111 = scmp.ne.s32.totalorder %s97, %s98
    %p112 = scmp.eq.s32.totalorder %s17, 1
    %p113 = por %p111, %p112
    %p115 = scmp.ne.s32.totalorder %s98, %s114
    %p116 = scmp.eq.s32.totalorder %s17, 0
    %p117 = por %p115, %p116
    %s118 = ssub.s32 %s11, %s18
    %p119 = scmp.eq.s32.totalorder %s118, 0
    %s121 = sadd.s32 %s120, 1
    %s122 = scalar_select %p119, %s120, %s121
    %p125 = pneg %p119
    %p126 = scmp.eq.s32.totalorder %s11, 1
    %p127 = por %p125, %p126
    %p128 = scmp.ne.s32.totalorder %s120, %s123
    %p129 = scmp.eq.s32.totalorder %s11, 0
    %p130 = por %p128, %p129
    %p131 = scmp.ne.s32.totalorder %s120, %s123
    %p132 = scmp.eq.s32.totalorder %s16, 1
    %p133 = por %p131, %p132
    %p134 = scmp.ne.s32.totalorder %s123, %s124
    %p135 = scmp.eq.s32.totalorder %s16, 0
    %p136 = por %p134, %p135
    %p137 = scmp.ne.s32.totalorder %s123, %s124
    %p138 = scmp.eq.s32.totalorder %s17, 1
    %p139 = por %p137, %p138
    %p141 = scmp.ne.s32.totalorder %s124, %s140
    %p142 = scmp.eq.s32.totalorder %s17, 0
    %p143 = por %p141, %p142
    %p144 = scmp.le.s32.totalorder 1, %s11
    %p145 = scmp.lt.s32.totalorder %s11, 3
    %p146 = pnand %p144, %p145
    %p147 = pneg %p146
    // Predicated region
    $region9: #{resblock_forward.3} parent=5 // pred_check
      _
    $region10: #{resblock_forward.3} parent=5 // pred_check_branch
      %149 = sbr.rel (%p146) target = $region12
    $region11: #{resblock_forward.3} parent=5 // pred_region
      %s150 = ssub.s32 %s11, 1
      // Predicated region
      $region13: #{resblock_forward.3} parent=11 // pred_check
        %p151 = pneg %p58
      $region14: #{resblock_forward.3} parent=11 // pred_check_branch
        %153 = sbr.rel (%p151) target = $region16
      $region15: #{resblock_forward.3} parent=11 // pred_region
        _
      $region16: #{resblock_forward.3} parent=11 // pred_fallthru
        _
    $region12: #{resblock_forward.3} parent=5 // pred_fallthru
      _
    %p154 = scmp.lt.s32.totalorder %s11, 2
    // Predicated region
    $region17: #{resblock_forward.3} parent=5 // pred_check
      %p155 = pneg %p154
    $region18: #{resblock_forward.3} parent=5 // pred_check_branch
      %157 = sbr.rel (%p155) target = $region20
    $region19: #{resblock_forward.3} parent=5 // pred_region
      // Predicated region
      $region21: #{resblock_forward.3} parent=19 // pred_check
        %p158 = pneg %p31
      $region22: #{resblock_forward.3} parent=19 // pred_check_branch
        %160 = sbr.rel (%p158) target = $region24
      $region23: #{resblock_forward.3} parent=19 // pred_region
        %p161 = scmp.lt.s32.totalorder %s11, 1
        %s162 = scalar_select %p161, %s11, 1
        %s163 = smul.addr %s162, 32
        %s164 = smul.addr %s163, 8
        %s165 = scalar_lea.vmem %s0, %s164
      $region24: #{resblock_forward.3} parent=19 // pred_fallthru
        _
    $region20: #{resblock_forward.3} parent=5 // pred_fallthru
      _
    %p166 = scmp.le.s32.totalorder 1, %s11
    %p167 = scmp.lt.s32.totalorder %s11, 3
    %p168 = pnand %p166, %p167
    %p169 = pneg %p168
    // Predicated region
    $region25: #{resblock_forward.3} parent=5 // pred_check
      _
    $region26: #{resblock_forward.3} parent=5 // pred_check_branch
      %171 = sbr.rel (%p168) target = $region28
    $region27: #{resblock_forward.3} parent=5 // pred_region
      %s172 = ssub.s32 %s11, 1
      %p173 = scmp.lt.s32.totalorder %s16, 1
      %s174 = scalar_select %p173, %s16, 1
      %s175 = smul.addr %s174, 32
      %s176 = smul.addr %s175, 8
      %s177 = scalar_lea.vmem %s0, %s176
      %p178 = pneg %p37
      %p179 = pneg %p34
      %p180 = pneg %p58
      %p181 = pneg %p55
      %p182 = pneg %p84
      %p183 = pneg %p81
      %p184 = scmp.lt.s32.totalorder %s16, 1
      %s185 = scalar_select %p184, %s16, 1
      %s186 = smul.addr %s185, 32
      %s187 = smul.addr %s186, 8
      %s188 = scalar_lea.vmem %s2, %s187
      %p189 = pneg %p110
      %p190 = pneg %p107
      %p191 = scmp.lt.s32.totalorder %s16, 1
      %s192 = scalar_select %p191, %s16, 1
      %s193 = scalar_lea.vmem %s3, %s192
      %p194 = pneg %p136
      %p195 = pneg %p133
      %p196 = scmp.lt.s32.totalorder %s16, 1
      %s197 = scalar_select %p196, %s16, 1
      %s198 = scalar_lea.vmem %s4, %s197
      %p199 = scmp.lt.s32.totalorder %s16, 1
      %s200 = scalar_select %p199, %s16, 1
      %s201 = smul.addr %s200, 32
      %s202 = smul.addr %s201, 8
      %s203 = scalar_lea.vmem %s0, %s202
      %p204 = scmp.lt.s32.totalorder %s16, 1
      %s205 = scalar_select %p204, %s16, 1
      %s206 = smul.addr %s205, 32
      %s207 = smul.addr %s206, 8
      %s208 = scalar_lea.vmem %s2, %s207
      %p209 = scmp.lt.s32.totalorder %s16, 1
      %s210 = scalar_select %p209, %s16, 1
      %s211 = scalar_lea.vmem %s3, %s210
      %p212 = scmp.lt.s32.totalorder %s16, 1
      %s213 = scalar_select %p212, %s16, 1
      %s214 = scalar_lea.vmem %s4, %s213
      %v216 = vld [vmem:[%s203] sm:$0xff]
      %v217 = vld [vmem:[%s203 + $0x8] sm:$0xff]
      %v218 = vld [vmem:[%s203 + $0x10] sm:$0xff]
      %v219 = vld [vmem:[%s203 + $0x18] sm:$0xff]
      %v220 = vld [vmem:[%s203 + $0x20] sm:$0xff]
      %v221 = vld [vmem:[%s203 + $0x28] sm:$0xff]
      %v222 = vld [vmem:[%s203 + $0x30] sm:$0xff]
      %v223 = vld [vmem:[%s203 + $0x38] sm:$0xff]
      %v224 = vld [vmem:[%s203 + $0x40] sm:$0xff]
      %v225 = vld [vmem:[%s203 + $0x48] sm:$0xff]
      %v226 = vld [vmem:[%s203 + $0x50] sm:$0xff]
      %v227 = vld [vmem:[%s203 + $0x58] sm:$0xff]
      %v228 = vld [vmem:[%s203 + $0x60] sm:$0xff]
      %v229 = vld [vmem:[%s203 + $0x68] sm:$0xff]
      %v230 = vld [vmem:[%s203 + $0x70] sm:$0xff]
      %v231 = vld [vmem:[%s203 + $0x78] sm:$0xff]
      %v232 = vld [vmem:[%s203 + $0x80] sm:$0xff]
      %v233 = vld [vmem:[%s203 + $0x88] sm:$0xff]
      %v234 = vld [vmem:[%s203 + $0x90] sm:$0xff]
      %v235 = vld [vmem:[%s203 + $0x98] sm:$0xff]
      %v236 = vld [vmem:[%s203 + $0xa0] sm:$0xff]
      %v237 = vld [vmem:[%s203 + $0xa8] sm:$0xff]
      %v238 = vld [vmem:[%s203 + $0xb0] sm:$0xff]
      %v239 = vld [vmem:[%s203 + $0xb8] sm:$0xff]
      %v240 = vld [vmem:[%s203 + $0xc0] sm:$0xff]
      %v241 = vld [vmem:[%s203 + $0xc8] sm:$0xff]
      %v242 = vld [vmem:[%s203 + $0xd0] sm:$0xff]
      %v243 = vld [vmem:[%s203 + $0xd8] sm:$0xff]
      %v244 = vld [vmem:[%s203 + $0xe0] sm:$0xff]
      %v245 = vld [vmem:[%s203 + $0xe8] sm:$0xff]
      %v246 = vld [vmem:[%s203 + $0xf0] sm:$0xff]
      %v247 = vld [vmem:[%s203 + $0xf8] sm:$0xff]
      %vm248 = vcmask 31744
      %249 = vst.msk [vmem:[#allocation2] sm:$0xff] %vm248, 0.0
      %250 = vst.msk [vmem:[#allocation2 + $0x8] sm:$0xff] %vm248, 0.0
      %vm251 = vcmask 25600
      %252 = vst.msk [vmem:[#allocation2 + $0x10] sm:$0x3] %vm251, 0.0
      %s253 = scalar_lea.vmem [#allocation2], 408
      %254 = vst.msk [vmem:[%s253] sm:$0xff] %vm248, 0.0
      %255 = vst.msk [vmem:[%s253 + $0x8] sm:$0xff] %vm248, 0.0
      %256 = vst.msk [vmem:[%s253 + $0x10] sm:$0x3] %vm251, 0.0
      %s257 = scalar_lea.vmem [#allocation2], 24
      %vm258 = vcmask 24576
      %259 = vst.msk [vmem:[%s257] sm:$0x1] %vm258, 0.0
      %260 = vst.msk [vmem:[%s257 + $0x18] sm:$0x1] %vm258, 0.0
      %261 = vst.msk [vmem:[%s257 + $0x30] sm:$0x1] %vm258, 0.0
      %262 = vst.msk [vmem:[%s257 + $0x48] sm:$0x1] %vm258, 0.0
      %263 = vst.msk [vmem:[%s257 + $0x60] sm:$0x1] %vm258, 0.0
      %264 = vst.msk [vmem:[%s257 + $0x78] sm:$0x1] %vm258, 0.0
      %265 = vst.msk [vmem:[%s257 + $0x90] sm:$0x1] %vm258, 0.0
      %266 = vst.msk [vmem:[%s257 + $0xa8] sm:$0x1] %vm258, 0.0
      %267 = vst.msk [vmem:[%s257 + $0xc0] sm:$0x1] %vm258, 0.0
      %268 = vst.msk [vmem:[%s257 + $0xd8] sm:$0x1] %vm258, 0.0
      %269 = vst.msk [vmem:[%s257 + $0xf0] sm:$0x1] %vm258, 0.0
      %270 = vst.msk [vmem:[%s257 + $0x108] sm:$0x1] %vm258, 0.0
      %271 = vst.msk [vmem:[%s257 + $0x120] sm:$0x1] %vm258, 0.0
      %272 = vst.msk [vmem:[%s257 + $0x138] sm:$0x1] %vm258, 0.0
      %273 = vst.msk [vmem:[%s257 + $0x150] sm:$0x1] %vm258, 0.0
      %274 = vst.msk [vmem:[%s257 + $0x168] sm:$0x1] %vm258, 0.0
      %275 = vst.msk [vmem:[%s257 + $0x11] sm:$0x1] %vm258, 0.0
      %276 = vst.msk [vmem:[%s257 + $0x29] sm:$0x1] %vm258, 0.0
      %277 = vst.msk [vmem:[%s257 + $0x41] sm:$0x1] %vm258, 0.0
      %278 = vst.msk [vmem:[%s257 + $0x59] sm:$0x1] %vm258, 0.0
      %279 = vst.msk [vmem:[%s257 + $0x71] sm:$0x1] %vm258, 0.0
      %280 = vst.msk [vmem:[%s257 + $0x89] sm:$0x1] %vm258, 0.0
      %281 = vst.msk [vmem:[%s257 + $0xa1] sm:$0x1] %vm258, 0.0
      %282 = vst.msk [vmem:[%s257 + $0xb9] sm:$0x1] %vm258, 0.0
      %283 = vst.msk [vmem:[%s257 + $0xd1] sm:$0x1] %vm258, 0.0
      %284 = vst.msk [vmem:[%s257 + $0xe9] sm:$0x1] %vm258, 0.0
      %285 = vst.msk [vmem:[%s257 + $0x101] sm:$0x1] %vm258, 0.0
      %286 = vst.msk [vmem:[%s257 + $0x119] sm:$0x1] %vm258, 0.0
      %287 = vst.msk [vmem:[%s257 + $0x131] sm:$0x1] %vm258, 0.0
      %288 = vst.msk [vmem:[%s257 + $0x149] sm:$0x1] %vm258, 0.0
      %289 = vst.msk [vmem:[%s257 + $0x161] sm:$0x1] %vm258, 0.0
      %290 = vst.msk [vmem:[%s257 + $0x179] sm:$0x1] %vm258, 0.0
      %291 = vst.msk [vmem:[%s257 + $0x1] sm:$0xff] %vm248, %v216
      %292 = vst.msk [vmem:[%s257 + $0x9] sm:$0xff] %vm248, %v217
      %293 = vst.msk [vmem:[%s257 + $0x19] sm:$0xff] %vm248, %v218
      %294 = vst.msk [vmem:[%s257 + $0x21] sm:$0xff] %vm248, %v219
      %295 = vst.msk [vmem:[%s257 + $0x31] sm:$0xff] %vm248, %v220
      %296 = vst.msk [vmem:[%s257 + $0x39] sm:$0xff] %vm248, %v221
      %297 = vst.msk [vmem:[%s257 + $0x49] sm:$0xff] %vm248, %v222
      %298 = vst.msk [vmem:[%s257 + $0x51] sm:$0xff] %vm248, %v223
      %299 = vst.msk [vmem:[%s257 + $0x61] sm:$0xff] %vm248, %v224
      %300 = vst.msk [vmem:[%s257 + $0x69] sm:$0xff] %vm248, %v225
      %301 = vst.msk [vmem:[%s257 + $0x79] sm:$0xff] %vm248, %v226
      %302 = vst.msk [vmem:[%s257 + $0x81] sm:$0xff] %vm248, %v227
      %303 = vst.msk [vmem:[%s257 + $0x91] sm:$0xff] %vm248, %v228
      %304 = vst.msk [vmem:[%s257 + $0x99] sm:$0xff] %vm248, %v229
      %305 = vst.msk [vmem:[%s257 + $0xa9] sm:$0xff] %vm248, %v230
      %306 = vst.msk [vmem:[%s257 + $0xb1] sm:$0xff] %vm248, %v231
      %307 = vst.msk [vmem:[%s257 + $0xc1] sm:$0xff] %vm248, %v232
      %308 = vst.msk [vmem:[%s257 + $0xc9] sm:$0xff] %vm248, %v233
      %309 = vst.msk [vmem:[%s257 + $0xd9] sm:$0xff] %vm248, %v234
      %310 = vst.msk [vmem:[%s257 + $0xe1] sm:$0xff] %vm248, %v235
      %311 = vst.msk [vmem:[%s257 + $0xf1] sm:$0xff] %vm248, %v236
      %312 = vst.msk [vmem:[%s257 + $0xf9] sm:$0xff] %vm248, %v237
      %313 = vst.msk [vmem:[%s257 + $0x109] sm:$0xff] %vm248, %v238
      %314 = vst.msk [vmem:[%s257 + $0x111] sm:$0xff] %vm248, %v239
      %315 = vst.msk [vmem:[%s257 + $0x121] sm:$0xff] %vm248, %v240
      %316 = vst.msk [vmem:[%s257 + $0x129] sm:$0xff] %vm248, %v241
      %317 = vst.msk [vmem:[%s257 + $0x139] sm:$0xff] %vm248, %v242
      %318 = vst.msk [vmem:[%s257 + $0x141] sm:$0xff] %vm248, %v243
      %319 = vst.msk [vmem:[%s257 + $0x151] sm:$0xff] %vm248, %v244
      %320 = vst.msk [vmem:[%s257 + $0x159] sm:$0xff] %vm248, %v245
      %321 = vst.msk [vmem:[%s257 + $0x169] sm:$0xff] %vm248, %v246
      %322 = vst.msk [vmem:[%s257 + $0x171] sm:$0xff] %vm248, %v247
      %v323 = vld [vmem:[#allocation2] sm:$0xff]
      %v324 = vld [vmem:[#allocation2 + $0x8] sm:$0xff]
      %v325 = vld [vmem:[#allocation2 + $0x18] sm:$0xff]
      %v326 = vld [vmem:[#allocation2 + $0x20] sm:$0xff]
      %v327 = vld [vmem:[#allocation2 + $0x30] sm:$0xff]
      %v328 = vld [vmem:[#allocation2 + $0x38] sm:$0xff]
      %v329 = vld [vmem:[#allocation2 + $0x48] sm:$0xff]
      %v330 = vld [vmem:[#allocation2 + $0x50] sm:$0xff]
      %v331 = vld [vmem:[#allocation2 + $0x60] sm:$0xff]
      %v332 = vld [vmem:[#allocation2 + $0x68] sm:$0xff]
      %v333 = vld [vmem:[#allocation2 + $0x78] sm:$0xff]
      %v334 = vld [vmem:[#allocation2 + $0x80] sm:$0xff]
      %v335 = vld [vmem:[#allocation2 + $0x90] sm:$0xff]
      %v336 = vld [vmem:[#allocation2 + $0x98] sm:$0xff]
      %v337 = vld [vmem:[#allocation2 + $0xa8] sm:$0xff]
      %v338 = vld [vmem:[#allocation2 + $0xb0] sm:$0xff]
      %v339 = vld [vmem:[#allocation2 + $0xc0] sm:$0xff]
      %v340 = vld [vmem:[#allocation2 + $0xc8] sm:$0xff]
      %v341 = vld [vmem:[#allocation2 + $0xd8] sm:$0xff]
      %v342 = vld [vmem:[#allocation2 + $0xe0] sm:$0xff]
      %v343 = vld [vmem:[#allocation2 + $0xf0] sm:$0xff]
      %v344 = vld [vmem:[#allocation2 + $0xf8] sm:$0xff]
      %v345 = vld [vmem:[#allocation2 + $0x108] sm:$0xff]
      %v346 = vld [vmem:[#allocation2 + $0x110] sm:$0xff]
      %v347 = vld [vmem:[#allocation2 + $0x120] sm:$0xff]
      %v348 = vld [vmem:[#allocation2 + $0x128] sm:$0xff]
      %v349 = vld [vmem:[#allocation2 + $0x138] sm:$0xff]
      %v350 = vld [vmem:[#allocation2 + $0x140] sm:$0xff]
      %v351 = vld [vmem:[#allocation2 + $0x150] sm:$0xff]
      %v352 = vld [vmem:[#allocation2 + $0x158] sm:$0xff]
      %v353 = vld [vmem:[#allocation2 + $0x168] sm:$0xff]
      %v354 = vld [vmem:[#allocation2 + $0x170] sm:$0xff]
      %v355 = vpack.c.bf16 %v324, %v323
      %v356 = vpack.c.bf16 %v326, %v325
      %v357 = vpack.c.bf16 %v328, %v327
      %v358 = vpack.c.bf16 %v330, %v329
      %v359 = vpack.c.bf16 %v332, %v331
      %v360 = vpack.c.bf16 %v334, %v333
      %v361 = vpack.c.bf16 %v336, %v335
      %v362 = vpack.c.bf16 %v338, %v337
      %v363 = vpack.c.bf16 %v340, %v339
      %v364 = vpack.c.bf16 %v342, %v341
      %v365 = vpack.c.bf16 %v344, %v343
      %v366 = vpack.c.bf16 %v346, %v345
      %v367 = vpack.c.bf16 %v348, %v347
      %v368 = vpack.c.bf16 %v350, %v349
      %v369 = vpack.c.bf16 %v352, %v351
      %v370 = vpack.c.bf16 %v354, %v353
      %371 = vst.msk [vmem:[#allocation3] sm:$0xff] %vm248, %v355
      %372 = vst.msk [vmem:[#allocation3 + $0x8] sm:$0xff] %vm248, %v356
      %373 = vst.msk [vmem:[#allocation3 + $0x10] sm:$0xff] %vm248, %v357
      %374 = vst.msk [vmem:[#allocation3 + $0x18] sm:$0xff] %vm248, %v358
      %375 = vst.msk [vmem:[#allocation3 + $0x20] sm:$0xff] %vm248, %v359
      %376 = vst.msk [vmem:[#allocation3 + $0x28] sm:$0xff] %vm248, %v360
      %377 = vst.msk [vmem:[#allocation3 + $0x30] sm:$0xff] %vm248, %v361
      %378 = vst.msk [vmem:[#allocation3 + $0x38] sm:$0xff] %vm248, %v362
      %379 = vst.msk [vmem:[#allocation3 + $0x40] sm:$0xff] %vm248, %v363
      %380 = vst.msk [vmem:[#allocation3 + $0x48] sm:$0xff] %vm248, %v364
      %381 = vst.msk [vmem:[#allocation3 + $0x50] sm:$0xff] %vm248, %v365
      %382 = vst.msk [vmem:[#allocation3 + $0x58] sm:$0xff] %vm248, %v366
      %383 = vst.msk [vmem:[#allocation3 + $0x60] sm:$0xff] %vm248, %v367
      %384 = vst.msk [vmem:[#allocation3 + $0x68] sm:$0xff] %vm248, %v368
      %385 = vst.msk [vmem:[#allocation3 + $0x70] sm:$0xff] %vm248, %v369
      %386 = vst.msk [vmem:[#allocation3 + $0x78] sm:$0xff] %vm248, %v370
      %v387 = vld [vmem:[#allocation2 + $0x1] sm:$0xff]
      %v388 = vld [vmem:[#allocation2 + $0x9] sm:$0xff]
      %v389 = vld [vmem:[#allocation2 + $0x19] sm:$0xff]
      %v390 = vld [vmem:[#allocation2 + $0x21] sm:$0xff]
      %v391 = vld [vmem:[#allocation2 + $0x31] sm:$0xff]
      %v392 = vld [vmem:[#allocation2 + $0x39] sm:$0xff]
      %v393 = vld [vmem:[#allocation2 + $0x49] sm:$0xff]
      %v394 = vld [vmem:[#allocation2 + $0x51] sm:$0xff]
      %v395 = vld [vmem:[#allocation2 + $0x61] sm:$0xff]
      %v396 = vld [vmem:[#allocation2 + $0x69] sm:$0xff]
      %v397 = vld [vmem:[#allocation2 + $0x79] sm:$0xff]
      %v398 = vld [vmem:[#allocation2 + $0x81] sm:$0xff]
      %v399 = vld [vmem:[#allocation2 + $0x91] sm:$0xff]
      %v400 = vld [vmem:[#allocation2 + $0x99] sm:$0xff]
      %v401 = vld [vmem:[#allocation2 + $0xa9] sm:$0xff]
      %v402 = vld [vmem:[#allocation2 + $0xb1] sm:$0xff]
      %v403 = vld [vmem:[#allocation2 + $0xc1] sm:$0xff]
      %v404 = vld [vmem:[#allocation2 + $0xc9] sm:$0xff]
      %v405 = vld [vmem:[#allocation2 + $0xd9] sm:$0xff]
      %v406 = vld [vmem:[#allocation2 + $0xe1] sm:$0xff]
      %v407 = vld [vmem:[#allocation2 + $0xf1] sm:$0xff]
      %v408 = vld [vmem:[#allocation2 + $0xf9] sm:$0xff]
      %v409 = vld [vmem:[#allocation2 + $0x109] sm:$0xff]
      %v410 = vld [vmem:[#allocation2 + $0x111] sm:$0xff]
      %v411 = vld [vmem:[#allocation2 + $0x121] sm:$0xff]
      %v412 = vld [vmem:[#allocation2 + $0x129] sm:$0xff]
      %v413 = vld [vmem:[#allocation2 + $0x139] sm:$0xff]
      %v414 = vld [vmem:[#allocation2 + $0x141] sm:$0xff]
      %v415 = vld [vmem:[#allocation2 + $0x151] sm:$0xff]
      %v416 = vld [vmem:[#allocation2 + $0x159] sm:$0xff]
      %v417 = vld [vmem:[#allocation2 + $0x169] sm:$0xff]
      %v418 = vld [vmem:[#allocation2 + $0x171] sm:$0xff]
      %v419 = vpack.c.bf16 %v388, %v387
      %v420 = vpack.c.bf16 %v390, %v389
      %v421 = vpack.c.bf16 %v392, %v391
      %v422 = vpack.c.bf16 %v394, %v393
      %v423 = vpack.c.bf16 %v396, %v395
      %v424 = vpack.c.bf16 %v398, %v397
      %v425 = vpack.c.bf16 %v400, %v399
      %v426 = vpack.c.bf16 %v402, %v401
      %v427 = vpack.c.bf16 %v404, %v403
      %v428 = vpack.c.bf16 %v406, %v405
      %v429 = vpack.c.bf16 %v408, %v407
      %v430 = vpack.c.bf16 %v410, %v409
      %v431 = vpack.c.bf16 %v412, %v411
      %v432 = vpack.c.bf16 %v414, %v413
      %v433 = vpack.c.bf16 %v416, %v415
      %v434 = vpack.c.bf16 %v418, %v417
      %451 = vrot.lane.b32.xlu0 %v419, 4
      %v452 = vpop.permute.xlu0 %451
      %453 = vrot.lane.b32.xlu0 %v420, 4
      %v454 = vpop.permute.xlu0 %453
      %455 = vrot.lane.b32.xlu0 %v421, 4
      %v456 = vpop.permute.xlu0 %455
      %457 = vrot.lane.b32.xlu0 %v422, 4
      %v458 = vpop.permute.xlu0 %457
      %459 = vrot.lane.b32.xlu0 %v423, 4
      %v460 = vpop.permute.xlu0 %459
      %461 = vrot.lane.b32.xlu0 %v424, 4
      %v462 = vpop.permute.xlu0 %461
      %463 = vrot.lane.b32.xlu0 %v425, 4
      %v464 = vpop.permute.xlu0 %463
      %465 = vrot.lane.b32.xlu0 %v426, 4
      %v466 = vpop.permute.xlu0 %465
      %467 = vrot.lane.b32.xlu0 %v427, 4
      %v468 = vpop.permute.xlu0 %467
      %469 = vrot.lane.b32.xlu0 %v428, 4
      %v470 = vpop.permute.xlu0 %469
      %471 = vrot.lane.b32.xlu0 %v429, 4
      %v472 = vpop.permute.xlu0 %471
      %473 = vrot.lane.b32.xlu0 %v430, 4
      %v474 = vpop.permute.xlu0 %473
      %475 = vrot.lane.b32.xlu0 %v431, 4
      %v476 = vpop.permute.xlu0 %475
      %477 = vrot.lane.b32.xlu0 %v432, 4
      %v478 = vpop.permute.xlu0 %477
      %479 = vrot.lane.b32.xlu0 %v433, 4
      %v480 = vpop.permute.xlu0 %479
      %481 = vrot.lane.b32.xlu0 %v434, 4
      %v482 = vpop.permute.xlu0 %481
      %vm499 = vcmask 64544
      %500 = vst.msk [vmem:[#allocation3] sm:$0xff] %vm499, %v452
      %501 = vst.msk [vmem:[#allocation3 + $0x8] sm:$0xff] %vm499, %v454
      %502 = vst.msk [vmem:[#allocation3 + $0x10] sm:$0xff] %vm499, %v456
      %503 = vst.msk [vmem:[#allocation3 + $0x18] sm:$0xff] %vm499, %v458
      %504 = vst.msk [vmem:[#allocation3 + $0x20] sm:$0xff] %vm499, %v460
      %505 = vst.msk [vmem:[#allocation3 + $0x28] sm:$0xff] %vm499, %v462
      %506 = vst.msk [vmem:[#allocation3 + $0x30] sm:$0xff] %vm499, %v464
      %507 = vst.msk [vmem:[#allocation3 + $0x38] sm:$0xff] %vm499, %v466
      %508 = vst.msk [vmem:[#allocation3 + $0x40] sm:$0xff] %vm499, %v468
      %509 = vst.msk [vmem:[#allocation3 + $0x48] sm:$0xff] %vm499, %v470
      %510 = vst.msk [vmem:[#allocation3 + $0x50] sm:$0xff] %vm499, %v472
      %511 = vst.msk [vmem:[#allocation3 + $0x58] sm:$0xff] %vm499, %v474
      %512 = vst.msk [vmem:[#allocation3 + $0x60] sm:$0xff] %vm499, %v476
      %513 = vst.msk [vmem:[#allocation3 + $0x68] sm:$0xff] %vm499, %v478
      %514 = vst.msk [vmem:[#allocation3 + $0x70] sm:$0xff] %vm499, %v480
      %515 = vst.msk [vmem:[#allocation3 + $0x78] sm:$0xff] %vm499, %v482
      %v516 = vld [vmem:[#allocation2 + $0x2] sm:$0xff]
      %v517 = vld [vmem:[#allocation2 + $0xa] sm:$0xff]
      %v518 = vld [vmem:[#allocation2 + $0x1a] sm:$0xff]
      %v519 = vld [vmem:[#allocation2 + $0x22] sm:$0xff]
      %v520 = vld [vmem:[#allocation2 + $0x32] sm:$0xff]
      %v521 = vld [vmem:[#allocation2 + $0x3a] sm:$0xff]
      %v522 = vld [vmem:[#allocation2 + $0x4a] sm:$0xff]
      %v523 = vld [vmem:[#allocation2 + $0x52] sm:$0xff]
      %v524 = vld [vmem:[#allocation2 + $0x62] sm:$0xff]
      %v525 = vld [vmem:[#allocation2 + $0x6a] sm:$0xff]
      %v526 = vld [vmem:[#allocation2 + $0x7a] sm:$0xff]
      %v527 = vld [vmem:[#allocation2 + $0x82] sm:$0xff]
      %v528 = vld [vmem:[#allocation2 + $0x92] sm:$0xff]
      %v529 = vld [vmem:[#allocation2 + $0x9a] sm:$0xff]
      %v530 = vld [vmem:[#allocation2 + $0xaa] sm:$0xff]
      %v531 = vld [vmem:[#allocation2 + $0xb2] sm:$0xff]
      %v532 = vld [vmem:[#allocation2 + $0xc2] sm:$0xff]
      %v533 = vld [vmem:[#allocation2 + $0xca] sm:$0xff]
      %v534 = vld [vmem:[#allocation2 + $0xda] sm:$0xff]
      %v535 = vld [vmem:[#allocation2 + $0xe2] sm:$0xff]
      %v536 = vld [vmem:[#allocation2 + $0xf2] sm:$0xff]
      %v537 = vld [vmem:[#allocation2 + $0xfa] sm:$0xff]
      %v538 = vld [vmem:[#allocation2 + $0x10a] sm:$0xff]
      %v539 = vld [vmem:[#allocation2 + $0x112] sm:$0xff]
      %v540 = vld [vmem:[#allocation2 + $0x122] sm:$0xff]
      %v541 = vld [vmem:[#allocation2 + $0x12a] sm:$0xff]
      %v542 = vld [vmem:[#allocation2 + $0x13a] sm:$0xff]
      %v543 = vld [vmem:[#allocation2 + $0x142] sm:$0xff]
      %v544 = vld [vmem:[#allocation2 + $0x152] sm:$0xff]
      %v545 = vld [vmem:[#allocation2 + $0x15a] sm:$0xff]
      %v546 = vld [vmem:[#allocation2 + $0x16a] sm:$0xff]
      %v547 = vld [vmem:[#allocation2 + $0x172] sm:$0xff]
      %v548 = vpack.c.bf16 %v517, %v516
      %v549 = vpack.c.bf16 %v519, %v518
      %v550 = vpack.c.bf16 %v521, %v520
      %v551 = vpack.c.bf16 %v523, %v522
      %v552 = vpack.c.bf16 %v525, %v524
      %v553 = vpack.c.bf16 %v527, %v526
      %v554 = vpack.c.bf16 %v529, %v528
      %v555 = vpack.c.bf16 %v531, %v530
      %v556 = vpack.c.bf16 %v533, %v532
      %v557 = vpack.c.bf16 %v535, %v534
      %v558 = vpack.c.bf16 %v537, %v536
      %v559 = vpack.c.bf16 %v539, %v538
      %v560 = vpack.c.bf16 %v541, %v540
      %v561 = vpack.c.bf16 %v543, %v542
      %v562 = vpack.c.bf16 %v545, %v544
      %v563 = vpack.c.bf16 %v547, %v546
      %580 = vrot.lane.b32.xlu0 %v548, 8
      %v581 = vpop.permute.xlu0 %580
      %582 = vrot.lane.b32.xlu0 %v549, 8
      %v583 = vpop.permute.xlu0 %582
      %584 = vrot.lane.b32.xlu0 %v550, 8
      %v585 = vpop.permute.xlu0 %584
      %586 = vrot.lane.b32.xlu0 %v551, 8
      %v587 = vpop.permute.xlu0 %586
      %588 = vrot.lane.b32.xlu0 %v552, 8
      %v589 = vpop.permute.xlu0 %588
      %590 = vrot.lane.b32.xlu0 %v553, 8
      %v591 = vpop.permute.xlu0 %590
      %592 = vrot.lane.b32.xlu0 %v554, 8
      %v593 = vpop.permute.xlu0 %592
      %594 = vrot.lane.b32.xlu0 %v555, 8
      %v595 = vpop.permute.xlu0 %594
      %596 = vrot.lane.b32.xlu0 %v556, 8
      %v597 = vpop.permute.xlu0 %596
      %598 = vrot.lane.b32.xlu0 %v557, 8
      %v599 = vpop.permute.xlu0 %598
      %600 = vrot.lane.b32.xlu0 %v558, 8
      %v601 = vpop.permute.xlu0 %600
      %602 = vrot.lane.b32.xlu0 %v559, 8
      %v603 = vpop.permute.xlu0 %602
      %604 = vrot.lane.b32.xlu0 %v560, 8
      %v605 = vpop.permute.xlu0 %604
      %606 = vrot.lane.b32.xlu0 %v561, 8
      %v607 = vpop.permute.xlu0 %606
      %608 = vrot.lane.b32.xlu0 %v562, 8
      %v609 = vpop.permute.xlu0 %608
      %610 = vrot.lane.b32.xlu0 %v563, 8
      %v611 = vpop.permute.xlu0 %610
      %vm628 = vcmask 97344
      %629 = vst.msk [vmem:[#allocation3] sm:$0xff] %vm628, %v581
      %630 = vst.msk [vmem:[#allocation3 + $0x8] sm:$0xff] %vm628, %v583
      %631 = vst.msk [vmem:[#allocation3 + $0x10] sm:$0xff] %vm628, %v585
      %632 = vst.msk [vmem:[#allocation3 + $0x18] sm:$0xff] %vm628, %v587
      %633 = vst.msk [vmem:[#allocation3 + $0x20] sm:$0xff] %vm628, %v589
      %634 = vst.msk [vmem:[#allocation3 + $0x28] sm:$0xff] %vm628, %v591
      %635 = vst.msk [vmem:[#allocation3 + $0x30] sm:$0xff] %vm628, %v593
      %636 = vst.msk [vmem:[#allocation3 + $0x38] sm:$0xff] %vm628, %v595
      %637 = vst.msk [vmem:[#allocation3 + $0x40] sm:$0xff] %vm628, %v597
      %638 = vst.msk [vmem:[#allocation3 + $0x48] sm:$0xff] %vm628, %v599
      %639 = vst.msk [vmem:[#allocation3 + $0x50] sm:$0xff] %vm628, %v601
      %640 = vst.msk [vmem:[#allocation3 + $0x58] sm:$0xff] %vm628, %v603
      %641 = vst.msk [vmem:[#allocation3 + $0x60] sm:$0xff] %vm628, %v605
      %642 = vst.msk [vmem:[#allocation3 + $0x68] sm:$0xff] %vm628, %v607
      %643 = vst.msk [vmem:[#allocation3 + $0x70] sm:$0xff] %vm628, %v609
      %644 = vst.msk [vmem:[#allocation3 + $0x78] sm:$0xff] %vm628, %v611
      %v645 = vld [vmem:[%s257] sm:$0xff]
      %v646 = vld [vmem:[%s257 + $0x8] sm:$0xff]
      %v647 = vld [vmem:[%s257 + $0x18] sm:$0xff]
      %v648 = vld [vmem:[%s257 + $0x20] sm:$0xff]
      %v649 = vld [vmem:[%s257 + $0x30] sm:$0xff]
      %v650 = vld [vmem:[%s257 + $0x38] sm:$0xff]
      %v651 = vld [vmem:[%s257 + $0x48] sm:$0xff]
      %v652 = vld [vmem:[%s257 + $0x50] sm:$0xff]
      %v653 = vld [vmem:[%s257 + $0x60] sm:$0xff]
      %v654 = vld [vmem:[%s257 + $0x68] sm:$0xff]
      %v655 = vld [vmem:[%s257 + $0x78] sm:$0xff]
      %v656 = vld [vmem:[%s257 + $0x80] sm:$0xff]
      %v657 = vld [vmem:[%s257 + $0x90] sm:$0xff]
      %v658 = vld [vmem:[%s257 + $0x98] sm:$0xff]
      %v659 = vld [vmem:[%s257 + $0xa8] sm:$0xff]
      %v660 = vld [vmem:[%s257 + $0xb0] sm:$0xff]
      %v661 = vld [vmem:[%s257 + $0xc0] sm:$0xff]
      %v662 = vld [vmem:[%s257 + $0xc8] sm:$0xff]
      %v663 = vld [vmem:[%s257 + $0xd8] sm:$0xff]
      %v664 = vld [vmem:[%s257 + $0xe0] sm:$0xff]
      %v665 = vld [vmem:[%s257 + $0xf0] sm:$0xff]
      %v666 = vld [vmem:[%s257 + $0xf8] sm:$0xff]
      %v667 = vld [vmem:[%s257 + $0x108] sm:$0xff]
      %v668 = vld [vmem:[%s257 + $0x110] sm:$0xff]
      %v669 = vld [vmem:[%s257 + $0x120] sm:$0xff]
      %v670 = vld [vmem:[%s257 + $0x128] sm:$0xff]
      %v671 = vld [vmem:[%s257 + $0x138] sm:$0xff]
      %v672 = vld [vmem:[%s257 + $0x140] sm:$0xff]
      %v673 = vld [vmem:[%s257 + $0x150] sm:$0xff]
      %v674 = vld [vmem:[%s257 + $0x158] sm:$0xff]
      %v675 = vld [vmem:[%s257 + $0x168] sm:$0xff]
      %v676 = vld [vmem:[%s257 + $0x170] sm:$0xff]
      %v677 = vpack.c.bf16 %v646, %v645
      %v678 = vpack.c.bf16 %v648, %v647
      %v679 = vpack.c.bf16 %v650, %v649
      %v680 = vpack.c.bf16 %v652, %v651
      %v681 = vpack.c.bf16 %v654, %v653
      %v682 = vpack.c.bf16 %v656, %v655
      %v683 = vpack.c.bf16 %v658, %v657
      %v684 = vpack.c.bf16 %v660, %v659
      %v685 = vpack.c.bf16 %v662, %v661
      %v686 = vpack.c.bf16 %v664, %v663
      %v687 = vpack.c.bf16 %v666, %v665
      %v688 = vpack.c.bf16 %v668, %v667
      %v689 = vpack.c.bf16 %v670, %v669
      %v690 = vpack.c.bf16 %v672, %v671
      %v691 = vpack.c.bf16 %v674, %v673
      %v692 = vpack.c.bf16 %v676, %v675
      %709 = vrot.lane.b32.xlu0 %v677, 12
      %v710 = vpop.permute.xlu0 %709
      %711 = vrot.lane.b32.xlu0 %v678, 12
      %v712 = vpop.permute.xlu0 %711
      %713 = vrot.lane.b32.xlu0 %v679, 12
      %v714 = vpop.permute.xlu0 %713
      %715 = vrot.lane.b32.xlu0 %v680, 12
      %v716 = vpop.permute.xlu0 %715
      %717 = vrot.lane.b32.xlu0 %v681, 12
      %v718 = vpop.permute.xlu0 %717
      %719 = vrot.lane.b32.xlu0 %v682, 12
      %v720 = vpop.permute.xlu0 %719
      %721 = vrot.lane.b32.xlu0 %v683, 12
      %v722 = vpop.permute.xlu0 %721
      %723 = vrot.lane.b32.xlu0 %v684, 12
      %v724 = vpop.permute.xlu0 %723
      %725 = vrot.lane.b32.xlu0 %v685, 12
      %v726 = vpop.permute.xlu0 %725
      %727 = vrot.lane.b32.xlu0 %v686, 12
      %v728 = vpop.permute.xlu0 %727
      %729 = vrot.lane.b32.xlu0 %v687, 12
      %v730 = vpop.permute.xlu0 %729
      %731 = vrot.lane.b32.xlu0 %v688, 12
      %v732 = vpop.permute.xlu0 %731
      %733 = vrot.lane.b32.xlu0 %v689, 12
      %v734 = vpop.permute.xlu0 %733
      %735 = vrot.lane.b32.xlu0 %v690, 12
      %v736 = vpop.permute.xlu0 %735
      %737 = vrot.lane.b32.xlu0 %v691, 12
      %v738 = vpop.permute.xlu0 %737
      %739 = vrot.lane.b32.xlu0 %v692, 12
      %v740 = vpop.permute.xlu0 %739
      %vm757 = vcmask 130144
      %758 = vst.msk [vmem:[#allocation3] sm:$0xff] %vm757, %v710
      %759 = vst.msk [vmem:[#allocation3 + $0x8] sm:$0xff] %vm757, %v712
      %760 = vst.msk [vmem:[#allocation3 + $0x10] sm:$0xff] %vm757, %v714
      %761 = vst.msk [vmem:[#allocation3 + $0x18] sm:$0xff] %vm757, %v716
      %762 = vst.msk [vmem:[#allocation3 + $0x20] sm:$0xff] %vm757, %v718
      %763 = vst.msk [vmem:[#allocation3 + $0x28] sm:$0xff] %vm757, %v720
      %764 = vst.msk [vmem:[#allocation3 + $0x30] sm:$0xff] %vm757, %v722
      %765 = vst.msk [vmem:[#allocation3 + $0x38] sm:$0xff] %vm757, %v724
      %766 = vst.msk [vmem:[#allocation3 + $0x40] sm:$0xff] %vm757, %v726
      %767 = vst.msk [vmem:[#allocation3 + $0x48] sm:$0xff] %vm757, %v728
      %768 = vst.msk [vmem:[#allocation3 + $0x50] sm:$0xff] %vm757, %v730
      %769 = vst.msk [vmem:[#allocation3 + $0x58] sm:$0xff] %vm757, %v732
      %770 = vst.msk [vmem:[#allocation3 + $0x60] sm:$0xff] %vm757, %v734
      %771 = vst.msk [vmem:[#allocation3 + $0x68] sm:$0xff] %vm757, %v736
      %772 = vst.msk [vmem:[#allocation3 + $0x70] sm:$0xff] %vm757, %v738
      %773 = vst.msk [vmem:[#allocation3 + $0x78] sm:$0xff] %vm757, %v740
      %v774 = vld [vmem:[%s257 + $0x1] sm:$0xff]
      %v775 = vld [vmem:[%s257 + $0x9] sm:$0xff]
      %v776 = vld [vmem:[%s257 + $0x19] sm:$0xff]
      %v777 = vld [vmem:[%s257 + $0x21] sm:$0xff]
      %v778 = vld [vmem:[%s257 + $0x31] sm:$0xff]
      %v779 = vld [vmem:[%s257 + $0x39] sm:$0xff]
      %v780 = vld [vmem:[%s257 + $0x49] sm:$0xff]
      %v781 = vld [vmem:[%s257 + $0x51] sm:$0xff]
      %v782 = vld [vmem:[%s257 + $0x61] sm:$0xff]
      %v783 = vld [vmem:[%s257 + $0x69] sm:$0xff]
      %v784 = vld [vmem:[%s257 + $0x79] sm:$0xff]
      %v785 = vld [vmem:[%s257 + $0x81] sm:$0xff]
      %v786 = vld [vmem:[%s257 + $0x91] sm:$0xff]
      %v787 = vld [vmem:[%s257 + $0x99] sm:$0xff]
      %v788 = vld [vmem:[%s257 + $0xa9] sm:$0xff]
      %v789 = vld [vmem:[%s257 + $0xb1] sm:$0xff]
      %v790 = vld [vmem:[%s257 + $0xc1] sm:$0xff]
      %v791 = vld [vmem:[%s257 + $0xc9] sm:$0xff]
      %v792 = vld [vmem:[%s257 + $0xd9] sm:$0xff]
      %v793 = vld [vmem:[%s257 + $0xe1] sm:$0xff]
      %v794 = vld [vmem:[%s257 + $0xf1] sm:$0xff]
      %v795 = vld [vmem:[%s257 + $0xf9] sm:$0xff]
      %v796 = vld [vmem:[%s257 + $0x109] sm:$0xff]
      %v797 = vld [vmem:[%s257 + $0x111] sm:$0xff]
      %v798 = vld [vmem:[%s257 + $0x121] sm:$0xff]
      %v799 = vld [vmem:[%s257 + $0x129] sm:$0xff]
      %v800 = vld [vmem:[%s257 + $0x139] sm:$0xff]
      %v801 = vld [vmem:[%s257 + $0x141] sm:$0xff]
      %v802 = vld [vmem:[%s257 + $0x151] sm:$0xff]
      %v803 = vld [vmem:[%s257 + $0x159] sm:$0xff]
      %v804 = vld [vmem:[%s257 + $0x169] sm:$0xff]
      %v805 = vld [vmem:[%s257 + $0x171] sm:$0xff]
      %v806 = vpack.c.bf16 %v775, %v774
      %v807 = vpack.c.bf16 %v777, %v776
      %v808 = vpack.c.bf16 %v779, %v778
      %v809 = vpack.c.bf16 %v781, %v780
      %v810 = vpack.c.bf16 %v783, %v782
      %v811 = vpack.c.bf16 %v785, %v784
      %v812 = vpack.c.bf16 %v787, %v786
      %v813 = vpack.c.bf16 %v789, %v788
      %v814 = vpack.c.bf16 %v791, %v790
      %v815 = vpack.c.bf16 %v793, %v792
      %v816 = vpack.c.bf16 %v795, %v794
      %v817 = vpack.c.bf16 %v797, %v796
      %v818 = vpack.c.bf16 %v799, %v798
      %v819 = vpack.c.bf16 %v801, %v800
      %v820 = vpack.c.bf16 %v803, %v802
      %v821 = vpack.c.bf16 %v805, %v804
      %838 = vrot.lane.b32.xlu0 %v806, 16
      %v839 = vpop.permute.xlu0 %838
      %840 = vrot.lane.b32.xlu0 %v807, 16
      %v841 = vpop.permute.xlu0 %840
      %842 = vrot.lane.b32.xlu0 %v808, 16
      %v843 = vpop.permute.xlu0 %842
      %844 = vrot.lane.b32.xlu0 %v809, 16
      %v845 = vpop.permute.xlu0 %844
      %846 = vrot.lane.b32.xlu0 %v810, 16
      %v847 = vpop.permute.xlu0 %846
      %848 = vrot.lane.b32.xlu0 %v811, 16
      %v849 = vpop.permute.xlu0 %848
      %850 = vrot.lane.b32.xlu0 %v812, 16
      %v851 = vpop.permute.xlu0 %850
      %852 = vrot.lane.b32.xlu0 %v813, 16
      %v853 = vpop.permute.xlu0 %852
      %854 = vrot.lane.b32.xlu0 %v814, 16
      %v855 = vpop.permute.xlu0 %854
      %856 = vrot.lane.b32.xlu0 %v815, 16
      %v857 = vpop.permute.xlu0 %856
      %858 = vrot.lane.b32.xlu0 %v816, 16
      %v859 = vpop.permute.xlu0 %858
      %860 = vrot.lane.b32.xlu0 %v817, 16
      %v861 = vpop.permute.xlu0 %860
      %862 = vrot.lane.b32.xlu0 %v818, 16
      %v863 = vpop.permute.xlu0 %862
      %864 = vrot.lane.b32.xlu0 %v819, 16
      %v865 = vpop.permute.xlu0 %864
      %866 = vrot.lane.b32.xlu0 %v820, 16
      %v867 = vpop.permute.xlu0 %866
      %868 = vrot.lane.b32.xlu0 %v821, 16
      %v869 = vpop.permute.xlu0 %868
      %vm886 = vcmask 162944
      %887 = vst.msk [vmem:[#allocation3] sm:$0xff] %vm886, %v839
      %888 = vst.msk [vmem:[#allocation3 + $0x8] sm:$0xff] %vm886, %v841
      %889 = vst.msk [vmem:[#allocation3 + $0x10] sm:$0xff] %vm886, %v843
      %890 = vst.msk [vmem:[#allocation3 + $0x18] sm:$0xff] %vm886, %v845
      %891 = vst.msk [vmem:[#allocation3 + $0x20] sm:$0xff] %vm886, %v847
      %892 = vst.msk [vmem:[#allocation3 + $0x28] sm:$0xff] %vm886, %v849
      %893 = vst.msk [vmem:[#allocation3 + $0x30] sm:$0xff] %vm886, %v851
      %894 = vst.msk [vmem:[#allocation3 + $0x38] sm:$0xff] %vm886, %v853
      %895 = vst.msk [vmem:[#allocation3 + $0x40] sm:$0xff] %vm886, %v855
      %896 = vst.msk [vmem:[#allocation3 + $0x48] sm:$0xff] %vm886, %v857
      %897 = vst.msk [vmem:[#allocation3 + $0x50] sm:$0xff] %vm886, %v859
      %898 = vst.msk [vmem:[#allocation3 + $0x58] sm:$0xff] %vm886, %v861
      %899 = vst.msk [vmem:[#allocation3 + $0x60] sm:$0xff] %vm886, %v863
      %900 = vst.msk [vmem:[#allocation3 + $0x68] sm:$0xff] %vm886, %v865
      %901 = vst.msk [vmem:[#allocation3 + $0x70] sm:$0xff] %vm886, %v867
      %902 = vst.msk [vmem:[#allocation3 + $0x78] sm:$0xff] %vm886, %v869
      %v903 = vld [vmem:[%s257 + $0x2] sm:$0xff]
      %v904 = vld [vmem:[%s257 + $0xa] sm:$0xff]
      %v905 = vld [vmem:[%s257 + $0x1a] sm:$0xff]
      %v906 = vld [vmem:[%s257 + $0x22] sm:$0xff]
      %v907 = vld [vmem:[%s257 + $0x32] sm:$0xff]
      %v908 = vld [vmem:[%s257 + $0x3a] sm:$0xff]
      %v909 = vld [vmem:[%s257 + $0x4a] sm:$0xff]
      %v910 = vld [vmem:[%s257 + $0x52] sm:$0xff]
      %v911 = vld [vmem:[%s257 + $0x62] sm:$0xff]
      %v912 = vld [vmem:[%s257 + $0x6a] sm:$0xff]
      %v913 = vld [vmem:[%s257 + $0x7a] sm:$0xff]
      %v914 = vld [vmem:[%s257 + $0x82] sm:$0xff]
      %v915 = vld [vmem:[%s257 + $0x92] sm:$0xff]
      %v916 = vld [vmem:[%s257 + $0x9a] sm:$0xff]
      %v917 = vld [vmem:[%s257 + $0xaa] sm:$0xff]
      %v918 = vld [vmem:[%s257 + $0xb2] sm:$0xff]
      %v919 = vld [vmem:[%s257 + $0xc2] sm:$0xff]
      %v920 = vld [vmem:[%s257 + $0xca] sm:$0xff]
      %v921 = vld [vmem:[%s257 + $0xda] sm:$0xff]
      %v922 = vld [vmem:[%s257 + $0xe2] sm:$0xff]
      %v923 = vld [vmem:[%s257 + $0xf2] sm:$0xff]
      %v924 = vld [vmem:[%s257 + $0xfa] sm:$0xff]
      %v925 = vld [vmem:[%s257 + $0x10a] sm:$0xff]
      %v926 = vld [vmem:[%s257 + $0x112] sm:$0xff]
      %v927 = vld [vmem:[%s257 + $0x122] sm:$0xff]
      %v928 = vld [vmem:[%s257 + $0x12a] sm:$0xff]
      %v929 = vld [vmem:[%s257 + $0x13a] sm:$0xff]
      %v930 = vld [vmem:[%s257 + $0x142] sm:$0xff]
      %v931 = vld [vmem:[%s257 + $0x152] sm:$0xff]
      %v932 = vld [vmem:[%s257 + $0x15a] sm:$0xff]
      %v933 = vld [vmem:[%s257 + $0x16a] sm:$0xff]
      %v934 = vld [vmem:[%s257 + $0x172] sm:$0xff]
      %v935 = vpack.c.bf16 %v904, %v903
      %v936 = vpack.c.bf16 %v906, %v905
      %v937 = vpack.c.bf16 %v908, %v907
      %v938 = vpack.c.bf16 %v910, %v909
      %v939 = vpack.c.bf16 %v912, %v911
      %v940 = vpack.c.bf16 %v914, %v913
      %v941 = vpack.c.bf16 %v916, %v915
      %v942 = vpack.c.bf16 %v918, %v917
      %v943 = vpack.c.bf16 %v920, %v919
      %v944 = vpack.c.bf16 %v922, %v921
      %v945 = vpack.c.bf16 %v924, %v923
      %v946 = vpack.c.bf16 %v926, %v925
      %v947 = vpack.c.bf16 %v928, %v927
      %v948 = vpack.c.bf16 %v930, %v929
      %v949 = vpack.c.bf16 %v932, %v931
      %v950 = vpack.c.bf16 %v934, %v933
      %967 = vrot.lane.b32.xlu0 %v935, 20
      %v968 = vpop.permute.xlu0 %967
      %969 = vrot.lane.b32.xlu0 %v936, 20
      %v970 = vpop.permute.xlu0 %969
      %971 = vrot.lane.b32.xlu0 %v937, 20
      %v972 = vpop.permute.xlu0 %971
      %973 = vrot.lane.b32.xlu0 %v938, 20
      %v974 = vpop.permute.xlu0 %973
      %975 = vrot.lane.b32.xlu0 %v939, 20
      %v976 = vpop.permute.xlu0 %975
      %977 = vrot.lane.b32.xlu0 %v940, 20
      %v978 = vpop.permute.xlu0 %977
      %979 = vrot.lane.b32.xlu0 %v941, 20
      %v980 = vpop.permute.xlu0 %979
      %981 = vrot.lane.b32.xlu0 %v942, 20
      %v982 = vpop.permute.xlu0 %981
      %983 = vrot.lane.b32.xlu0 %v943, 20
      %v984 = vpop.permute.xlu0 %983
      %985 = vrot.lane.b32.xlu0 %v944, 20
      %v986 = vpop.permute.xlu0 %985
      %987 = vrot.lane.b32.xlu0 %v945, 20
      %v988 = vpop.permute.xlu0 %987
      %989 = vrot.lane.b32.xlu0 %v946, 20
      %v990 = vpop.permute.xlu0 %989
      %991 = vrot.lane.b32.xlu0 %v947, 20
      %v992 = vpop.permute.xlu0 %991
      %993 = vrot.lane.b32.xlu0 %v948, 20
      %v994 = vpop.permute.xlu0 %993
      %995 = vrot.lane.b32.xlu0 %v949, 20
      %v996 = vpop.permute.xlu0 %995
      %997 = vrot.lane.b32.xlu0 %v950, 20
      %v998 = vpop.permute.xlu0 %997
      %vm1015 = vcmask 195744
      %1016 = vst.msk [vmem:[#allocation3] sm:$0xff] %vm1015, %v968
      %1017 = vst.msk [vmem:[#allocation3 + $0x8] sm:$0xff] %vm1015, %v970
      %1018 = vst.msk [vmem:[#allocation3 + $0x10] sm:$0xff] %vm1015, %v972
      %1019 = vst.msk [vmem:[#allocation3 + $0x18] sm:$0xff] %vm1015, %v974
      %1020 = vst.msk [vmem:[#allocation3 + $0x20] sm:$0xff] %vm1015, %v976
      %1021 = vst.msk [vmem:[#allocation3 + $0x28] sm:$0xff] %vm1015, %v978
      %1022 = vst.msk [vmem:[#allocation3 + $0x30] sm:$0xff] %vm1015, %v980
      %1023 = vst.msk [vmem:[#allocation3 + $0x38] sm:$0xff] %vm1015, %v982
      %1024 = vst.msk [vmem:[#allocation3 + $0x40] sm:$0xff] %vm1015, %v984
      %1025 = vst.msk [vmem:[#allocation3 + $0x48] sm:$0xff] %vm1015, %v986
      %1026 = vst.msk [vmem:[#allocation3 + $0x50] sm:$0xff] %vm1015, %v988
      %1027 = vst.msk [vmem:[#allocation3 + $0x58] sm:$0xff] %vm1015, %v990
      %1028 = vst.msk [vmem:[#allocation3 + $0x60] sm:$0xff] %vm1015, %v992
      %1029 = vst.msk [vmem:[#allocation3 + $0x68] sm:$0xff] %vm1015, %v994
      %1030 = vst.msk [vmem:[#allocation3 + $0x70] sm:$0xff] %vm1015, %v996
      %1031 = vst.msk [vmem:[#allocation3 + $0x78] sm:$0xff] %vm1015, %v998
      %s1032 = scalar_lea.vmem [#allocation2], 48
      %v1033 = vld [vmem:[%s1032] sm:$0xff]
      %v1034 = vld [vmem:[%s1032 + $0x8] sm:$0xff]
      %v1035 = vld [vmem:[%s1032 + $0x18] sm:$0xff]
      %v1036 = vld [vmem:[%s1032 + $0x20] sm:$0xff]
      %v1037 = vld [vmem:[%s1032 + $0x30] sm:$0xff]
      %v1038 = vld [vmem:[%s1032 + $0x38] sm:$0xff]
      %v1039 = vld [vmem:[%s1032 + $0x48] sm:$0xff]
      %v1040 = vld [vmem:[%s1032 + $0x50] sm:$0xff]
      %v1041 = vld [vmem:[%s1032 + $0x60] sm:$0xff]
      %v1042 = vld [vmem:[%s1032 + $0x68] sm:$0xff]
      %v1043 = vld [vmem:[%s1032 + $0x78] sm:$0xff]
      %v1044 = vld [vmem:[%s1032 + $0x80] sm:$0xff]
      %v1045 = vld [vmem:[%s1032 + $0x90] sm:$0xff]
      %v1046 = vld [vmem:[%s1032 + $0x98] sm:$0xff]
      %v1047 = vld [vmem:[%s1032 + $0xa8] sm:$0xff]
      %v1048 = vld [vmem:[%s1032 + $0xb0] sm:$0xff]
      %v1049 = vld [vmem:[%s1032 + $0xc0] sm:$0xff]
      %v1050 = vld [vmem:[%s1032 + $0xc8] sm:$0xff]
      %v1051 = vld [vmem:[%s1032 + $0xd8] sm:$0xff]
      %v1052 = vld [vmem:[%s1032 + $0xe0] sm:$0xff]
      %v1053 = vld [vmem:[%s1032 + $0xf0] sm:$0xff]
      %v1054 = vld [vmem:[%s1032 + $0xf8] sm:$0xff]
      %v1055 = vld [vmem:[%s1032 + $0x108] sm:$0xff]
      %v1056 = vld [vmem:[%s1032 + $0x110] sm:$0xff]
      %v1057 = vld [vmem:[%s1032 + $0x120] sm:$0xff]
      %v1058 = vld [vmem:[%s1032 + $0x128] sm:$0xff]
      %v1059 = vld [vmem:[%s1032 + $0x138] sm:$0xff]
      %v1060 = vld [vmem:[%s1032 + $0x140] sm:$0xff]
      %v1061 = vld [vmem:[%s1032 + $0x150] sm:$0xff]
      %v1062 = vld [vmem:[%s1032 + $0x158] sm:$0xff]
      %v1063 = vld [vmem:[%s1032 + $0x168] sm:$0xff]
      %v1064 = vld [vmem:[%s1032 + $0x170] sm:$0xff]
      %v1065 = vpack.c.bf16 %v1034, %v1033
      %v1066 = vpack.c.bf16 %v1036, %v1035
      %v1067 = vpack.c.bf16 %v1038, %v1037
      %v1068 = vpack.c.bf16 %v1040, %v1039
      %v1069 = vpack.c.bf16 %v1042, %v1041
      %v1070 = vpack.c.bf16 %v1044, %v1043
      %v1071 = vpack.c.bf16 %v1046, %v1045
      %v1072 = vpack.c.bf16 %v1048, %v1047
      %v1073 = vpack.c.bf16 %v1050, %v1049
      %v1074 = vpack.c.bf16 %v1052, %v1051
      %v1075 = vpack.c.bf16 %v1054, %v1053
      %v1076 = vpack.c.bf16 %v1056, %v1055
      %v1077 = vpack.c.bf16 %v1058, %v1057
      %v1078 = vpack.c.bf16 %v1060, %v1059
      %v1079 = vpack.c.bf16 %v1062, %v1061
      %v1080 = vpack.c.bf16 %v1064, %v1063
      %1097 = vrot.lane.b32.xlu0 %v1065, 24
      %v1098 = vpop.permute.xlu0 %1097
      %1099 = vrot.lane.b32.xlu0 %v1066, 24
      %v1100 = vpop.permute.xlu0 %1099
      %1101 = vrot.lane.b32.xlu0 %v1067, 24
      %v1102 = vpop.permute.xlu0 %1101
      %1103 = vrot.lane.b32.xlu0 %v1068, 24
      %v1104 = vpop.permute.xlu0 %1103
      %1105 = vrot.lane.b32.xlu0 %v1069, 24
      %v1106 = vpop.permute.xlu0 %1105
      %1107 = vrot.lane.b32.xlu0 %v1070, 24
      %v1108 = vpop.permute.xlu0 %1107
      %1109 = vrot.lane.b32.xlu0 %v1071, 24
      %v1110 = vpop.permute.xlu0 %1109
      %1111 = vrot.lane.b32.xlu0 %v1072, 24
      %v1112 = vpop.permute.xlu0 %1111
      %1113 = vrot.lane.b32.xlu0 %v1073, 24
      %v1114 = vpop.permute.xlu0 %1113
      %1115 = vrot.lane.b32.xlu0 %v1074, 24
      %v1116 = vpop.permute.xlu0 %1115
      %1117 = vrot.lane.b32.xlu0 %v1075, 24
      %v1118 = vpop.permute.xlu0 %1117
      %1119 = vrot.lane.b32.xlu0 %v1076, 24
      %v1120 = vpop.permute.xlu0 %1119
      %1121 = vrot.lane.b32.xlu0 %v1077, 24
      %v1122 = vpop.permute.xlu0 %1121
      %1123 = vrot.lane.b32.xlu0 %v1078, 24
      %v1124 = vpop.permute.xlu0 %1123
      %1125 = vrot.lane.b32.xlu0 %v1079, 24
      %v1126 = vpop.permute.xlu0 %1125
      %1127 = vrot.lane.b32.xlu0 %v1080, 24
      %v1128 = vpop.permute.xlu0 %1127
      %vm1145 = vcmask 228544
      %1146 = vst.msk [vmem:[#allocation3] sm:$0xff] %vm1145, %v1098
      %1147 = vst.msk [vmem:[#allocation3 + $0x8] sm:$0xff] %vm1145, %v1100
      %1148 = vst.msk [vmem:[#allocation3 + $0x10] sm:$0xff] %vm1145, %v1102
      %1149 = vst.msk [vmem:[#allocation3 + $0x18] sm:$0xff] %vm1145, %v1104
      %1150 = vst.msk [vmem:[#allocation3 + $0x20] sm:$0xff] %vm1145, %v1106
      %1151 = vst.msk [vmem:[#allocation3 + $0x28] sm:$0xff] %vm1145, %v1108
      %1152 = vst.msk [vmem:[#allocation3 + $0x30] sm:$0xff] %vm1145, %v1110
      %1153 = vst.msk [vmem:[#allocation3 + $0x38] sm:$0xff] %vm1145, %v1112
      %1154 = vst.msk [vmem:[#allocation3 + $0x40] sm:$0xff] %vm1145, %v1114
      %1155 = vst.msk [vmem:[#allocation3 + $0x48] sm:$0xff] %vm1145, %v1116
      %1156 = vst.msk [vmem:[#allocation3 + $0x50] sm:$0xff] %vm1145, %v1118
      %1157 = vst.msk [vmem:[#allocation3 + $0x58] sm:$0xff] %vm1145, %v1120
      %1158 = vst.msk [vmem:[#allocation3 + $0x60] sm:$0xff] %vm1145, %v1122
      %1159 = vst.msk [vmem:[#allocation3 + $0x68] sm:$0xff] %vm1145, %v1124
      %1160 = vst.msk [vmem:[#allocation3 + $0x70] sm:$0xff] %vm1145, %v1126
      %1161 = vst.msk [vmem:[#allocation3 + $0x78] sm:$0xff] %vm1145, %v1128
      %v1162 = vld [vmem:[%s1032 + $0x1] sm:$0xff]
      %v1163 = vld [vmem:[%s1032 + $0x9] sm:$0xff]
      %v1164 = vld [vmem:[%s1032 + $0x19] sm:$0xff]
      %v1165 = vld [vmem:[%s1032 + $0x21] sm:$0xff]
      %v1166 = vld [vmem:[%s1032 + $0x31] sm:$0xff]
      %v1167 = vld [vmem:[%s1032 + $0x39] sm:$0xff]
      %v1168 = vld [vmem:[%s1032 + $0x49] sm:$0xff]
      %v1169 = vld [vmem:[%s1032 + $0x51] sm:$0xff]
      %v1170 = vld [vmem:[%s1032 + $0x61] sm:$0xff]
      %v1171 = vld [vmem:[%s1032 + $0x69] sm:$0xff]
      %v1172 = vld [vmem:[%s1032 + $0x79] sm:$0xff]
      %v1173 = vld [vmem:[%s1032 + $0x81] sm:$0xff]
      %v1174 = vld [vmem:[%s1032 + $0x91] sm:$0xff]
      %v1175 = vld [vmem:[%s1032 + $0x99] sm:$0xff]
      %v1176 = vld [vmem:[%s1032 + $0xa9] sm:$0xff]
      %v1177 = vld [vmem:[%s1032 + $0xb1] sm:$0xff]
      %v1178 = vld [vmem:[%s1032 + $0xc1] sm:$0xff]
      %v1179 = vld [vmem:[%s1032 + $0xc9] sm:$0xff]
      %v1180 = vld [vmem:[%s1032 + $0xd9] sm:$0xff]
      %v1181 = vld [vmem:[%s1032 + $0xe1] sm:$0xff]
      %v1182 = vld [vmem:[%s1032 + $0xf1] sm:$0xff]
      %v1183 = vld [vmem:[%s1032 + $0xf9] sm:$0xff]
      %v1184 = vld [vmem:[%s1032 + $0x109] sm:$0xff]
      %v1185 = vld [vmem:[%s1032 + $0x111] sm:$0xff]
      %v1186 = vld [vmem:[%s1032 + $0x121] sm:$0xff]
      %v1187 = vld [vmem:[%s1032 + $0x129] sm:$0xff]
      %v1188 = vld [vmem:[%s1032 + $0x139] sm:$0xff]
      %v1189 = vld [vmem:[%s1032 + $0x141] sm:$0xff]
      %v1190 = vld [vmem:[%s1032 + $0x151] sm:$0xff]
      %v1191 = vld [vmem:[%s1032 + $0x159] sm:$0xff]
      %v1192 = vld [vmem:[%s1032 + $0x169] sm:$0xff]
      %v1193 = vld [vmem:[%s1032 + $0x171] sm:$0xff]
      %v1194 = vpack.c.bf16 %v1163, %v1162
      %v1195 = vpack.c.bf16 %v1165, %v1164
      %v1196 = vpack.c.bf16 %v1167, %v1166
      %v1197 = vpack.c.bf16 %v1169, %v1168
      %v1198 = vpack.c.bf16 %v1171, %v1170
      %v1199 = vpack.c.bf16 %v1173, %v1172
      %v1200 = vpack.c.bf16 %v1175, %v1174
      %v1201 = vpack.c.bf16 %v1177, %v1176
      %v1202 = vpack.c.bf16 %v1179, %v1178
      %v1203 = vpack.c.bf16 %v1181, %v1180
      %v1204 = vpack.c.bf16 %v1183, %v1182
      %v1205 = vpack.c.bf16 %v1185, %v1184
      %v1206 = vpack.c.bf16 %v1187, %v1186
      %v1207 = vpack.c.bf16 %v1189, %v1188
      %v1208 = vpack.c.bf16 %v1191, %v1190
      %v1209 = vpack.c.bf16 %v1193, %v1192
      %1226 = vrot.lane.b32.xlu0 %v1194, 28
      %v1227 = vpop.permute.xlu0 %1226
      %1228 = vrot.lane.b32.xlu0 %v1195, 28
      %v1229 = vpop.permute.xlu0 %1228
      %1230 = vrot.lane.b32.xlu0 %v1196, 28
      %v1231 = vpop.permute.xlu0 %1230
      %1232 = vrot.lane.b32.xlu0 %v1197, 28
      %v1233 = vpop.permute.xlu0 %1232
      %1234 = vrot.lane.b32.xlu0 %v1198, 28
      %v1235 = vpop.permute.xlu0 %1234
      %1236 = vrot.lane.b32.xlu0 %v1199, 28
      %v1237 = vpop.permute.xlu0 %1236
      %1238 = vrot.lane.b32.xlu0 %v1200, 28
      %v1239 = vpop.permute.xlu0 %1238
      %1240 = vrot.lane.b32.xlu0 %v1201, 28
      %v1241 = vpop.permute.xlu0 %1240
      %1242 = vrot.lane.b32.xlu0 %v1202, 28
      %v1243 = vpop.permute.xlu0 %1242
      %1244 = vrot.lane.b32.xlu0 %v1203, 28
      %v1245 = vpop.permute.xlu0 %1244
      %1246 = vrot.lane.b32.xlu0 %v1204, 28
      %v1247 = vpop.permute.xlu0 %1246
      %1248 = vrot.lane.b32.xlu0 %v1205, 28
      %v1249 = vpop.permute.xlu0 %1248
      %1250 = vrot.lane.b32.xlu0 %v1206, 28
      %v1251 = vpop.permute.xlu0 %1250
      %1252 = vrot.lane.b32.xlu0 %v1207, 28
      %v1253 = vpop.permute.xlu0 %1252
      %1254 = vrot.lane.b32.xlu0 %v1208, 28
      %v1255 = vpop.permute.xlu0 %1254
      %1256 = vrot.lane.b32.xlu0 %v1209, 28
      %v1257 = vpop.permute.xlu0 %1256
      %vm1274 = vcmask 261344
      %1275 = vst.msk [vmem:[#allocation3] sm:$0xff] %vm1274, %v1227
      %1276 = vst.msk [vmem:[#allocation3 + $0x8] sm:$0xff] %vm1274, %v1229
      %1277 = vst.msk [vmem:[#allocation3 + $0x10] sm:$0xff] %vm1274, %v1231
      %1278 = vst.msk [vmem:[#allocation3 + $0x18] sm:$0xff] %vm1274, %v1233
      %1279 = vst.msk [vmem:[#allocation3 + $0x20] sm:$0xff] %vm1274, %v1235
      %1280 = vst.msk [vmem:[#allocation3 + $0x28] sm:$0xff] %vm1274, %v1237
      %1281 = vst.msk [vmem:[#allocation3 + $0x30] sm:$0xff] %vm1274, %v1239
      %1282 = vst.msk [vmem:[#allocation3 + $0x38] sm:$0xff] %vm1274, %v1241
      %1283 = vst.msk [vmem:[#allocation3 + $0x40] sm:$0xff] %vm1274, %v1243
      %1284 = vst.msk [vmem:[#allocation3 + $0x48] sm:$0xff] %vm1274, %v1245
      %1285 = vst.msk [vmem:[#allocation3 + $0x50] sm:$0xff] %vm1274, %v1247
      %1286 = vst.msk [vmem:[#allocation3 + $0x58] sm:$0xff] %vm1274, %v1249
      %1287 = vst.msk [vmem:[#allocation3 + $0x60] sm:$0xff] %vm1274, %v1251
      %1288 = vst.msk [vmem:[#allocation3 + $0x68] sm:$0xff] %vm1274, %v1253
      %1289 = vst.msk [vmem:[#allocation3 + $0x70] sm:$0xff] %vm1274, %v1255
      %1290 = vst.msk [vmem:[#allocation3 + $0x78] sm:$0xff] %vm1274, %v1257
      %v1291 = vld [vmem:[%s1032 + $0x2] sm:$0xff]
      %v1292 = vld [vmem:[%s1032 + $0xa] sm:$0xff]
      %v1293 = vld [vmem:[%s1032 + $0x1a] sm:$0xff]
      %v1294 = vld [vmem:[%s1032 + $0x22] sm:$0xff]
      %v1295 = vld [vmem:[%s1032 + $0x32] sm:$0xff]
      %v1296 = vld [vmem:[%s1032 + $0x3a] sm:$0xff]
      %v1297 = vld [vmem:[%s1032 + $0x4a] sm:$0xff]
      %v1298 = vld [vmem:[%s1032 + $0x52] sm:$0xff]
      %v1299 = vld [vmem:[%s1032 + $0x62] sm:$0xff]
      %v1300 = vld [vmem:[%s1032 + $0x6a] sm:$0xff]
      %v1301 = vld [vmem:[%s1032 + $0x7a] sm:$0xff]
      %v1302 = vld [vmem:[%s1032 + $0x82] sm:$0xff]
      %v1303 = vld [vmem:[%s1032 + $0x92] sm:$0xff]
      %v1304 = vld [vmem:[%s1032 + $0x9a] sm:$0xff]
      %v1305 = vld [vmem:[%s1032 + $0xaa] sm:$0xff]
      %v1306 = vld [vmem:[%s1032 + $0xb2] sm:$0xff]
      %v1307 = vld [vmem:[%s1032 + $0xc2] sm:$0xff]
      %v1308 = vld [vmem:[%s1032 + $0xca] sm:$0xff]
      %v1309 = vld [vmem:[%s1032 + $0xda] sm:$0xff]
      %v1310 = vld [vmem:[%s1032 + $0xe2] sm:$0xff]
      %v1311 = vld [vmem:[%s1032 + $0xf2] sm:$0xff]
      %v1312 = vld [vmem:[%s1032 + $0xfa] sm:$0xff]
      %v1313 = vld [vmem:[%s1032 + $0x10a] sm:$0xff]
      %v1314 = vld [vmem:[%s1032 + $0x112] sm:$0xff]
      %v1315 = vld [vmem:[%s1032 + $0x122] sm:$0xff]
      %v1316 = vld [vmem:[%s1032 + $0x12a] sm:$0xff]
      %v1317 = vld [vmem:[%s1032 + $0x13a] sm:$0xff]
      %v1318 = vld [vmem:[%s1032 + $0x142] sm:$0xff]
      %v1319 = vld [vmem:[%s1032 + $0x152] sm:$0xff]
      %v1320 = vld [vmem:[%s1032 + $0x15a] sm:$0xff]
      %v1321 = vld [vmem:[%s1032 + $0x16a] sm:$0xff]
      %v1322 = vld [vmem:[%s1032 + $0x172] sm:$0xff]
      %v1323 = vpack.c.bf16 %v1292, %v1291
      %v1324 = vpack.c.bf16 %v1294, %v1293
      %v1325 = vpack.c.bf16 %v1296, %v1295
      %v1326 = vpack.c.bf16 %v1298, %v1297
      %v1327 = vpack.c.bf16 %v1300, %v1299
      %v1328 = vpack.c.bf16 %v1302, %v1301
      %v1329 = vpack.c.bf16 %v1304, %v1303
      %v1330 = vpack.c.bf16 %v1306, %v1305
      %v1331 = vpack.c.bf16 %v1308, %v1307
      %v1332 = vpack.c.bf16 %v1310, %v1309
      %v1333 = vpack.c.bf16 %v1312, %v1311
      %v1334 = vpack.c.bf16 %v1314, %v1313
      %v1335 = vpack.c.bf16 %v1316, %v1315
      %v1336 = vpack.c.bf16 %v1318, %v1317
      %v1337 = vpack.c.bf16 %v1320, %v1319
      %v1338 = vpack.c.bf16 %v1322, %v1321
      %1355 = vrot.lane.b32.xlu0 %v1323, 32
      %v1356 = vpop.permute.xlu0 %1355
      %1357 = vrot.lane.b32.xlu0 %v1324, 32
      %v1358 = vpop.permute.xlu0 %1357
      %1359 = vrot.lane.b32.xlu0 %v1325, 32
      %v1360 = vpop.permute.xlu0 %1359
      %1361 = vrot.lane.b32.xlu0 %v1326, 32
      %v1362 = vpop.permute.xlu0 %1361
      %1363 = vrot.lane.b32.xlu0 %v1327, 32
      %v1364 = vpop.permute.xlu0 %1363
      %1365 = vrot.lane.b32.xlu0 %v1328, 32
      %v1366 = vpop.permute.xlu0 %1365
      %1367 = vrot.lane.b32.xlu0 %v1329, 32
      %v1368 = vpop.permute.xlu0 %1367
      %1369 = vrot.lane.b32.xlu0 %v1330, 32
      %v1370 = vpop.permute.xlu0 %1369
      %1371 = vrot.lane.b32.xlu0 %v1331, 32
      %v1372 = vpop.permute.xlu0 %1371
      %1373 = vrot.lane.b32.xlu0 %v1332, 32
      %v1374 = vpop.permute.xlu0 %1373
      %1375 = vrot.lane.b32.xlu0 %v1333, 32
      %v1376 = vpop.permute.xlu0 %1375
      %1377 = vrot.lane.b32.xlu0 %v1334, 32
      %v1378 = vpop.permute.xlu0 %1377
      %1379 = vrot.lane.b32.xlu0 %v1335, 32
      %v1380 = vpop.permute.xlu0 %1379
      %1381 = vrot.lane.b32.xlu0 %v1336, 32
      %v1382 = vpop.permute.xlu0 %1381
      %1383 = vrot.lane.b32.xlu0 %v1337, 32
      %v1384 = vpop.permute.xlu0 %1383
      %1385 = vrot.lane.b32.xlu0 %v1338, 32
      %v1386 = vpop.permute.xlu0 %1385
      %vm1403 = vcmask 294144
      %1404 = vst.msk [vmem:[#allocation3] sm:$0xff] %vm1403, %v1356
      %1405 = vst.msk [vmem:[#allocation3 + $0x8] sm:$0xff] %vm1403, %v1358
      %1406 = vst.msk [vmem:[#allocation3 + $0x10] sm:$0xff] %vm1403, %v1360
      %1407 = vst.msk [vmem:[#allocation3 + $0x18] sm:$0xff] %vm1403, %v1362
      %1408 = vst.msk [vmem:[#allocation3 + $0x20] sm:$0xff] %vm1403, %v1364
      %1409 = vst.msk [vmem:[#allocation3 + $0x28] sm:$0xff] %vm1403, %v1366
      %1410 = vst.msk [vmem:[#allocation3 + $0x30] sm:$0xff] %vm1403, %v1368
      %1411 = vst.msk [vmem:[#allocation3 + $0x38] sm:$0xff] %vm1403, %v1370
      %1412 = vst.msk [vmem:[#allocation3 + $0x40] sm:$0xff] %vm1403, %v1372
      %1413 = vst.msk [vmem:[#allocation3 + $0x48] sm:$0xff] %vm1403, %v1374
      %1414 = vst.msk [vmem:[#allocation3 + $0x50] sm:$0xff] %vm1403, %v1376
      %1415 = vst.msk [vmem:[#allocation3 + $0x58] sm:$0xff] %vm1403, %v1378
      %1416 = vst.msk [vmem:[#allocation3 + $0x60] sm:$0xff] %vm1403, %v1380
      %1417 = vst.msk [vmem:[#allocation3 + $0x68] sm:$0xff] %vm1403, %v1382
      %1418 = vst.msk [vmem:[#allocation3 + $0x70] sm:$0xff] %vm1403, %v1384
      %1419 = vst.msk [vmem:[#allocation3 + $0x78] sm:$0xff] %vm1403, %v1386
      %v1420 = vld [vmem:[#allocation3] sm:$0xff]
      %v1421 = vld [vmem:[#allocation3 + $0x8] sm:$0xff]
      %v1422 = vld [vmem:[#allocation3 + $0x10] sm:$0xff]
      %v1423 = vld [vmem:[#allocation3 + $0x18] sm:$0xff]
      %v1424 = vld [vmem:[#allocation3 + $0x20] sm:$0xff]
      %v1425 = vld [vmem:[#allocation3 + $0x28] sm:$0xff]
      %v1426 = vld [vmem:[#allocation3 + $0x30] sm:$0xff]
      %v1427 = vld [vmem:[#allocation3 + $0x38] sm:$0xff]
      %v1428 = vld [vmem:[#allocation3 + $0x40] sm:$0xff]
      %v1429 = vld [vmem:[#allocation3 + $0x48] sm:$0xff]
      %v1430 = vld [vmem:[#allocation3 + $0x50] sm:$0xff]
      %v1431 = vld [vmem:[#allocation3 + $0x58] sm:$0xff]
      %v1432 = vld [vmem:[#allocation3 + $0x60] sm:$0xff]
      %v1433 = vld [vmem:[#allocation3 + $0x68] sm:$0xff]
      %v1434 = vld [vmem:[#allocation3 + $0x70] sm:$0xff]
      %v1435 = vld [vmem:[#allocation3 + $0x78] sm:$0xff]
      %v1436 = vld [vmem:[%s1] sm:$0xf]
      %v1437 = vld [vmem:[%s1 + $0x4] sm:$0xf]
      %v1438 = vld [vmem:[%s1 + $0x8] sm:$0xf]
      %v1439 = vld [vmem:[%s1 + $0xc] sm:$0xf]
      %v1440 = vld [vmem:[%s1 + $0x10] sm:$0x3]
      %v1446 = vunpack.c.l.b16 %v1436
      %v1447 = vunpack.c.l.b16 %v1437
      %v1448 = vunpack.c.l.b16 %v1438
      %v1449 = vunpack.c.l.b16 %v1439
      %v1450 = vunpack.c.l.b16 %v1440
      %v1451 = vpack.c.b16 %v1447, %v1446
      %v1452 = vpack.c.b16 %v1449, %v1448
      %v1453 = vpack.c.b16 %v1450, %v1450
      %vm1456 = vcmask 293888
      %v1458 = vsel %vm1456, %v1420, 0
      %v1461 = vsel %vm1456, %v1421, 0
      %v1464 = vsel %vm1456, %v1422, 0
      %v1467 = vsel %vm1456, %v1423, 0
      %v1470 = vsel %vm1456, %v1424, 0
      %v1473 = vsel %vm1456, %v1425, 0
      %v1476 = vsel %vm1456, %v1426, 0
      %v1479 = vsel %vm1456, %v1427, 0
      %v1482 = vsel %vm1456, %v1428, 0
      %v1485 = vsel %vm1456, %v1429, 0
      %v1488 = vsel %vm1456, %v1430, 0
      %v1491 = vsel %vm1456, %v1431, 0
      %v1494 = vsel %vm1456, %v1432, 0
      %v1497 = vsel %vm1456, %v1433, 0
      %v1500 = vsel %vm1456, %v1434, 0
      %v1503 = vsel %vm1456, %v1435, 0
      %vm1505 = vcmask 1041408
      %v1507 = vsel %vm1505, %v1453, 0
      %1509 = vmatprep.subr.bf16.mxu0 0
      %1510 = vmatpush1.bf16.msra.mxu0 %v1451
      %1511 = vmatprep.subr.bf16.mxu0 0
      %1512 = vmatpush1.bf16.msra.mxu0 %v1452
      %1513 = vmatprep.subr.bf16.mxu0 0
      %1514 = vmatpush1.bf16.msra.mxu0 %v1507
      %1515 = vmatprep.subr.bf16.mxu0 0
      %1516 = vmatpush1.bf16.msra.mxu0 0
      %1517 = vmatprep.subr.bf16.mxu0 0
      %1518 = vmatpush1.bf16.msra.mxu0 0
      %1519 = vmatprep.subr.bf16.mxu0 0
      %1520 = vmatpush1.bf16.msra.mxu0 0
      %1521 = vmatprep.subr.bf16.mxu0 0
      %1522 = vmatpush1.bf16.msra.mxu0 0
      %1523 = vmatprep.subr.bf16.mxu0 0
      %1524 = vmatpush1.bf16.msra.mxu0 0
      %1525 = vmatprep.subr.bf16.mxu0 0
      %1526 = vmatpush1.bf16.msra.mxu0 0
      %1527 = vmatprep.subr.bf16.mxu0 0
      %1528 = vmatpush1.bf16.msra.mxu0 0
      %1529 = vmatprep.subr.bf16.mxu0 0
      %1530 = vmatpush1.bf16.msra.mxu0 0
      %1531 = vmatprep.subr.bf16.mxu0 0
      %1532 = vmatpush1.bf16.msra.mxu0 0
      %1533 = vmatprep.subr.bf16.mxu0 0
      %1534 = vmatpush1.bf16.msra.mxu0 0
      %1535 = vmatprep.subr.bf16.mxu0 0
      %1536 = vmatpush1.bf16.msra.mxu0 0
      %1537 = vmatprep.subr.bf16.mxu0 0
      %1538 = vmatpush1.bf16.msra.mxu0 0
      %1539 = vmatprep.subr.bf16.mxu0 0
      %1540 = vmatpush1.bf16.msra.mxu0 0
      %1541 = vmatprep.mubr.bf16.mxu0 0
      %1542 = vmatmul.mubr.bf16.gmra.mrb[0].mxu0 %v1458
      %v1543 = vpop.f32.mrb[0].mxu0
      %v1544 = vadd.f32 0.0, %v1543
      %v1545 = vpop.f32.mrb[0].mxu0
      %v1546 = vpop.f32.mrb[0].mxu0
      %v1547 = vadd.f32 0.0, %v1546
      %v1548 = vpop.f32.mrb[0].mxu0
      %1549 = vmatprep.mubr.bf16.mxu0 0
      %1550 = vmatmul.mubr.bf16.gmra.mrb[0].mxu0 %v1461
      %v1551 = vpop.f32.mrb[0].mxu0
      %v1552 = vadd.f32 0.0, %v1551
      %v1553 = vpop.f32.mrb[0].mxu0
      %v1554 = vpop.f32.mrb[0].mxu0
      %v1555 = vadd.f32 0.0, %v1554
      %v1556 = vpop.f32.mrb[0].mxu0
      %1557 = vmatprep.mubr.bf16.mxu0 0
      %1558 = vmatmul.mubr.bf16.gmra.mrb[0].mxu0 %v1464
      %v1559 = vpop.f32.mrb[0].mxu0
      %v1560 = vadd.f32 0.0, %v1559
      %v1561 = vpop.f32.mrb[0].mxu0
      %v1562 = vpop.f32.mrb[0].mxu0
      %v1563 = vadd.f32 0.0, %v1562
      %v1564 = vpop.f32.mrb[0].mxu0
      %1565 = vmatprep.mubr.bf16.mxu0 0
      %1566 = vmatmul.mubr.bf16.gmra.mrb[0].mxu0 %v1467
      %v1567 = vpop.f32.mrb[0].mxu0
      %v1568 = vadd.f32 0.0, %v1567
      %v1569 = vpop.f32.mrb[0].mxu0
      %v1570 = vpop.f32.mrb[0].mxu0
      %v1571 = vadd.f32 0.0, %v1570
      %v1572 = vpop.f32.mrb[0].mxu0
      %1573 = vmatprep.mubr.bf16.mxu0 0
      %1574 = vmatmul.mubr.bf16.gmra.mrb[0].mxu0 %v1470
      %v1575 = vpop.f32.mrb[0].mxu0
      %v1576 = vadd.f32 0.0, %v1575
      %v1577 = vpop.f32.mrb[0].mxu0
      %v1578 = vpop.f32.mrb[0].mxu0
      %v1579 = vadd.f32 0.0, %v1578
      %v1580 = vpop.f32.mrb[0].mxu0
      %1581 = vmatprep.mubr.bf16.mxu0 0
      %1582 = vmatmul.mubr.bf16.gmra.mrb[0].mxu0 %v1473
      %v1583 = vpop.f32.mrb[0].mxu0
      %v1584 = vadd.f32 0.0, %v1583
      %v1585 = vpop.f32.mrb[0].mxu0
      %v1586 = vpop.f32.mrb[0].mxu0
      %v1587 = vadd.f32 0.0, %v1586
      %v1588 = vpop.f32.mrb[0].mxu0
      %1589 = vmatprep.mubr.bf16.mxu0 0
      %1590 = vmatmul.mubr.bf16.gmra.mrb[0].mxu0 %v1476
      %v1591 = vpop.f32.mrb[0].mxu0
      %v1592 = vadd.f32 0.0, %v1591
      %v1593 = vpop.f32.mrb[0].mxu0
      %v1594 = vpop.f32.mrb[0].mxu0
      %v1595 = vadd.f32 0.0, %v1594
      %v1596 = vpop.f32.mrb[0].mxu0
      %1597 = vmatprep.mubr.bf16.mxu0 0
      %1598 = vmatmul.mubr.bf16.gmra.mrb[0].mxu0 %v1479
      %v1599 = vpop.f32.mrb[0].mxu0
      %v1600 = vadd.f32 0.0, %v1599
      %v1601 = vpop.f32.mrb[0].mxu0
      %v1602 = vpop.f32.mrb[0].mxu0
      %v1603 = vadd.f32 0.0, %v1602
      %v1604 = vpop.f32.mrb[0].mxu0
      %1605 = vmatprep.mubr.bf16.mxu0 0
      %1606 = vmatmul.mubr.bf16.gmra.mrb[0].mxu0 %v1482
      %v1607 = vpop.f32.mrb[0].mxu0
      %v1608 = vadd.f32 0.0, %v1607
      %v1609 = vpop.f32.mrb[0].mxu0
      %v1610 = vpop.f32.mrb[0].mxu0
      %v1611 = vadd.f32 0.0, %v1610
      %v1612 = vpop.f32.mrb[0].mxu0
      %1613 = vmatprep.mubr.bf16.mxu0 0
      %1614 = vmatmul.mubr.bf16.gmra.mrb[0].mxu0 %v1485
      %v1615 = vpop.f32.mrb[0].mxu0
      %v1616 = vadd.f32 0.0, %v1615
      %v1617 = vpop.f32.mrb[0].mxu0
      %v1618 = vpop.f32.mrb[0].mxu0
      %v1619 = vadd.f32 0.0, %v1618
      %v1620 = vpop.f32.mrb[0].mxu0
      %1621 = vmatprep.mubr.bf16.mxu0 0
      %1622 = vmatmul.mubr.bf16.gmra.mrb[0].mxu0 %v1488
      %v1623 = vpop.f32.mrb[0].mxu0
      %v1624 = vadd.f32 0.0, %v1623
      %v1625 = vpop.f32.mrb[0].mxu0
      %v1626 = vpop.f32.mrb[0].mxu0
      %v1627 = vadd.f32 0.0, %v1626
      %v1628 = vpop.f32.mrb[0].mxu0
      %1629 = vmatprep.mubr.bf16.mxu0 0
      %1630 = vmatmul.mubr.bf16.gmra.mrb[0].mxu0 %v1491
      %v1631 = vpop.f32.mrb[0].mxu0
      %v1632 = vadd.f32 0.0, %v1631
      %v1633 = vpop.f32.mrb[0].mxu0
      %v1634 = vpop.f32.mrb[0].mxu0
      %v1635 = vadd.f32 0.0, %v1634
      %v1636 = vpop.f32.mrb[0].mxu0
      %1637 = vmatprep.mubr.bf16.mxu0 0
      %1638 = vmatmul.mubr.bf16.gmra.mrb[0].mxu0 %v1494
      %v1639 = vpop.f32.mrb[0].mxu0
      %v1640 = vadd.f32 0.0, %v1639
      %v1641 = vpop.f32.mrb[0].mxu0
      %v1642 = vpop.f32.mrb[0].mxu0
      %v1643 = vadd.f32 0.0, %v1642
      %v1644 = vpop.f32.mrb[0].mxu0
      %1645 = vmatprep.mubr.bf16.mxu0 0
      %1646 = vmatmul.mubr.bf16.gmra.mrb[0].mxu0 %v1497
      %v1647 = vpop.f32.mrb[0].mxu0
      %v1648 = vadd.f32 0.0, %v1647
      %v1649 = vpop.f32.mrb[0].mxu0
      %v1650 = vpop.f32.mrb[0].mxu0
      %v1651 = vadd.f32 0.0, %v1650
      %v1652 = vpop.f32.mrb[0].mxu0
      %1653 = vmatprep.mubr.bf16.mxu0 0
      %1654 = vmatmul.mubr.bf16.gmra.mrb[0].mxu0 %v1500
      %v1655 = vpop.f32.mrb[0].mxu0
      %v1656 = vadd.f32 0.0, %v1655
      %v1657 = vpop.f32.mrb[0].mxu0
      %v1658 = vpop.f32.mrb[0].mxu0
      %v1659 = vadd.f32 0.0, %v1658
      %v1660 = vpop.f32.mrb[0].mxu0
      %1661 = vmatprep.mubr.bf16.mxu0 0
      %1662 = vmatmul.mubr.bf16.gmra.mrb[0].mxu0 %v1503
      %v1663 = vpop.f32.mrb[0].mxu0
      %v1664 = vadd.f32 0.0, %v1663
      %v1665 = vpop.f32.mrb[0].mxu0
      %v1666 = vpop.f32.mrb[0].mxu0
      %v1667 = vadd.f32 0.0, %v1666
      %v1668 = vpop.f32.mrb[0].mxu0
      %1669 = vdwg.mxu0
      %1670 = vst [vmem:[%s208] sm:$0xff] %v1544
      %1671 = vst [vmem:[%s208 + $0x8] sm:$0xff] %v1547
      %1672 = vst [vmem:[%s208 + $0x10] sm:$0xff] %v1552
      %1673 = vst [vmem:[%s208 + $0x18] sm:$0xff] %v1555
      %1674 = vst [vmem:[%s208 + $0x20] sm:$0xff] %v1560
      %1675 = vst [vmem:[%s208 + $0x28] sm:$0xff] %v1563
      %1676 = vst [vmem:[%s208 + $0x30] sm:$0xff] %v1568
      %1677 = vst [vmem:[%s208 + $0x38] sm:$0xff] %v1571
      %1678 = vst [vmem:[%s208 + $0x40] sm:$0xff] %v1576
      %1679 = vst [vmem:[%s208 + $0x48] sm:$0xff] %v1579
      %1680 = vst [vmem:[%s208 + $0x50] sm:$0xff] %v1584
      %1681 = vst [vmem:[%s208 + $0x58] sm:$0xff] %v1587
      %1682 = vst [vmem:[%s208 + $0x60] sm:$0xff] %v1592
      %1683 = vst [vmem:[%s208 + $0x68] sm:$0xff] %v1595
      %1684 = vst [vmem:[%s208 + $0x70] sm:$0xff] %v1600
      %1685 = vst [vmem:[%s208 + $0x78] sm:$0xff] %v1603
      %1686 = vst [vmem:[%s208 + $0x80] sm:$0xff] %v1608
      %1687 = vst [vmem:[%s208 + $0x88] sm:$0xff] %v1611
      %1688 = vst [vmem:[%s208 + $0x90] sm:$0xff] %v1616
      %1689 = vst [vmem:[%s208 + $0x98] sm:$0xff] %v1619
      %1690 = vst [vmem:[%s208 + $0xa0] sm:$0xff] %v1624
      %1691 = vst [vmem:[%s208 + $0xa8] sm:$0xff] %v1627
      %1692 = vst [vmem:[%s208 + $0xb0] sm:$0xff] %v1632
      %1693 = vst [vmem:[%s208 + $0xb8] sm:$0xff] %v1635
      %1694 = vst [vmem:[%s208 + $0xc0] sm:$0xff] %v1640
      %1695 = vst [vmem:[%s208 + $0xc8] sm:$0xff] %v1643
      %1696 = vst [vmem:[%s208 + $0xd0] sm:$0xff] %v1648
      %1697 = vst [vmem:[%s208 + $0xd8] sm:$0xff] %v1651
      %1698 = vst [vmem:[%s208 + $0xe0] sm:$0xff] %v1656
      %1699 = vst [vmem:[%s208 + $0xe8] sm:$0xff] %v1659
      %1700 = vst [vmem:[%s208 + $0xf0] sm:$0xff] %v1664
      %1701 = vst [vmem:[%s208 + $0xf8] sm:$0xff] %v1667
      %v1702 = vadd.f32 %v1544, %v1547
      %v1703 = vadd.f32 %v1702, %v1552
      %v1704 = vadd.f32 %v1703, %v1555
      %v1705 = vadd.f32 %v1704, %v1560
      %v1706 = vadd.f32 %v1705, %v1563
      %v1707 = vadd.f32 %v1706, %v1568
      %v1708 = vadd.f32 %v1707, %v1571
      %v1709 = vadd.f32 %v1708, %v1576
      %v1710 = vadd.f32 %v1709, %v1579
      %v1711 = vadd.f32 %v1710, %v1584
      %v1712 = vadd.f32 %v1711, %v1587
      %v1713 = vadd.f32 %v1712, %v1592
      %v1714 = vadd.f32 %v1713, %v1595
      %v1715 = vadd.f32 %v1714, %v1600
      %v1716 = vadd.f32 %v1715, %v1603
      %v1717 = vadd.f32 %v1716, %v1608
      %v1718 = vadd.f32 %v1717, %v1611
      %v1719 = vadd.f32 %v1718, %v1616
      %v1720 = vadd.f32 %v1719, %v1619
      %v1721 = vadd.f32 %v1720, %v1624
      %v1722 = vadd.f32 %v1721, %v1627
      %v1723 = vadd.f32 %v1722, %v1632
      %v1724 = vadd.f32 %v1723, %v1635
      %v1725 = vadd.f32 %v1724, %v1640
      %v1726 = vadd.f32 %v1725, %v1643
      %v1727 = vadd.f32 %v1726, %v1648
      %v1728 = vadd.f32 %v1727, %v1651
      %v1729 = vadd.f32 %v1728, %v1656
      %v1730 = vadd.f32 %v1729, %v1659
      %v1731 = vadd.f32 %v1730, %v1664
      %v1732 = vadd.f32 %v1731, %v1667
      %v1733 = vrot.slane %v1732, 4
      %v1734 = vadd.f32 %v1732, %v1733
      %v1735 = vrot.slane %v1734, 2
      %v1736 = vadd.f32 %v1734, %v1735
      %v1737 = vrot.slane %v1736, 1
      %v1738 = vadd.f32 %v1736, %v1737
      %1739 = vst [vmem:[%s211] sm:$0x1] %v1738
      %v1740 = vmul.f32 %v1544, %v1544
      %v1741 = vmul.f32 %v1547, %v1547
      %v1742 = vmul.f32 %v1552, %v1552
      %v1743 = vmul.f32 %v1555, %v1555
      %v1744 = vmul.f32 %v1560, %v1560
      %v1745 = vmul.f32 %v1563, %v1563
      %v1746 = vmul.f32 %v1568, %v1568
      %v1747 = vmul.f32 %v1571, %v1571
      %v1748 = vmul.f32 %v1576, %v1576
      %v1749 = vmul.f32 %v1579, %v1579
      %v1750 = vmul.f32 %v1584, %v1584
      %v1751 = vmul.f32 %v1587, %v1587
      %v1752 = vmul.f32 %v1592, %v1592
      %v1753 = vmul.f32 %v1595, %v1595
      %v1754 = vmul.f32 %v1600, %v1600
      %v1755 = vmul.f32 %v1603, %v1603
      %v1756 = vmul.f32 %v1608, %v1608
      %v1757 = vmul.f32 %v1611, %v1611
      %v1758 = vmul.f32 %v1616, %v1616
      %v1759 = vmul.f32 %v1619, %v1619
      %v1760 = vmul.f32 %v1624, %v1624
      %v1761 = vmul.f32 %v1627, %v1627
      %v1762 = vmul.f32 %v1632, %v1632
      %v1763 = vmul.f32 %v1635, %v1635
      %v1764 = vmul.f32 %v1640, %v1640
      %v1765 = vmul.f32 %v1643, %v1643
      %v1766 = vmul.f32 %v1648, %v1648
      %v1767 = vmul.f32 %v1651, %v1651
      %v1768 = vmul.f32 %v1656, %v1656
      %v1769 = vmul.f32 %v1659, %v1659
      %v1770 = vmul.f32 %v1664, %v1664
      %v1771 = vmul.f32 %v1667, %v1667
      %v1772 = vadd.f32 %v1740, %v1741
      %v1773 = vadd.f32 %v1772, %v1742
      %v1774 = vadd.f32 %v1773, %v1743
      %v1775 = vadd.f32 %v1774, %v1744
      %v1776 = vadd.f32 %v1775, %v1745
      %v1777 = vadd.f32 %v1776, %v1746
      %v1778 = vadd.f32 %v1777, %v1747
      %v1779 = vadd.f32 %v1778, %v1748
      %v1780 = vadd.f32 %v1779, %v1749
      %v1781 = vadd.f32 %v1780, %v1750
      %v1782 = vadd.f32 %v1781, %v1751
      %v1783 = vadd.f32 %v1782, %v1752
      %v1784 = vadd.f32 %v1783, %v1753
      %v1785 = vadd.f32 %v1784, %v1754
      %v1786 = vadd.f32 %v1785, %v1755
      %v1787 = vadd.f32 %v1786, %v1756
      %v1788 = vadd.f32 %v1787, %v1757
      %v1789 = vadd.f32 %v1788, %v1758
      %v1790 = vadd.f32 %v1789, %v1759
      %v1791 = vadd.f32 %v1790, %v1760
      %v1792 = vadd.f32 %v1791, %v1761
      %v1793 = vadd.f32 %v1792, %v1762
      %v1794 = vadd.f32 %v1793, %v1763
      %v1795 = vadd.f32 %v1794, %v1764
      %v1796 = vadd.f32 %v1795, %v1765
      %v1797 = vadd.f32 %v1796, %v1766
      %v1798 = vadd.f32 %v1797, %v1767
      %v1799 = vadd.f32 %v1798, %v1768
      %v1800 = vadd.f32 %v1799, %v1769
      %v1801 = vadd.f32 %v1800, %v1770
      %v1802 = vadd.f32 %v1801, %v1771
      %v1803 = vrot.slane %v1802, 4
      %v1804 = vadd.f32 %v1802, %v1803
      %v1805 = vrot.slane %v1804, 2
      %v1806 = vadd.f32 %v1804, %v1805
      %v1807 = vrot.slane %v1806, 1
      %v1808 = vadd.f32 %v1806, %v1807
      %1809 = vst [vmem:[%s214] sm:$0x1] %v1808
      %p1810 = scmp.lt.s32.totalorder %s16, 1
      %s1811 = scalar_select %p1810, %s16, 1
      %s1812 = smul.addr %s1811, 32
      %s1813 = smul.addr %s1812, 8
      %s1814 = scalar_lea.vmem %s2, %s1813
      %p1815 = scmp.lt.s32.totalorder %s16, 1
      %s1816 = scalar_select %p1815, %s16, 1
      %s1817 = scalar_lea.vmem %s3, %s1816
      %p1818 = scmp.lt.s32.totalorder %s16, 1
      %s1819 = scalar_select %p1818, %s16, 1
      %s1820 = scalar_lea.vmem %s4, %s1819
      // Predicated region
      $region29: #{resblock_forward.3} parent=27 // pred_check
        %p1821 = pneg %p81
      $region30: #{resblock_forward.3} parent=27 // pred_check_branch
        %1823 = sbr.rel (%p1821) target = $region32
      $region31: #{resblock_forward.3} parent=27 // pred_region
        _
      $region32: #{resblock_forward.3} parent=27 // pred_fallthru
        _
      // Predicated region
      $region33: #{resblock_forward.3} parent=27 // pred_check
        %p1824 = pneg %p107
      $region34: #{resblock_forward.3} parent=27 // pred_check_branch
        %1826 = sbr.rel (%p1824) target = $region36
      $region35: #{resblock_forward.3} parent=27 // pred_region
        _
      $region36: #{resblock_forward.3} parent=27 // pred_fallthru
        _
      // Predicated region
      $region37: #{resblock_forward.3} parent=27 // pred_check
        %p1827 = pneg %p133
      $region38: #{resblock_forward.3} parent=27 // pred_check_branch
        %1829 = sbr.rel (%p1827) target = $region40
      $region39: #{resblock_forward.3} parent=27 // pred_region
        _
      $region40: #{resblock_forward.3} parent=27 // pred_fallthru
        _
    $region28: #{resblock_forward.3} parent=5 // pred_fallthru
      _
    %p1830 = scmp.le.s32.totalorder 2, %s11
    // Predicated region
    $region41: #{resblock_forward.3} parent=5 // pred_check
      %p1831 = pneg %p1830
    $region42: #{resblock_forward.3} parent=5 // pred_check_branch
      %1833 = sbr.rel (%p1831) target = $region44
    $region43: #{resblock_forward.3} parent=5 // pred_region
      %s1834 = ssub.s32 %s11, 2
      // Predicated region
      $region45: #{resblock_forward.3} parent=43 // pred_check
        %p1835 = pneg %p87
      $region46: #{resblock_forward.3} parent=43 // pred_check_branch
        %1837 = sbr.rel (%p1835) target = $region48
      $region47: #{resblock_forward.3} parent=43 // pred_region
        %p1838 = scmp.lt.s32.totalorder %s17, 1
        %s1839 = scalar_select %p1838, %s17, 1
        %s1840 = smul.addr %s1839, 32
        %s1841 = smul.addr %s1840, 8
        %s1842 = scalar_lea.vmem %s2, %s1841
      $region48: #{resblock_forward.3} parent=43 // pred_fallthru
        _
      // Predicated region
      $region49: #{resblock_forward.3} parent=43 // pred_check
        %p1843 = pneg %p113
      $region50: #{resblock_forward.3} parent=43 // pred_check_branch
        %1845 = sbr.rel (%p1843) target = $region52
      $region51: #{resblock_forward.3} parent=43 // pred_region
        %p1846 = scmp.lt.s32.totalorder %s17, 1
        %s1847 = scalar_select %p1846, %s17, 1
        %s1848 = scalar_lea.vmem %s3, %s1847
      $region52: #{resblock_forward.3} parent=43 // pred_fallthru
        _
      // Predicated region
      $region53: #{resblock_forward.3} parent=43 // pred_check
        %p1849 = pneg %p139
      $region54: #{resblock_forward.3} parent=43 // pred_check_branch
        %1851 = sbr.rel (%p1849) target = $region56
      $region55: #{resblock_forward.3} parent=43 // pred_region
        %p1852 = scmp.lt.s32.totalorder %s17, 1
        %s1853 = scalar_select %p1852, %s17, 1
        %s1854 = scalar_lea.vmem %s4, %s1853
      $region56: #{resblock_forward.3} parent=43 // pred_fallthru
        _
    $region44: #{resblock_forward.3} parent=5 // pred_fallthru
      _
  $region6: #{resblock_forward.3} parent=0 // loop_footer
    %s15 = sadd.s32 1, %s11
  $region7: #{resblock_forward.3} parent=0 // loop_footer_branch
    %10 = sbr.rel target = $region3
  $region8: #{resblock_forward.3} parent=0 // loop_exit
    _

// kernel: resblock_forward.4
$region0: #{resblock_forward.4}
  #allocation0 [shape = 'u32[]', space=smem, size = 0x4, offset = 0x4, fixed_abs, tag = 'smem constant byte address 0x4 - core index']
  #allocation1 [shape = 'u32[144,128]{1,0:T(1,128)}', space=vmem, size = 0x12000, scoped, tag = 'internal scratch']
  #allocation2 [shape = 'f32[1,18,18,128]{3,2,1,0:T(8,128)}', space=vmem, size = 0x36000, scoped, tag = 'scratch operand']
  #allocation3 [shape = 'bf16[256,1152]{1,0:T(16,128)(2,1)}', space=vmem, size = 0x90000, scoped, tag = 'scratch operand']
  %s0 = inlined_call_operand.vmem [shape: f32[2,16,16,128], index: 0, kind: input, shape index: {}]
  %s1 = inlined_call_operand.vmem [shape: f32[1,128], index: 1, kind: input, shape index: {}]
  %s2 = inlined_call_operand.vmem [shape: f32[1,128], index: 2, kind: input, shape index: {}]
  %s3 = inlined_call_operand.vmem [shape: bf16[1152,128], index: 3, kind: input, shape index: {}]
  %s4 = inlined_call_operand.vmem [shape: f32[2,16,16,128], index: 4, kind: output, shape index: {0}]
  %s5 = inlined_call_operand.vmem [shape: f32[2,1,128], index: 5, kind: output, shape index: {1}]
  %s6 = inlined_call_operand.vmem [shape: f32[2,1,128], index: 6, kind: output, shape index: {2}]
  %7 = xla_tuple %s4, %s5, %s6
  %s8 = sld [smem:[#allocation0]]
  $region65: #{resblock_forward.4} parent=0
    _
  %s10 = ssub.s32 1, %s8
  %s11 = scalar_select 0, %s10, %s8
  loop: start=0, step=1, limit=4
  $region2: #{resblock_forward.4} parent=0 // loop_pre_header
    _
  $region3: #{resblock_forward.4} parent=0 // loop_header
    %s13 = sphi 0, %s17
    %p14 = scmp.ge.s32.totalorder %s13, 4
    %s23 = sphi 0, %s25
    %s26 = sphi 0, %s23
    %s27 = sphi 0, %s26
    %s43 = sphi 0, %s27
    %s47 = sphi 0, %s47
    %s49 = sphi 0, %s47
    %s50 = sphi 0, %s49
    %s64 = sphi 0, %s50
    %s68 = sphi 0, %s68
    %s70 = sphi 0, %s68
    %s71 = sphi 0, %s70
    %s85 = sphi 0, %s71
    %s89 = sphi 0, %s89
    %s91 = sphi 0, %s89
    %s92 = sphi 0, %s91
    %s106 = sphi 0, %s92
    %s112 = sphi 0, %s114
    %s115 = sphi 0, %s112
    %s116 = sphi 0, %s115
    %s132 = sphi 0, %s116
    %s138 = sphi 0, %s140
    %s141 = sphi 0, %s138
    %s142 = sphi 0, %s141
    %s158 = sphi 0, %s142
    %s164 = sphi 0, %s166
    %s167 = sphi 0, %s164
    %s168 = sphi 0, %s167
    %s184 = sphi 0, %s168
  $region4: #{resblock_forward.4} parent=0 // loop_header_branch
    %16 = sbr.rel (%p14) target = $region8
  $region5: #{resblock_forward.4} parent=0 // loop_body
    %s18 = ssub.s32 %s13, 1
    %s19 = ssub.s32 %s13, 2
    %s20 = sadd.s32 %s13, 1
    %s21 = ssub.s32 %s13, %s20
    %p22 = scmp.eq.s32.totalorder %s21, 0
    %s24 = sadd.s32 %s23, 1
    %s25 = scalar_select %p22, %s23, %s24
    %p28 = pneg %p22
    %p29 = scmp.eq.s32.totalorder %s13, 1
    %p30 = por %p28, %p29
    %p31 = scmp.ne.s32.totalorder %s23, %s26
    %p32 = scmp.eq.s32.totalorder %s13, 0
    %p33 = por %p31, %p32
    %p34 = scmp.ne.s32.totalorder %s23, %s26
    %p35 = scmp.eq.s32.totalorder %s18, 1
    %p36 = por %p34, %p35
    %p37 = scmp.ne.s32.totalorder %s26, %s27
    %p38 = scmp.eq.s32.totalorder %s18, 0
    %p39 = por %p37, %p38
    %p40 = scmp.ne.s32.totalorder %s26, %s27
    %p41 = scmp.eq.s32.totalorder %s19, 1
    %p42 = por %p40, %p41
    %p44 = scmp.ne.s32.totalorder %s27, %s43
    %p45 = scmp.eq.s32.totalorder %s19, 0
    %p46 = por %p44, %p45
    %s48 = sadd.s32 %s47, 1
    %p51 = scmp.eq.s32.totalorder %s13, 1
    %p52 = scmp.ne.s32.totalorder %s47, %s49
    %p53 = scmp.eq.s32.totalorder %s13, 0
    %p54 = por %p52, %p53
    %p55 = scmp.ne.s32.totalorder %s47, %s49
    %p56 = scmp.eq.s32.totalorder %s18, 1
    %p57 = por %p55, %p56
    %p58 = scmp.ne.s32.totalorder %s49, %s50
    %p59 = scmp.eq.s32.totalorder %s18, 0
    %p60 = por %p58, %p59
    %p61 = scmp.ne.s32.totalorder %s49, %s50
    %p62 = scmp.eq.s32.totalorder %s19, 1
    %p63 = por %p61, %p62
    %p65 = scmp.ne.s32.totalorder %s50, %s64
    %p66 = scmp.eq.s32.totalorder %s19, 0
    %p67 = por %p65, %p66
    %s69 = sadd.s32 %s68, 1
    %p72 = scmp.eq.s32.totalorder %s13, 1
    %p73 = scmp.ne.s32.totalorder %s68, %s70
    %p74 = scmp.eq.s32.totalorder %s13, 0
    %p75 = por %p73, %p74
    %p76 = scmp.ne.s32.totalorder %s68, %s70
    %p77 = scmp.eq.s32.totalorder %s18, 1
    %p78 = por %p76, %p77
    %p79 = scmp.ne.s32.totalorder %s70, %s71
    %p80 = scmp.eq.s32.totalorder %s18, 0
    %p81 = por %p79, %p80
    %p82 = scmp.ne.s32.totalorder %s70, %s71
    %p83 = scmp.eq.s32.totalorder %s19, 1
    %p84 = por %p82, %p83
    %p86 = scmp.ne.s32.totalorder %s71, %s85
    %p87 = scmp.eq.s32.totalorder %s19, 0
    %p88 = por %p86, %p87
    %s90 = sadd.s32 %s89, 1
    %p93 = scmp.eq.s32.totalorder %s13, 1
    %p94 = scmp.ne.s32.totalorder %s89, %s91
    %p95 = scmp.eq.s32.totalorder %s13, 0
    %p96 = por %p94, %p95
    %p97 = scmp.ne.s32.totalorder %s89, %s91
    %p98 = scmp.eq.s32.totalorder %s18, 1
    %p99 = por %p97, %p98
    %p100 = scmp.ne.s32.totalorder %s91, %s92
    %p101 = scmp.eq.s32.totalorder %s18, 0
    %p102 = por %p100, %p101
    %p103 = scmp.ne.s32.totalorder %s91, %s92
    %p104 = scmp.eq.s32.totalorder %s19, 1
    %p105 = por %p103, %p104
    %p107 = scmp.ne.s32.totalorder %s92, %s106
    %p108 = scmp.eq.s32.totalorder %s19, 0
    %p109 = por %p107, %p108
    %s110 = ssub.s32 %s13, %s20
    %p111 = scmp.eq.s32.totalorder %s110, 0
    %s113 = sadd.s32 %s112, 1
    %s114 = scalar_select %p111, %s112, %s113
    %p117 = pneg %p111
    %p118 = scmp.eq.s32.totalorder %s13, 1
    %p119 = por %p117, %p118
    %p120 = scmp.ne.s32.totalorder %s112, %s115
    %p121 = scmp.eq.s32.totalorder %s13, 0
    %p122 = por %p120, %p121
    %p123 = scmp.ne.s32.totalorder %s112, %s115
    %p124 = scmp.eq.s32.totalorder %s18, 1
    %p125 = por %p123, %p124
    %p126 = scmp.ne.s32.totalorder %s115, %s116
    %p127 = scmp.eq.s32.totalorder %s18, 0
    %p128 = por %p126, %p127
    %p129 = scmp.ne.s32.totalorder %s115, %s116
    %p130 = scmp.eq.s32.totalorder %s19, 1
    %p131 = por %p129, %p130
    %p133 = scmp.ne.s32.totalorder %s116, %s132
    %p134 = scmp.eq.s32.totalorder %s19, 0
    %p135 = por %p133, %p134
    %s136 = ssub.s32 %s13, %s20
    %p137 = scmp.eq.s32.totalorder %s136, 0
    %s139 = sadd.s32 %s138, 1
    %s140 = scalar_select %p137, %s138, %s139
    %p143 = pneg %p137
    %p144 = scmp.eq.s32.totalorder %s13, 1
    %p145 = por %p143, %p144
    %p146 = scmp.ne.s32.totalorder %s138, %s141
    %p147 = scmp.eq.s32.totalorder %s13, 0
    %p148 = por %p146, %p147
    %p149 = scmp.ne.s32.totalorder %s138, %s141
    %p150 = scmp.eq.s32.totalorder %s18, 1
    %p151 = por %p149, %p150
    %p152 = scmp.ne.s32.totalorder %s141, %s142
    %p153 = scmp.eq.s32.totalorder %s18, 0
    %p154 = por %p152, %p153
    %p155 = scmp.ne.s32.totalorder %s141, %s142
    %p156 = scmp.eq.s32.totalorder %s19, 1
    %p157 = por %p155, %p156
    %p159 = scmp.ne.s32.totalorder %s142, %s158
    %p160 = scmp.eq.s32.totalorder %s19, 0
    %p161 = por %p159, %p160
    %s162 = ssub.s32 %s13, %s20
    %p163 = scmp.eq.s32.totalorder %s162, 0
    %s165 = sadd.s32 %s164, 1
    %s166 = scalar_select %p163, %s164, %s165
    %p169 = pneg %p163
    %p170 = scmp.eq.s32.totalorder %s13, 1
    %p171 = por %p169, %p170
    %p172 = scmp.ne.s32.totalorder %s164, %s167
    %p173 = scmp.eq.s32.totalorder %s13, 0
    %p174 = por %p172, %p173
    %p175 = scmp.ne.s32.totalorder %s164, %s167
    %p176 = scmp.eq.s32.totalorder %s18, 1
    %p177 = por %p175, %p176
    %p178 = scmp.ne.s32.totalorder %s167, %s168
    %p179 = scmp.eq.s32.totalorder %s18, 0
    %p180 = por %p178, %p179
    %p181 = scmp.ne.s32.totalorder %s167, %s168
    %p182 = scmp.eq.s32.totalorder %s19, 1
    %p183 = por %p181, %p182
    %p185 = scmp.ne.s32.totalorder %s168, %s184
    %p186 = scmp.eq.s32.totalorder %s19, 0
    %p187 = por %p185, %p186
    %p188 = scmp.le.s32.totalorder 1, %s13
    %p189 = scmp.lt.s32.totalorder %s13, 3
    %p190 = pnand %p188, %p189
    %p191 = pneg %p190
    // Predicated region
    $region9: #{resblock_forward.4} parent=5 // pred_check
      _
    $region10: #{resblock_forward.4} parent=5 // pred_check_branch
      %193 = sbr.rel (%p190) target = $region12
    $region11: #{resblock_forward.4} parent=5 // pred_region
      %s194 = ssub.s32 %s13, 1
      // Predicated region
      $region13: #{resblock_forward.4} parent=11 // pred_check
        %p195 = pneg %p60
      $region14: #{resblock_forward.4} parent=11 // pred_check_branch
        %197 = sbr.rel (%p195) target = $region16
      $region15: #{resblock_forward.4} parent=11 // pred_region
        _
      $region16: #{resblock_forward.4} parent=11 // pred_fallthru
        _
      // Predicated region
      $region17: #{resblock_forward.4} parent=11 // pred_check
        %p198 = pneg %p81
      $region18: #{resblock_forward.4} parent=11 // pred_check_branch
        %200 = sbr.rel (%p198) target = $region20
      $region19: #{resblock_forward.4} parent=11 // pred_region
        _
      $region20: #{resblock_forward.4} parent=11 // pred_fallthru
        _
      // Predicated region
      $region21: #{resblock_forward.4} parent=11 // pred_check
        %p201 = pneg %p102
      $region22: #{resblock_forward.4} parent=11 // pred_check_branch
        %203 = sbr.rel (%p201) target = $region24
      $region23: #{resblock_forward.4} parent=11 // pred_region
        _
      $region24: #{resblock_forward.4} parent=11 // pred_fallthru
        _
    $region12: #{resblock_forward.4} parent=5 // pred_fallthru
      _
    %p204 = scmp.lt.s32.totalorder %s13, 2
    // Predicated region
    $region25: #{resblock_forward.4} parent=5 // pred_check
      %p205 = pneg %p204
    $region26: #{resblock_forward.4} parent=5 // pred_check_branch
      %207 = sbr.rel (%p205) target = $region28
    $region27: #{resblock_forward.4} parent=5 // pred_region
      // Predicated region
      $region29: #{resblock_forward.4} parent=27 // pred_check
        %p208 = pneg %p33
      $region30: #{resblock_forward.4} parent=27 // pred_check_branch
        %210 = sbr.rel (%p208) target = $region32
      $region31: #{resblock_forward.4} parent=27 // pred_region
        %p211 = scmp.lt.s32.totalorder %s13, 1
        %s212 = scalar_select %p211, %s13, 1
        %s213 = smul.addr %s212, 32
        %s214 = smul.addr %s213, 8
        %s215 = scalar_lea.vmem %s0, %s214
      $region32: #{resblock_forward.4} parent=27 // pred_fallthru
        _
    $region28: #{resblock_forward.4} parent=5 // pred_fallthru
      _
    %p216 = scmp.le.s32.totalorder 1, %s13
    %p217 = scmp.lt.s32.totalorder %s13, 3
    %p218 = pnand %p216, %p217
    %p219 = pneg %p218
    // Predicated region
    $region33: #{resblock_forward.4} parent=5 // pred_check
      _
    $region34: #{resblock_forward.4} parent=5 // pred_check_branch
      %221 = sbr.rel (%p218) target = $region36
    $region35: #{resblock_forward.4} parent=5 // pred_region
      %s222 = ssub.s32 %s13, 1
      %p223 = scmp.lt.s32.totalorder %s18, 1
      %s224 = scalar_select %p223, %s18, 1
      %s225 = smul.addr %s224, 32
      %s226 = smul.addr %s225, 8
      %s227 = scalar_lea.vmem %s0, %s226
      %p228 = pneg %p39
      %p229 = pneg %p36
      %p230 = pneg %p60
      %p231 = pneg %p57
      %p232 = pneg %p81
      %p233 = pneg %p78
      %p234 = pneg %p102
      %p235 = pneg %p99
      %p236 = pneg %p128
      %p237 = pneg %p125
      %p238 = scmp.lt.s32.totalorder %s18, 1
      %s239 = scalar_select %p238, %s18, 1
      %s240 = smul.addr %s239, 32
      %s241 = smul.addr %s240, 8
      %s242 = scalar_lea.vmem %s4, %s241
      %p243 = pneg %p154
      %p244 = pneg %p151
      %p245 = scmp.lt.s32.totalorder %s18, 1
      %s246 = scalar_select %p245, %s18, 1
      %s247 = scalar_lea.vmem %s5, %s246
      %p248 = pneg %p180
      %p249 = pneg %p177
      %p250 = scmp.lt.s32.totalorder %s18, 1
      %s251 = scalar_select %p250, %s18, 1
      %s252 = scalar_lea.vmem %s6, %s251
      %p253 = scmp.lt.s32.totalorder %s18, 1
      %s254 = scalar_select %p253, %s18, 1
      %s255 = smul.addr %s254, 32
      %s256 = smul.addr %s255, 8
      %s257 = scalar_lea.vmem %s0, %s256
      %p258 = scmp.lt.s32.totalorder %s18, 1
      %s259 = scalar_select %p258, %s18, 1
      %s260 = smul.addr %s259, 32
      %s261 = smul.addr %s260, 8
      %s262 = scalar_lea.vmem %s4, %s261
      %p263 = scmp.lt.s32.totalorder %s18, 1
      %s264 = scalar_select %p263, %s18, 1
      %s265 = scalar_lea.vmem %s5, %s264
      %p266 = scmp.lt.s32.totalorder %s18, 1
      %s267 = scalar_select %p266, %s18, 1
      %s268 = scalar_lea.vmem %s6, %s267
      %v270 = vld [vmem:[%s257] sm:$0xff]
      %v271 = vld [vmem:[%s257 + $0x8] sm:$0xff]
      %v272 = vld [vmem:[%s257 + $0x10] sm:$0xff]
      %v273 = vld [vmem:[%s257 + $0x18] sm:$0xff]
      %v274 = vld [vmem:[%s257 + $0x20] sm:$0xff]
      %v275 = vld [vmem:[%s257 + $0x28] sm:$0xff]
      %v276 = vld [vmem:[%s257 + $0x30] sm:$0xff]
      %v277 = vld [vmem:[%s257 + $0x38] sm:$0xff]
      %v278 = vld [vmem:[%s257 + $0x40] sm:$0xff]
      %v279 = vld [vmem:[%s257 + $0x48] sm:$0xff]
      %v280 = vld [vmem:[%s257 + $0x50] sm:$0xff]
      %v281 = vld [vmem:[%s257 + $0x58] sm:$0xff]
      %v282 = vld [vmem:[%s257 + $0x60] sm:$0xff]
      %v283 = vld [vmem:[%s257 + $0x68] sm:$0xff]
      %v284 = vld [vmem:[%s257 + $0x70] sm:$0xff]
      %v285 = vld [vmem:[%s257 + $0x78] sm:$0xff]
      %v286 = vld [vmem:[%s257 + $0x80] sm:$0xff]
      %v287 = vld [vmem:[%s257 + $0x88] sm:$0xff]
      %v288 = vld [vmem:[%s257 + $0x90] sm:$0xff]
      %v289 = vld [vmem:[%s257 + $0x98] sm:$0xff]
      %v290 = vld [vmem:[%s257 + $0xa0] sm:$0xff]
      %v291 = vld [vmem:[%s257 + $0xa8] sm:$0xff]
      %v292 = vld [vmem:[%s257 + $0xb0] sm:$0xff]
      %v293 = vld [vmem:[%s257 + $0xb8] sm:$0xff]
      %v294 = vld [vmem:[%s257 + $0xc0] sm:$0xff]
      %v295 = vld [vmem:[%s257 + $0xc8] sm:$0xff]
      %v296 = vld [vmem:[%s257 + $0xd0] sm:$0xff]
      %v297 = vld [vmem:[%s257 + $0xd8] sm:$0xff]
      %v298 = vld [vmem:[%s257 + $0xe0] sm:$0xff]
      %v299 = vld [vmem:[%s257 + $0xe8] sm:$0xff]
      %v300 = vld [vmem:[%s257 + $0xf0] sm:$0xff]
      %v301 = vld [vmem:[%s257 + $0xf8] sm:$0xff]
      %v302 = vld [vmem:[%s1] sm:$0x1]
      %v304 = vlaneseq
      %v305 = vshrl.u32 %v304, 7
      %v306 = vsub.s32 0, %v305
      %v307 = vrot.slane %v302, %v306
      %v309 = vmul.f32 %v270, %v307
      %v310 = vmul.f32 %v271, %v307
      %v311 = vmul.f32 %v272, %v307
      %v312 = vmul.f32 %v273, %v307
      %v313 = vmul.f32 %v274, %v307
      %v314 = vmul.f32 %v275, %v307
      %v315 = vmul.f32 %v276, %v307
      %v316 = vmul.f32 %v277, %v307
      %v317 = vmul.f32 %v278, %v307
      %v318 = vmul.f32 %v279, %v307
      %v319 = vmul.f32 %v280, %v307
      %v320 = vmul.f32 %v281, %v307
      %v321 = vmul.f32 %v282, %v307
      %v322 = vmul.f32 %v283, %v307
      %v323 = vmul.f32 %v284, %v307
      %v324 = vmul.f32 %v285, %v307
      %v325 = vmul.f32 %v286, %v307
      %v326 = vmul.f32 %v287, %v307
      %v327 = vmul.f32 %v288, %v307
      %v328 = vmul.f32 %v289, %v307
      %v329 = vmul.f32 %v290, %v307
      %v330 = vmul.f32 %v291, %v307
      %v331 = vmul.f32 %v292, %v307
      %v332 = vmul.f32 %v293, %v307
      %v333 = vmul.f32 %v294, %v307
      %v334 = vmul.f32 %v295, %v307
      %v335 = vmul.f32 %v296, %v307
      %v336 = vmul.f32 %v297, %v307
      %v337 = vmul.f32 %v298, %v307
      %v338 = vmul.f32 %v299, %v307
      %v339 = vmul.f32 %v300, %v307
      %v340 = vmul.f32 %v301, %v307
      %v341 = vld [vmem:[%s2] sm:$0x1]
      %v343 = vlaneseq
      %v344 = vshrl.u32 %v343, 7
      %v345 = vsub.s32 0, %v344
      %v346 = vrot.slane %v341, %v345
      %v348 = vadd.f32 %v309, %v346
      %v349 = vadd.f32 %v310, %v346
      %v350 = vadd.f32 %v311, %v346
      %v351 = vadd.f32 %v312, %v346
      %v352 = vadd.f32 %v313, %v346
      %v353 = vadd.f32 %v314, %v346
      %v354 = vadd.f32 %v315, %v346
      %v355 = vadd.f32 %v316, %v346
      %v356 = vadd.f32 %v317, %v346
      %v357 = vadd.f32 %v318, %v346
      %v358 = vadd.f32 %v319, %v346
      %v359 = vadd.f32 %v320, %v346
      %v360 = vadd.f32 %v321, %v346
      %v361 = vadd.f32 %v322, %v346
      %v362 = vadd.f32 %v323, %v346
      %v363 = vadd.f32 %v324, %v346
      %v364 = vadd.f32 %v325, %v346
      %v365 = vadd.f32 %v326, %v346
      %v366 = vadd.f32 %v327, %v346
      %v367 = vadd.f32 %v328, %v346
      %v368 = vadd.f32 %v329, %v346
      %v369 = vadd.f32 %v330, %v346
      %v370 = vadd.f32 %v331, %v346
      %v371 = vadd.f32 %v332, %v346
      %v372 = vadd.f32 %v333, %v346
      %v373 = vadd.f32 %v334, %v346
      %v374 = vadd.f32 %v335, %v346
      %v375 = vadd.f32 %v336, %v346
      %v376 = vadd.f32 %v337, %v346
      %v377 = vadd.f32 %v338, %v346
      %v378 = vadd.f32 %v339, %v346
      %v379 = vadd.f32 %v340, %v346
      %v380 = vmax.f32 %v348, 0.0
      %v381 = vmax.f32 %v349, 0.0
      %v382 = vmax.f32 %v350, 0.0
      %v383 = vmax.f32 %v351, 0.0
      %v384 = vmax.f32 %v352, 0.0
      %v385 = vmax.f32 %v353, 0.0
      %v386 = vmax.f32 %v354, 0.0
      %v387 = vmax.f32 %v355, 0.0
      %v388 = vmax.f32 %v356, 0.0
      %v389 = vmax.f32 %v357, 0.0
      %v390 = vmax.f32 %v358, 0.0
      %v391 = vmax.f32 %v359, 0.0
      %v392 = vmax.f32 %v360, 0.0
      %v393 = vmax.f32 %v361, 0.0
      %v394 = vmax.f32 %v362, 0.0
      %v395 = vmax.f32 %v363, 0.0
      %v396 = vmax.f32 %v364, 0.0
      %v397 = vmax.f32 %v365, 0.0
      %v398 = vmax.f32 %v366, 0.0
      %v399 = vmax.f32 %v367, 0.0
      %v400 = vmax.f32 %v368, 0.0
      %v401 = vmax.f32 %v369, 0.0
      %v402 = vmax.f32 %v370, 0.0
      %v403 = vmax.f32 %v371, 0.0
      %v404 = vmax.f32 %v372, 0.0
      %v405 = vmax.f32 %v373, 0.0
      %v406 = vmax.f32 %v374, 0.0
      %v407 = vmax.f32 %v375, 0.0
      %v408 = vmax.f32 %v376, 0.0
      %v409 = vmax.f32 %v377, 0.0
      %v410 = vmax.f32 %v378, 0.0
      %v411 = vmax.f32 %v379, 0.0
      %412 = vst [vmem:[#allocation2] sm:$0xff] 0.0
      %413 = vst [vmem:[#allocation2 + $0x8] sm:$0xff] 0.0
      %414 = vst [vmem:[#allocation2 + $0x10] sm:$0x3] 0.0
      %s415 = scalar_lea.vmem [#allocation2], 408
      %416 = vst [vmem:[%s415] sm:$0xff] 0.0
      %417 = vst [vmem:[%s415 + $0x8] sm:$0xff] 0.0
      %418 = vst [vmem:[%s415 + $0x10] sm:$0x3] 0.0
      %s419 = scalar_lea.vmem [#allocation2], 24
      %420 = vst [vmem:[%s419] sm:$0x1] 0.0
      %421 = vst [vmem:[%s419 + $0x18] sm:$0x1] 0.0
      %422 = vst [vmem:[%s419 + $0x30] sm:$0x1] 0.0
      %423 = vst [vmem:[%s419 + $0x48] sm:$0x1] 0.0
      %424 = vst [vmem:[%s419 + $0x60] sm:$0x1] 0.0
      %425 = vst [vmem:[%s419 + $0x78] sm:$0x1] 0.0
      %426 = vst [vmem:[%s419 + $0x90] sm:$0x1] 0.0
      %427 = vst [vmem:[%s419 + $0xa8] sm:$0x1] 0.0
      %428 = vst [vmem:[%s419 + $0xc0] sm:$0x1] 0.0
      %429 = vst [vmem:[%s419 + $0xd8] sm:$0x1] 0.0
      %430 = vst [vmem:[%s419 + $0xf0] sm:$0x1] 0.0
      %431 = vst [vmem:[%s419 + $0x108] sm:$0x1] 0.0
      %432 = vst [vmem:[%s419 + $0x120] sm:$0x1] 0.0
      %433 = vst [vmem:[%s419 + $0x138] sm:$0x1] 0.0
      %434 = vst [vmem:[%s419 + $0x150] sm:$0x1] 0.0
      %435 = vst [vmem:[%s419 + $0x168] sm:$0x1] 0.0
      %436 = vst [vmem:[%s419 + $0x11] sm:$0x1] 0.0
      %437 = vst [vmem:[%s419 + $0x29] sm:$0x1] 0.0
      %438 = vst [vmem:[%s419 + $0x41] sm:$0x1] 0.0
      %439 = vst [vmem:[%s419 + $0x59] sm:$0x1] 0.0
      %440 = vst [vmem:[%s419 + $0x71] sm:$0x1] 0.0
      %441 = vst [vmem:[%s419 + $0x89] sm:$0x1] 0.0
      %442 = vst [vmem:[%s419 + $0xa1] sm:$0x1] 0.0
      %443 = vst [vmem:[%s419 + $0xb9] sm:$0x1] 0.0
      %444 = vst [vmem:[%s419 + $0xd1] sm:$0x1] 0.0
      %445 = vst [vmem:[%s419 + $0xe9] sm:$0x1] 0.0
      %446 = vst [vmem:[%s419 + $0x101] sm:$0x1] 0.0
      %447 = vst [vmem:[%s419 + $0x119] sm:$0x1] 0.0
      %448 = vst [vmem:[%s419 + $0x131] sm:$0x1] 0.0
      %449 = vst [vmem:[%s419 + $0x149] sm:$0x1] 0.0
      %450 = vst [vmem:[%s419 + $0x161] sm:$0x1] 0.0
      %451 = vst [vmem:[%s419 + $0x179] sm:$0x1] 0.0
      %452 = vst [vmem:[%s419 + $0x1] sm:$0xff] %v380
      %453 = vst [vmem:[%s419 + $0x9] sm:$0xff] %v381
      %454 = vst [vmem:[%s419 + $0x19] sm:$0xff] %v382
      %455 = vst [vmem:[%s419 + $0x21] sm:$0xff] %v383
      %456 = vst [vmem:[%s419 + $0x31] sm:$0xff] %v384
      %457 = vst [vmem:[%s419 + $0x39] sm:$0xff] %v385
      %458 = vst [vmem:[%s419 + $0x49] sm:$0xff] %v386
      %459 = vst [vmem:[%s419 + $0x51] sm:$0xff] %v387
      %460 = vst [vmem:[%s419 + $0x61] sm:$0xff] %v388
      %461 = vst [vmem:[%s419 + $0x69] sm:$0xff] %v389
      %462 = vst [vmem:[%s419 + $0x79] sm:$0xff] %v390
      %463 = vst [vmem:[%s419 + $0x81] sm:$0xff] %v391
      %464 = vst [vmem:[%s419 + $0x91] sm:$0xff] %v392
      %465 = vst [vmem:[%s419 + $0x99] sm:$0xff] %v393
      %466 = vst [vmem:[%s419 + $0xa9] sm:$0xff] %v394
      %467 = vst [vmem:[%s419 + $0xb1] sm:$0xff] %v395
      %468 = vst [vmem:[%s419 + $0xc1] sm:$0xff] %v396
      %469 = vst [vmem:[%s419 + $0xc9] sm:$0xff] %v397
      %470 = vst [vmem:[%s419 + $0xd9] sm:$0xff] %v398
      %471 = vst [vmem:[%s419 + $0xe1] sm:$0xff] %v399
      %472 = vst [vmem:[%s419 + $0xf1] sm:$0xff] %v400
      %473 = vst [vmem:[%s419 + $0xf9] sm:$0xff] %v401
      %474 = vst [vmem:[%s419 + $0x109] sm:$0xff] %v402
      %475 = vst [vmem:[%s419 + $0x111] sm:$0xff] %v403
      %476 = vst [vmem:[%s419 + $0x121] sm:$0xff] %v404
      %477 = vst [vmem:[%s419 + $0x129] sm:$0xff] %v405
      %478 = vst [vmem:[%s419 + $0x139] sm:$0xff] %v406
      %479 = vst [vmem:[%s419 + $0x141] sm:$0xff] %v407
      %480 = vst [vmem:[%s419 + $0x151] sm:$0xff] %v408
      %481 = vst [vmem:[%s419 + $0x159] sm:$0xff] %v409
      %482 = vst [vmem:[%s419 + $0x169] sm:$0xff] %v410
      %483 = vst [vmem:[%s419 + $0x171] sm:$0xff] %v411
      %v484 = vld [vmem:[#allocation2] sm:$0xff]
      %v485 = vld [vmem:[#allocation2 + $0x8] sm:$0xff]
      %v486 = vld [vmem:[#allocation2 + $0x18] sm:$0xff]
      %v487 = vld [vmem:[#allocation2 + $0x20] sm:$0xff]
      %v488 = vld [vmem:[#allocation2 + $0x30] sm:$0xff]
      %v489 = vld [vmem:[#allocation2 + $0x38] sm:$0xff]
      %v490 = vld [vmem:[#allocation2 + $0x48] sm:$0xff]
      %v491 = vld [vmem:[#allocation2 + $0x50] sm:$0xff]
      %v492 = vld [vmem:[#allocation2 + $0x60] sm:$0xff]
      %v493 = vld [vmem:[#allocation2 + $0x68] sm:$0xff]
      %v494 = vld [vmem:[#allocation2 + $0x78] sm:$0xff]
      %v495 = vld [vmem:[#allocation2 + $0x80] sm:$0xff]
      %v496 = vld [vmem:[#allocation2 + $0x90] sm:$0xff]
      %v497 = vld [vmem:[#allocation2 + $0x98] sm:$0xff]
      %v498 = vld [vmem:[#allocation2 + $0xa8] sm:$0xff]
      %v499 = vld [vmem:[#allocation2 + $0xb0] sm:$0xff]
      %v500 = vld [vmem:[#allocation2 + $0xc0] sm:$0xff]
      %v501 = vld [vmem:[#allocation2 + $0xc8] sm:$0xff]
      %v502 = vld [vmem:[#allocation2 + $0xd8] sm:$0xff]
      %v503 = vld [vmem:[#allocation2 + $0xe0] sm:$0xff]
      %v504 = vld [vmem:[#allocation2 + $0xf0] sm:$0xff]
      %v505 = vld [vmem:[#allocation2 + $0xf8] sm:$0xff]
      %v506 = vld [vmem:[#allocation2 + $0x108] sm:$0xff]
      %v507 = vld [vmem:[#allocation2 + $0x110] sm:$0xff]
      %v508 = vld [vmem:[#allocation2 + $0x120] sm:$0xff]
      %v509 = vld [vmem:[#allocation2 + $0x128] sm:$0xff]
      %v510 = vld [vmem:[#allocation2 + $0x138] sm:$0xff]
      %v511 = vld [vmem:[#allocation2 + $0x140] sm:$0xff]
      %v512 = vld [vmem:[#allocation2 + $0x150] sm:$0xff]
      %v513 = vld [vmem:[#allocation2 + $0x158] sm:$0xff]
      %v514 = vld [vmem:[#allocation2 + $0x168] sm:$0xff]
      %v515 = vld [vmem:[#allocation2 + $0x170] sm:$0xff]
      %v516 = vpack.c.bf16 %v485, %v484
      %v517 = vpack.c.bf16 %v487, %v486
      %v518 = vpack.c.bf16 %v489, %v488
      %v519 = vpack.c.bf16 %v491, %v490
      %v520 = vpack.c.bf16 %v493, %v492
      %v521 = vpack.c.bf16 %v495, %v494
      %v522 = vpack.c.bf16 %v497, %v496
      %v523 = vpack.c.bf16 %v499, %v498
      %v524 = vpack.c.bf16 %v501, %v500
      %v525 = vpack.c.bf16 %v503, %v502
      %v526 = vpack.c.bf16 %v505, %v504
      %v527 = vpack.c.bf16 %v507, %v506
      %v528 = vpack.c.bf16 %v509, %v508
      %v529 = vpack.c.bf16 %v511, %v510
      %v530 = vpack.c.bf16 %v513, %v512
      %v531 = vpack.c.bf16 %v515, %v514
      %532 = vst [vmem:[#allocation3] sm:$0xff] %v516
      %533 = vst [vmem:[#allocation3 + $0x48] sm:$0xff] %v517
      %534 = vst [vmem:[#allocation3 + $0x90] sm:$0xff] %v518
      %535 = vst [vmem:[#allocation3 + $0xd8] sm:$0xff] %v519
      %536 = vst [vmem:[#allocation3 + $0x120] sm:$0xff] %v520
      %537 = vst [vmem:[#allocation3 + $0x168] sm:$0xff] %v521
      %538 = vst [vmem:[#allocation3 + $0x1b0] sm:$0xff] %v522
      %539 = vst [vmem:[#allocation3 + $0x1f8] sm:$0xff] %v523
      %540 = vst [vmem:[#allocation3 + $0x240] sm:$0xff] %v524
      %541 = vst [vmem:[#allocation3 + $0x288] sm:$0xff] %v525
      %542 = vst [vmem:[#allocation3 + $0x2d0] sm:$0xff] %v526
      %543 = vst [vmem:[#allocation3 + $0x318] sm:$0xff] %v527
      %544 = vst [vmem:[#allocation3 + $0x360] sm:$0xff] %v528
      %545 = vst [vmem:[#allocation3 + $0x3a8] sm:$0xff] %v529
      %546 = vst [vmem:[#allocation3 + $0x3f0] sm:$0xff] %v530
      %547 = vst [vmem:[#allocation3 + $0x438] sm:$0xff] %v531
      %v548 = vld [vmem:[#allocation2 + $0x1] sm:$0xff]
      %v549 = vld [vmem:[#allocation2 + $0x9] sm:$0xff]
      %v550 = vld [vmem:[#allocation2 + $0x19] sm:$0xff]
      %v551 = vld [vmem:[#allocation2 + $0x21] sm:$0xff]
      %v552 = vld [vmem:[#allocation2 + $0x31] sm:$0xff]
      %v553 = vld [vmem:[#allocation2 + $0x39] sm:$0xff]
      %v554 = vld [vmem:[#allocation2 + $0x49] sm:$0xff]
      %v555 = vld [vmem:[#allocation2 + $0x51] sm:$0xff]
      %v556 = vld [vmem:[#allocation2 + $0x61] sm:$0xff]
      %v557 = vld [vmem:[#allocation2 + $0x69] sm:$0xff]
      %v558 = vld [vmem:[#allocation2 + $0x79] sm:$0xff]
      %v559 = vld [vmem:[#allocation2 + $0x81] sm:$0xff]
      %v560 = vld [vmem:[#allocation2 + $0x91] sm:$0xff]
      %v561 = vld [vmem:[#allocation2 + $0x99] sm:$0xff]
      %v562 = vld [vmem:[#allocation2 + $0xa9] sm:$0xff]
      %v563 = vld [vmem:[#allocation2 + $0xb1] sm:$0xff]
      %v564 = vld [vmem:[#allocation2 + $0xc1] sm:$0xff]
      %v565 = vld [vmem:[#allocation2 + $0xc9] sm:$0xff]
      %v566 = vld [vmem:[#allocation2 + $0xd9] sm:$0xff]
      %v567 = vld [vmem:[#allocation2 + $0xe1] sm:$0xff]
      %v568 = vld [vmem:[#allocation2 + $0xf1] sm:$0xff]
      %v569 = vld [vmem:[#allocation2 + $0xf9] sm:$0xff]
      %v570 = vld [vmem:[#allocation2 + $0x109] sm:$0xff]
      %v571 = vld [vmem:[#allocation2 + $0x111] sm:$0xff]
      %v572 = vld [vmem:[#allocation2 + $0x121] sm:$0xff]
      %v573 = vld [vmem:[#allocation2 + $0x129] sm:$0xff]
      %v574 = vld [vmem:[#allocation2 + $0x139] sm:$0xff]
      %v575 = vld [vmem:[#allocation2 + $0x141] sm:$0xff]
      %v576 = vld [vmem:[#allocation2 + $0x151] sm:$0xff]
      %v577 = vld [vmem:[#allocation2 + $0x159] sm:$0xff]
      %v578 = vld [vmem:[#allocation2 + $0x169] sm:$0xff]
      %v579 = vld [vmem:[#allocation2 + $0x171] sm:$0xff]
      %v580 = vpack.c.bf16 %v549, %v548
      %v581 = vpack.c.bf16 %v551, %v550
      %v582 = vpack.c.bf16 %v553, %v552
      %v583 = vpack.c.bf16 %v555, %v554
      %v584 = vpack.c.bf16 %v557, %v556
      %v585 = vpack.c.bf16 %v559, %v558
      %v586 = vpack.c.bf16 %v561, %v560
      %v587 = vpack.c.bf16 %v563, %v562
      %v588 = vpack.c.bf16 %v565, %v564
      %v589 = vpack.c.bf16 %v567, %v566
      %v590 = vpack.c.bf16 %v569, %v568
      %v591 = vpack.c.bf16 %v571, %v570
      %v592 = vpack.c.bf16 %v573, %v572
      %v593 = vpack.c.bf16 %v575, %v574
      %v594 = vpack.c.bf16 %v577, %v576
      %v595 = vpack.c.bf16 %v579, %v578
      %596 = vst [vmem:[#allocation3 + $0x8] sm:$0xff] %v580
      %597 = vst [vmem:[#allocation3 + $0x50] sm:$0xff] %v581
      %598 = vst [vmem:[#allocation3 + $0x98] sm:$0xff] %v582
      %599 = vst [vmem:[#allocation3 + $0xe0] sm:$0xff] %v583
      %600 = vst [vmem:[#allocation3 + $0x128] sm:$0xff] %v584
      %601 = vst [vmem:[#allocation3 + $0x170] sm:$0xff] %v585
      %602 = vst [vmem:[#allocation3 + $0x1b8] sm:$0xff] %v586
      %603 = vst [vmem:[#allocation3 + $0x200] sm:$0xff] %v587
      %604 = vst [vmem:[#allocation3 + $0x248] sm:$0xff] %v588
      %605 = vst [vmem:[#allocation3 + $0x290] sm:$0xff] %v589
      %606 = vst [vmem:[#allocation3 + $0x2d8] sm:$0xff] %v590
      %607 = vst [vmem:[#allocation3 + $0x320] sm:$0xff] %v591
      %608 = vst [vmem:[#allocation3 + $0x368] sm:$0xff] %v592
      %609 = vst [vmem:[#allocation3 + $0x3b0] sm:$0xff] %v593
      %610 = vst [vmem:[#allocation3 + $0x3f8] sm:$0xff] %v594
      %611 = vst [vmem:[#allocation3 + $0x440] sm:$0xff] %v595
      %v612 = vld [vmem:[#allocation2 + $0x2] sm:$0xff]
      %v613 = vld [vmem:[#allocation2 + $0xa] sm:$0xff]
      %v614 = vld [vmem:[#allocation2 + $0x1a] sm:$0xff]
      %v615 = vld [vmem:[#allocation2 + $0x22] sm:$0xff]
      %v616 = vld [vmem:[#allocation2 + $0x32] sm:$0xff]
      %v617 = vld [vmem:[#allocation2 + $0x3a] sm:$0xff]
      %v618 = vld [vmem:[#allocation2 + $0x4a] sm:$0xff]
      %v619 = vld [vmem:[#allocation2 + $0x52] sm:$0xff]
      %v620 = vld [vmem:[#allocation2 + $0x62] sm:$0xff]
      %v621 = vld [vmem:[#allocation2 + $0x6a] sm:$0xff]
      %v622 = vld [vmem:[#allocation2 + $0x7a] sm:$0xff]
      %v623 = vld [vmem:[#allocation2 + $0x82] sm:$0xff]
      %v624 = vld [vmem:[#allocation2 + $0x92] sm:$0xff]
      %v625 = vld [vmem:[#allocation2 + $0x9a] sm:$0xff]
      %v626 = vld [vmem:[#allocation2 + $0xaa] sm:$0xff]
      %v627 = vld [vmem:[#allocation2 + $0xb2] sm:$0xff]
      %v628 = vld [vmem:[#allocation2 + $0xc2] sm:$0xff]
      %v629 = vld [vmem:[#allocation2 + $0xca] sm:$0xff]
      %v630 = vld [vmem:[#allocation2 + $0xda] sm:$0xff]
      %v631 = vld [vmem:[#allocation2 + $0xe2] sm:$0xff]
      %v632 = vld [vmem:[#allocation2 + $0xf2] sm:$0xff]
      %v633 = vld [vmem:[#allocation2 + $0xfa] sm:$0xff]
      %v634 = vld [vmem:[#allocation2 + $0x10a] sm:$0xff]
      %v635 = vld [vmem:[#allocation2 + $0x112] sm:$0xff]
      %v636 = vld [vmem:[#allocation2 + $0x122] sm:$0xff]
      %v637 = vld [vmem:[#allocation2 + $0x12a] sm:$0xff]
      %v638 = vld [vmem:[#allocation2 + $0x13a] sm:$0xff]
      %v639 = vld [vmem:[#allocation2 + $0x142] sm:$0xff]
      %v640 = vld [vmem:[#allocation2 + $0x152] sm:$0xff]
      %v641 = vld [vmem:[#allocation2 + $0x15a] sm:$0xff]
      %v642 = vld [vmem:[#allocation2 + $0x16a] sm:$0xff]
      %v643 = vld [vmem:[#allocation2 + $0x172] sm:$0xff]
      %v644 = vpack.c.bf16 %v613, %v612
      %v645 = vpack.c.bf16 %v615, %v614
      %v646 = vpack.c.bf16 %v617, %v616
      %v647 = vpack.c.bf16 %v619, %v618
      %v648 = vpack.c.bf16 %v621, %v620
      %v649 = vpack.c.bf16 %v623, %v622
      %v650 = vpack.c.bf16 %v625, %v624
      %v651 = vpack.c.bf16 %v627, %v626
      %v652 = vpack.c.bf16 %v629, %v628
      %v653 = vpack.c.bf16 %v631, %v630
      %v654 = vpack.c.bf16 %v633, %v632
      %v655 = vpack.c.bf16 %v635, %v634
      %v656 = vpack.c.bf16 %v637, %v636
      %v657 = vpack.c.bf16 %v639, %v638
      %v658 = vpack.c.bf16 %v641, %v640
      %v659 = vpack.c.bf16 %v643, %v642
      %660 = vst [vmem:[#allocation3 + $0x10] sm:$0xff] %v644
      %661 = vst [vmem:[#allocation3 + $0x58] sm:$0xff] %v645
      %662 = vst [vmem:[#allocation3 + $0xa0] sm:$0xff] %v646
      %663 = vst [vmem:[#allocation3 + $0xe8] sm:$0xff] %v647
      %664 = vst [vmem:[#allocation3 + $0x130] sm:$0xff] %v648
      %665 = vst [vmem:[#allocation3 + $0x178] sm:$0xff] %v649
      %666 = vst [vmem:[#allocation3 + $0x1c0] sm:$0xff] %v650
      %667 = vst [vmem:[#allocation3 + $0x208] sm:$0xff] %v651
      %668 = vst [vmem:[#allocation3 + $0x250] sm:$0xff] %v652
      %669 = vst [vmem:[#allocation3 + $0x298] sm:$0xff] %v653
      %670 = vst [vmem:[#allocation3 + $0x2e0] sm:$0xff] %v654
      %671 = vst [vmem:[#allocation3 + $0x328] sm:$0xff] %v655
      %672 = vst [vmem:[#allocation3 + $0x370] sm:$0xff] %v656
      %673 = vst [vmem:[#allocation3 + $0x3b8] sm:$0xff] %v657
      %674 = vst [vmem:[#allocation3 + $0x400] sm:$0xff] %v658
      %675 = vst [vmem:[#allocation3 + $0x448] sm:$0xff] %v659
      %v676 = vld [vmem:[%s419] sm:$0xff]
      %v677 = vld [vmem:[%s419 + $0x8] sm:$0xff]
      %v678 = vld [vmem:[%s419 + $0x18] sm:$0xff]
      %v679 = vld [vmem:[%s419 + $0x20] sm:$0xff]
      %v680 = vld [vmem:[%s419 + $0x30] sm:$0xff]
      %v681 = vld [vmem:[%s419 + $0x38] sm:$0xff]
      %v682 = vld [vmem:[%s419 + $0x48] sm:$0xff]
      %v683 = vld [vmem:[%s419 + $0x50] sm:$0xff]
      %v684 = vld [vmem:[%s419 + $0x60] sm:$0xff]
      %v685 = vld [vmem:[%s419 + $0x68] sm:$0xff]
      %v686 = vld [vmem:[%s419 + $0x78] sm:$0xff]
      %v687 = vld [vmem:[%s419 + $0x80] sm:$0xff]
      %v688 = vld [vmem:[%s419 + $0x90] sm:$0xff]
      %v689 = vld [vmem:[%s419 + $0x98] sm:$0xff]
      %v690 = vld [vmem:[%s419 + $0xa8] sm:$0xff]
      %v691 = vld [vmem:[%s419 + $0xb0] sm:$0xff]
      %v692 = vld [vmem:[%s419 + $0xc0] sm:$0xff]
      %v693 = vld [vmem:[%s419 + $0xc8] sm:$0xff]
      %v694 = vld [vmem:[%s419 + $0xd8] sm:$0xff]
      %v695 = vld [vmem:[%s419 + $0xe0] sm:$0xff]
      %v696 = vld [vmem:[%s419 + $0xf0] sm:$0xff]
      %v697 = vld [vmem:[%s419 + $0xf8] sm:$0xff]
      %v698 = vld [vmem:[%s419 + $0x108] sm:$0xff]
      %v699 = vld [vmem:[%s419 + $0x110] sm:$0xff]
      %v700 = vld [vmem:[%s419 + $0x120] sm:$0xff]
      %v701 = vld [vmem:[%s419 + $0x128] sm:$0xff]
      %v702 = vld [vmem:[%s419 + $0x138] sm:$0xff]
      %v703 = vld [vmem:[%s419 + $0x140] sm:$0xff]
      %v704 = vld [vmem:[%s419 + $0x150] sm:$0xff]
      %v705 = vld [vmem:[%s419 + $0x158] sm:$0xff]
      %v706 = vld [vmem:[%s419 + $0x168] sm:$0xff]
      %v707 = vld [vmem:[%s419 + $0x170] sm:$0xff]
      %v708 = vpack.c.bf16 %v677, %v676
      %v709 = vpack.c.bf16 %v679, %v678
      %v710 = vpack.c.bf16 %v681, %v680
      %v711 = vpack.c.bf16 %v683, %v682
      %v712 = vpack.c.bf16 %v685, %v684
      %v713 = vpack.c.bf16 %v687, %v686
      %v714 = vpack.c.bf16 %v689, %v688
      %v715 = vpack.c.bf16 %v691, %v690
      %v716 = vpack.c.bf16 %v693, %v692
      %v717 = vpack.c.bf16 %v695, %v694
      %v718 = vpack.c.bf16 %v697, %v696
      %v719 = vpack.c.bf16 %v699, %v698
      %v720 = vpack.c.bf16 %v701, %v700
      %v721 = vpack.c.bf16 %v703, %v702
      %v722 = vpack.c.bf16 %v705, %v704
      %v723 = vpack.c.bf16 %v707, %v706
      %724 = vst [vmem:[#allocation3 + $0x18] sm:$0xff] %v708
      %725 = vst [vmem:[#allocation3 + $0x60] sm:$0xff] %v709
      %726 = vst [vmem:[#allocation3 + $0xa8] sm:$0xff] %v710
      %727 = vst [vmem:[#allocation3 + $0xf0] sm:$0xff] %v711
      %728 = vst [vmem:[#allocation3 + $0x138] sm:$0xff] %v712
      %729 = vst [vmem:[#allocation3 + $0x180] sm:$0xff] %v713
      %730 = vst [vmem:[#allocation3 + $0x1c8] sm:$0xff] %v714
      %731 = vst [vmem:[#allocation3 + $0x210] sm:$0xff] %v715
      %732 = vst [vmem:[#allocation3 + $0x258] sm:$0xff] %v716
      %733 = vst [vmem:[#allocation3 + $0x2a0] sm:$0xff] %v717
      %734 = vst [vmem:[#allocation3 + $0x2e8] sm:$0xff] %v718
      %735 = vst [vmem:[#allocation3 + $0x330] sm:$0xff] %v719
      %736 = vst [vmem:[#allocation3 + $0x378] sm:$0xff] %v720
      %737 = vst [vmem:[#allocation3 + $0x3c0] sm:$0xff] %v721
      %738 = vst [vmem:[#allocation3 + $0x408] sm:$0xff] %v722
      %739 = vst [vmem:[#allocation3 + $0x450] sm:$0xff] %v723
      %v740 = vld [vmem:[%s419 + $0x1] sm:$0xff]
      %v741 = vld [vmem:[%s419 + $0x9] sm:$0xff]
      %v742 = vld [vmem:[%s419 + $0x19] sm:$0xff]
      %v743 = vld [vmem:[%s419 + $0x21] sm:$0xff]
      %v744 = vld [vmem:[%s419 + $0x31] sm:$0xff]
      %v745 = vld [vmem:[%s419 + $0x39] sm:$0xff]
      %v746 = vld [vmem:[%s419 + $0x49] sm:$0xff]
      %v747 = vld [vmem:[%s419 + $0x51] sm:$0xff]
      %v748 = vld [vmem:[%s419 + $0x61] sm:$0xff]
      %v749 = vld [vmem:[%s419 + $0x69] sm:$0xff]
      %v750 = vld [vmem:[%s419 + $0x79] sm:$0xff]
      %v751 = vld [vmem:[%s419 + $0x81] sm:$0xff]
      %v752 = vld [vmem:[%s419 + $0x91] sm:$0xff]
      %v753 = vld [vmem:[%s419 + $0x99] sm:$0xff]
      %v754 = vld [vmem:[%s419 + $0xa9] sm:$0xff]
      %v755 = vld [vmem:[%s419 + $0xb1] sm:$0xff]
      %v756 = vld [vmem:[%s419 + $0xc1] sm:$0xff]
      %v757 = vld [vmem:[%s419 + $0xc9] sm:$0xff]
      %v758 = vld [vmem:[%s419 + $0xd9] sm:$0xff]
      %v759 = vld [vmem:[%s419 + $0xe1] sm:$0xff]
      %v760 = vld [vmem:[%s419 + $0xf1] sm:$0xff]
      %v761 = vld [vmem:[%s419 + $0xf9] sm:$0xff]
      %v762 = vld [vmem:[%s419 + $0x109] sm:$0xff]
      %v763 = vld [vmem:[%s419 + $0x111] sm:$0xff]
      %v764 = vld [vmem:[%s419 + $0x121] sm:$0xff]
      %v765 = vld [vmem:[%s419 + $0x129] sm:$0xff]
      %v766 = vld [vmem:[%s419 + $0x139] sm:$0xff]
      %v767 = vld [vmem:[%s419 + $0x141] sm:$0xff]
      %v768 = vld [vmem:[%s419 + $0x151] sm:$0xff]
      %v769 = vld [vmem:[%s419 + $0x159] sm:$0xff]
      %v770 = vld [vmem:[%s419 + $0x169] sm:$0xff]
      %v771 = vld [vmem:[%s419 + $0x171] sm:$0xff]
      %v772 = vpack.c.bf16 %v741, %v740
      %v773 = vpack.c.bf16 %v743, %v742
      %v774 = vpack.c.bf16 %v745, %v744
      %v775 = vpack.c.bf16 %v747, %v746
      %v776 = vpack.c.bf16 %v749, %v748
      %v777 = vpack.c.bf16 %v751, %v750
      %v778 = vpack.c.bf16 %v753, %v752
      %v779 = vpack.c.bf16 %v755, %v754
      %v780 = vpack.c.bf16 %v757, %v756
      %v781 = vpack.c.bf16 %v759, %v758
      %v782 = vpack.c.bf16 %v761, %v760
      %v783 = vpack.c.bf16 %v763, %v762
      %v784 = vpack.c.bf16 %v765, %v764
      %v785 = vpack.c.bf16 %v767, %v766
      %v786 = vpack.c.bf16 %v769, %v768
      %v787 = vpack.c.bf16 %v771, %v770
      %788 = vst [vmem:[#allocation3 + $0x20] sm:$0xff] %v772
      %789 = vst [vmem:[#allocation3 + $0x68] sm:$0xff] %v773
      %790 = vst [vmem:[#allocation3 + $0xb0] sm:$0xff] %v774
      %791 = vst [vmem:[#allocation3 + $0xf8] sm:$0xff] %v775
      %792 = vst [vmem:[#allocation3 + $0x140] sm:$0xff] %v776
      %793 = vst [vmem:[#allocation3 + $0x188] sm:$0xff] %v777
      %794 = vst [vmem:[#allocation3 + $0x1d0] sm:$0xff] %v778
      %795 = vst [vmem:[#allocation3 + $0x218] sm:$0xff] %v779
      %796 = vst [vmem:[#allocation3 + $0x260] sm:$0xff] %v780
      %797 = vst [vmem:[#allocation3 + $0x2a8] sm:$0xff] %v781
      %798 = vst [vmem:[#allocation3 + $0x2f0] sm:$0xff] %v782
      %799 = vst [vmem:[#allocation3 + $0x338] sm:$0xff] %v783
      %800 = vst [vmem:[#allocation3 + $0x380] sm:$0xff] %v784
      %801 = vst [vmem:[#allocation3 + $0x3c8] sm:$0xff] %v785
      %802 = vst [vmem:[#allocation3 + $0x410] sm:$0xff] %v786
      %803 = vst [vmem:[#allocation3 + $0x458] sm:$0xff] %v787
      %v804 = vld [vmem:[%s419 + $0x2] sm:$0xff]
      %v805 = vld [vmem:[%s419 + $0xa] sm:$0xff]
      %v806 = vld [vmem:[%s419 + $0x1a] sm:$0xff]
      %v807 = vld [vmem:[%s419 + $0x22] sm:$0xff]
      %v808 = vld [vmem:[%s419 + $0x32] sm:$0xff]
      %v809 = vld [vmem:[%s419 + $0x3a] sm:$0xff]
      %v810 = vld [vmem:[%s419 + $0x4a] sm:$0xff]
      %v811 = vld [vmem:[%s419 + $0x52] sm:$0xff]
      %v812 = vld [vmem:[%s419 + $0x62] sm:$0xff]
      %v813 = vld [vmem:[%s419 + $0x6a] sm:$0xff]
      %v814 = vld [vmem:[%s419 + $0x7a] sm:$0xff]
      %v815 = vld [vmem:[%s419 + $0x82] sm:$0xff]
      %v816 = vld [vmem:[%s419 + $0x92] sm:$0xff]
      %v817 = vld [vmem:[%s419 + $0x9a] sm:$0xff]
      %v818 = vld [vmem:[%s419 + $0xaa] sm:$0xff]
      %v819 = vld [vmem:[%s419 + $0xb2] sm:$0xff]
      %v820 = vld [vmem:[%s419 + $0xc2] sm:$0xff]
      %v821 = vld [vmem:[%s419 + $0xca] sm:$0xff]
      %v822 = vld [vmem:[%s419 + $0xda] sm:$0xff]
      %v823 = vld [vmem:[%s419 + $0xe2] sm:$0xff]
      %v824 = vld [vmem:[%s419 + $0xf2] sm:$0xff]
      %v825 = vld [vmem:[%s419 + $0xfa] sm:$0xff]
      %v826 = vld [vmem:[%s419 + $0x10a] sm:$0xff]
      %v827 = vld [vmem:[%s419 + $0x112] sm:$0xff]
      %v828 = vld [vmem:[%s419 + $0x122] sm:$0xff]
      %v829 = vld [vmem:[%s419 + $0x12a] sm:$0xff]
      %v830 = vld [vmem:[%s419 + $0x13a] sm:$0xff]
      %v831 = vld [vmem:[%s419 + $0x142] sm:$0xff]
      %v832 = vld [vmem:[%s419 + $0x152] sm:$0xff]
      %v833 = vld [vmem:[%s419 + $0x15a] sm:$0xff]
      %v834 = vld [vmem:[%s419 + $0x16a] sm:$0xff]
      %v835 = vld [vmem:[%s419 + $0x172] sm:$0xff]
      %v836 = vpack.c.bf16 %v805, %v804
      %v837 = vpack.c.bf16 %v807, %v806
      %v838 = vpack.c.bf16 %v809, %v808
      %v839 = vpack.c.bf16 %v811, %v810
      %v840 = vpack.c.bf16 %v813, %v812
      %v841 = vpack.c.bf16 %v815, %v814
      %v842 = vpack.c.bf16 %v817, %v816
      %v843 = vpack.c.bf16 %v819, %v818
      %v844 = vpack.c.bf16 %v821, %v820
      %v845 = vpack.c.bf16 %v823, %v822
      %v846 = vpack.c.bf16 %v825, %v824
      %v847 = vpack.c.bf16 %v827, %v826
      %v848 = vpack.c.bf16 %v829, %v828
      %v849 = vpack.c.bf16 %v831, %v830
      %v850 = vpack.c.bf16 %v833, %v832
      %v851 = vpack.c.bf16 %v835, %v834
      %852 = vst [vmem:[#allocation3 + $0x28] sm:$0xff] %v836
      %853 = vst [vmem:[#allocation3 + $0x70] sm:$0xff] %v837
      %854 = vst [vmem:[#allocation3 + $0xb8] sm:$0xff] %v838
      %855 = vst [vmem:[#allocation3 + $0x100] sm:$0xff] %v839
      %856 = vst [vmem:[#allocation3 + $0x148] sm:$0xff] %v840
      %857 = vst [vmem:[#allocation3 + $0x190] sm:$0xff] %v841
      %858 = vst [vmem:[#allocation3 + $0x1d8] sm:$0xff] %v842
      %859 = vst [vmem:[#allocation3 + $0x220] sm:$0xff] %v843
      %860 = vst [vmem:[#allocation3 + $0x268] sm:$0xff] %v844
      %861 = vst [vmem:[#allocation3 + $0x2b0] sm:$0xff] %v845
      %862 = vst [vmem:[#allocation3 + $0x2f8] sm:$0xff] %v846
      %863 = vst [vmem:[#allocation3 + $0x340] sm:$0xff] %v847
      %864 = vst [vmem:[#allocation3 + $0x388] sm:$0xff] %v848
      %865 = vst [vmem:[#allocation3 + $0x3d0] sm:$0xff] %v849
      %866 = vst [vmem:[#allocation3 + $0x418] sm:$0xff] %v850
      %867 = vst [vmem:[#allocation3 + $0x460] sm:$0xff] %v851
      %s868 = scalar_lea.vmem [#allocation2], 48
      %v869 = vld [vmem:[%s868] sm:$0xff]
      %v870 = vld [vmem:[%s868 + $0x8] sm:$0xff]
      %v871 = vld [vmem:[%s868 + $0x18] sm:$0xff]
      %v872 = vld [vmem:[%s868 + $0x20] sm:$0xff]
      %v873 = vld [vmem:[%s868 + $0x30] sm:$0xff]
      %v874 = vld [vmem:[%s868 + $0x38] sm:$0xff]
      %v875 = vld [vmem:[%s868 + $0x48] sm:$0xff]
      %v876 = vld [vmem:[%s868 + $0x50] sm:$0xff]
      %v877 = vld [vmem:[%s868 + $0x60] sm:$0xff]
      %v878 = vld [vmem:[%s868 + $0x68] sm:$0xff]
      %v879 = vld [vmem:[%s868 + $0x78] sm:$0xff]
      %v880 = vld [vmem:[%s868 + $0x80] sm:$0xff]
      %v881 = vld [vmem:[%s868 + $0x90] sm:$0xff]
      %v882 = vld [vmem:[%s868 + $0x98] sm:$0xff]
      %v883 = vld [vmem:[%s868 + $0xa8] sm:$0xff]
      %v884 = vld [vmem:[%s868 + $0xb0] sm:$0xff]
      %v885 = vld [vmem:[%s868 + $0xc0] sm:$0xff]
      %v886 = vld [vmem:[%s868 + $0xc8] sm:$0xff]
      %v887 = vld [vmem:[%s868 + $0xd8] sm:$0xff]
      %v888 = vld [vmem:[%s868 + $0xe0] sm:$0xff]
      %v889 = vld [vmem:[%s868 + $0xf0] sm:$0xff]
      %v890 = vld [vmem:[%s868 + $0xf8] sm:$0xff]
      %v891 = vld [vmem:[%s868 + $0x108] sm:$0xff]
      %v892 = vld [vmem:[%s868 + $0x110] sm:$0xff]
      %v893 = vld [vmem:[%s868 + $0x120] sm:$0xff]
      %v894 = vld [vmem:[%s868 + $0x128] sm:$0xff]
      %v895 = vld [vmem:[%s868 + $0x138] sm:$0xff]
      %v896 = vld [vmem:[%s868 + $0x140] sm:$0xff]
      %v897 = vld [vmem:[%s868 + $0x150] sm:$0xff]
      %v898 = vld [vmem:[%s868 + $0x158] sm:$0xff]
      %v899 = vld [vmem:[%s868 + $0x168] sm:$0xff]
      %v900 = vld [vmem:[%s868 + $0x170] sm:$0xff]
      %v901 = vpack.c.bf16 %v870, %v869
      %v902 = vpack.c.bf16 %v872, %v871
      %v903 = vpack.c.bf16 %v874, %v873
      %v904 = vpack.c.bf16 %v876, %v875
      %v905 = vpack.c.bf16 %v878, %v877
      %v906 = vpack.c.bf16 %v880, %v879
      %v907 = vpack.c.bf16 %v882, %v881
      %v908 = vpack.c.bf16 %v884, %v883
      %v909 = vpack.c.bf16 %v886, %v885
      %v910 = vpack.c.bf16 %v888, %v887
      %v911 = vpack.c.bf16 %v890, %v889
      %v912 = vpack.c.bf16 %v892, %v891
      %v913 = vpack.c.bf16 %v894, %v893
      %v914 = vpack.c.bf16 %v896, %v895
      %v915 = vpack.c.bf16 %v898, %v897
      %v916 = vpack.c.bf16 %v900, %v899
      %917 = vst [vmem:[#allocation3 + $0x30] sm:$0xff] %v901
      %918 = vst [vmem:[#allocation3 + $0x78] sm:$0xff] %v902
      %919 = vst [vmem:[#allocation3 + $0xc0] sm:$0xff] %v903
      %920 = vst [vmem:[#allocation3 + $0x108] sm:$0xff] %v904
      %921 = vst [vmem:[#allocation3 + $0x150] sm:$0xff] %v905
      %922 = vst [vmem:[#allocation3 + $0x198] sm:$0xff] %v906
      %923 = vst [vmem:[#allocation3 + $0x1e0] sm:$0xff] %v907
      %924 = vst [vmem:[#allocation3 + $0x228] sm:$0xff] %v908
      %925 = vst [vmem:[#allocation3 + $0x270] sm:$0xff] %v909
      %926 = vst [vmem:[#allocation3 + $0x2b8] sm:$0xff] %v910
      %927 = vst [vmem:[#allocation3 + $0x300] sm:$0xff] %v911
      %928 = vst [vmem:[#allocation3 + $0x348] sm:$0xff] %v912
      %929 = vst [vmem:[#allocation3 + $0x390] sm:$0xff] %v913
      %930 = vst [vmem:[#allocation3 + $0x3d8] sm:$0xff] %v914
      %931 = vst [vmem:[#allocation3 + $0x420] sm:$0xff] %v915
      %932 = vst [vmem:[#allocation3 + $0x468] sm:$0xff] %v916
      %v933 = vld [vmem:[%s868 + $0x1] sm:$0xff]
      %v934 = vld [vmem:[%s868 + $0x9] sm:$0xff]
      %v935 = vld [vmem:[%s868 + $0x19] sm:$0xff]
      %v936 = vld [vmem:[%s868 + $0x21] sm:$0xff]
      %v937 = vld [vmem:[%s868 + $0x31] sm:$0xff]
      %v938 = vld [vmem:[%s868 + $0x39] sm:$0xff]
      %v939 = vld [vmem:[%s868 + $0x49] sm:$0xff]
      %v940 = vld [vmem:[%s868 + $0x51] sm:$0xff]
      %v941 = vld [vmem:[%s868 + $0x61] sm:$0xff]
      %v942 = vld [vmem:[%s868 + $0x69] sm:$0xff]
      %v943 = vld [vmem:[%s868 + $0x79] sm:$0xff]
      %v944 = vld [vmem:[%s868 + $0x81] sm:$0xff]
      %v945 = vld [vmem:[%s868 + $0x91] sm:$0xff]
      %v946 = vld [vmem:[%s868 + $0x99] sm:$0xff]
      %v947 = vld [vmem:[%s868 + $0xa9] sm:$0xff]
      %v948 = vld [vmem:[%s868 + $0xb1] sm:$0xff]
      %v949 = vld [vmem:[%s868 + $0xc1] sm:$0xff]
      %v950 = vld [vmem:[%s868 + $0xc9] sm:$0xff]
      %v951 = vld [vmem:[%s868 + $0xd9] sm:$0xff]
      %v952 = vld [vmem:[%s868 + $0xe1] sm:$0xff]
      %v953 = vld [vmem:[%s868 + $0xf1] sm:$0xff]
      %v954 = vld [vmem:[%s868 + $0xf9] sm:$0xff]
      %v955 = vld [vmem:[%s868 + $0x109] sm:$0xff]
      %v956 = vld [vmem:[%s868 + $0x111] sm:$0xff]
      %v957 = vld [vmem:[%s868 + $0x121] sm:$0xff]
      %v958 = vld [vmem:[%s868 + $0x129] sm:$0xff]
      %v959 = vld [vmem:[%s868 + $0x139] sm:$0xff]
      %v960 = vld [vmem:[%s868 + $0x141] sm:$0xff]
      %v961 = vld [vmem:[%s868 + $0x151] sm:$0xff]
      %v962 = vld [vmem:[%s868 + $0x159] sm:$0xff]
      %v963 = vld [vmem:[%s868 + $0x169] sm:$0xff]
      %v964 = vld [vmem:[%s868 + $0x171] sm:$0xff]
      %v965 = vpack.c.bf16 %v934, %v933
      %v966 = vpack.c.bf16 %v936, %v935
      %v967 = vpack.c.bf16 %v938, %v937
      %v968 = vpack.c.bf16 %v940, %v939
      %v969 = vpack.c.bf16 %v942, %v941
      %v970 = vpack.c.bf16 %v944, %v943
      %v971 = vpack.c.bf16 %v946, %v945
      %v972 = vpack.c.bf16 %v948, %v947
      %v973 = vpack.c.bf16 %v950, %v949
      %v974 = vpack.c.bf16 %v952, %v951
      %v975 = vpack.c.bf16 %v954, %v953
      %v976 = vpack.c.bf16 %v956, %v955
      %v977 = vpack.c.bf16 %v958, %v957
      %v978 = vpack.c.bf16 %v960, %v959
      %v979 = vpack.c.bf16 %v962, %v961
      %v980 = vpack.c.bf16 %v964, %v963
      %981 = vst [vmem:[#allocation3 + $0x38] sm:$0xff] %v965
      %982 = vst [vmem:[#allocation3 + $0x80] sm:$0xff] %v966
      %983 = vst [vmem:[#allocation3 + $0xc8] sm:$0xff] %v967
      %984 = vst [vmem:[#allocation3 + $0x110] sm:$0xff] %v968
      %985 = vst [vmem:[#allocation3 + $0x158] sm:$0xff] %v969
      %986 = vst [vmem:[#allocation3 + $0x1a0] sm:$0xff] %v970
      %987 = vst [vmem:[#allocation3 + $0x1e8] sm:$0xff] %v971
      %988 = vst [vmem:[#allocation3 + $0x230] sm:$0xff] %v972
      %989 = vst [vmem:[#allocation3 + $0x278] sm:$0xff] %v973
      %990 = vst [vmem:[#allocation3 + $0x2c0] sm:$0xff] %v974
      %991 = vst [vmem:[#allocation3 + $0x308] sm:$0xff] %v975
      %992 = vst [vmem:[#allocation3 + $0x350] sm:$0xff] %v976
      %993 = vst [vmem:[#allocation3 + $0x398] sm:$0xff] %v977
      %994 = vst [vmem:[#allocation3 + $0x3e0] sm:$0xff] %v978
      %995 = vst [vmem:[#allocation3 + $0x428] sm:$0xff] %v979
      %996 = vst [vmem:[#allocation3 + $0x470] sm:$0xff] %v980
      %v997 = vld [vmem:[%s868 + $0x2] sm:$0xff]
      %v998 = vld [vmem:[%s868 + $0xa] sm:$0xff]
      %v999 = vld [vmem:[%s868 + $0x1a] sm:$0xff]
      %v1000 = vld [vmem:[%s868 + $0x22] sm:$0xff]
      %v1001 = vld [vmem:[%s868 + $0x32] sm:$0xff]
      %v1002 = vld [vmem:[%s868 + $0x3a] sm:$0xff]
      %v1003 = vld [vmem:[%s868 + $0x4a] sm:$0xff]
      %v1004 = vld [vmem:[%s868 + $0x52] sm:$0xff]
      %v1005 = vld [vmem:[%s868 + $0x62] sm:$0xff]
      %v1006 = vld [vmem:[%s868 + $0x6a] sm:$0xff]
      %v1007 = vld [vmem:[%s868 + $0x7a] sm:$0xff]
      %v1008 = vld [vmem:[%s868 + $0x82] sm:$0xff]
      %v1009 = vld [vmem:[%s868 + $0x92] sm:$0xff]
      %v1010 = vld [vmem:[%s868 + $0x9a] sm:$0xff]
      %v1011 = vld [vmem:[%s868 + $0xaa] sm:$0xff]
      %v1012 = vld [vmem:[%s868 + $0xb2] sm:$0xff]
      %v1013 = vld [vmem:[%s868 + $0xc2] sm:$0xff]
      %v1014 = vld [vmem:[%s868 + $0xca] sm:$0xff]
      %v1015 = vld [vmem:[%s868 + $0xda] sm:$0xff]
      %v1016 = vld [vmem:[%s868 + $0xe2] sm:$0xff]
      %v1017 = vld [vmem:[%s868 + $0xf2] sm:$0xff]
      %v1018 = vld [vmem:[%s868 + $0xfa] sm:$0xff]
      %v1019 = vld [vmem:[%s868 + $0x10a] sm:$0xff]
      %v1020 = vld [vmem:[%s868 + $0x112] sm:$0xff]
      %v1021 = vld [vmem:[%s868 + $0x122] sm:$0xff]
      %v1022 = vld [vmem:[%s868 + $0x12a] sm:$0xff]
      %v1023 = vld [vmem:[%s868 + $0x13a] sm:$0xff]
      %v1024 = vld [vmem:[%s868 + $0x142] sm:$0xff]
      %v1025 = vld [vmem:[%s868 + $0x152] sm:$0xff]
      %v1026 = vld [vmem:[%s868 + $0x15a] sm:$0xff]
      %v1027 = vld [vmem:[%s868 + $0x16a] sm:$0xff]
      %v1028 = vld [vmem:[%s868 + $0x172] sm:$0xff]
      %v1029 = vpack.c.bf16 %v998, %v997
      %v1030 = vpack.c.bf16 %v1000, %v999
      %v1031 = vpack.c.bf16 %v1002, %v1001
      %v1032 = vpack.c.bf16 %v1004, %v1003
      %v1033 = vpack.c.bf16 %v1006, %v1005
      %v1034 = vpack.c.bf16 %v1008, %v1007
      %v1035 = vpack.c.bf16 %v1010, %v1009
      %v1036 = vpack.c.bf16 %v1012, %v1011
      %v1037 = vpack.c.bf16 %v1014, %v1013
      %v1038 = vpack.c.bf16 %v1016, %v1015
      %v1039 = vpack.c.bf16 %v1018, %v1017
      %v1040 = vpack.c.bf16 %v1020, %v1019
      %v1041 = vpack.c.bf16 %v1022, %v1021
      %v1042 = vpack.c.bf16 %v1024, %v1023
      %v1043 = vpack.c.bf16 %v1026, %v1025
      %v1044 = vpack.c.bf16 %v1028, %v1027
      %1045 = vst [vmem:[#allocation3 + $0x40] sm:$0xff] %v1029
      %1046 = vst [vmem:[#allocation3 + $0x88] sm:$0xff] %v1030
      %1047 = vst [vmem:[#allocation3 + $0xd0] sm:$0xff] %v1031
      %1048 = vst [vmem:[#allocation3 + $0x118] sm:$0xff] %v1032
      %1049 = vst [vmem:[#allocation3 + $0x160] sm:$0xff] %v1033
      %1050 = vst [vmem:[#allocation3 + $0x1a8] sm:$0xff] %v1034
      %1051 = vst [vmem:[#allocation3 + $0x1f0] sm:$0xff] %v1035
      %1052 = vst [vmem:[#allocation3 + $0x238] sm:$0xff] %v1036
      %1053 = vst [vmem:[#allocation3 + $0x280] sm:$0xff] %v1037
      %1054 = vst [vmem:[#allocation3 + $0x2c8] sm:$0xff] %v1038
      %1055 = vst [vmem:[#allocation3 + $0x310] sm:$0xff] %v1039
      %1056 = vst [vmem:[#allocation3 + $0x358] sm:$0xff] %v1040
      %1057 = vst [vmem:[#allocation3 + $0x3a0] sm:$0xff] %v1041
      %1058 = vst [vmem:[#allocation3 + $0x3e8] sm:$0xff] %v1042
      %1059 = vst [vmem:[#allocation3 + $0x430] sm:$0xff] %v1043
      %1060 = vst [vmem:[#allocation3 + $0x478] sm:$0xff] %v1044
      %v1061 = vld [vmem:[#allocation3] sm:$0xff]
      %v1062 = vld [vmem:[#allocation3 + $0x8] sm:$0xff]
      %v1063 = vld [vmem:[#allocation3 + $0x10] sm:$0xff]
      %v1064 = vld [vmem:[#allocation3 + $0x18] sm:$0xff]
      %v1065 = vld [vmem:[#allocation3 + $0x20] sm:$0xff]
      %v1066 = vld [vmem:[#allocation3 + $0x28] sm:$0xff]
      %v1067 = vld [vmem:[#allocation3 + $0x30] sm:$0xff]
      %v1068 = vld [vmem:[#allocation3 + $0x38] sm:$0xff]
      %v1069 = vld [vmem:[#allocation3 + $0x40] sm:$0xff]
      %v1070 = vld [vmem:[#allocation3 + $0x48] sm:$0xff]
      %v1071 = vld [vmem:[#allocation3 + $0x50] sm:$0xff]
      %v1072 = vld [vmem:[#allocation3 + $0x58] sm:$0xff]
      %v1073 = vld [vmem:[#allocation3 + $0x60] sm:$0xff]
      %v1074 = vld [vmem:[#allocation3 + $0x68] sm:$0xff]
      %v1075 = vld [vmem:[#allocation3 + $0x70] sm:$0xff]
      %v1076 = vld [vmem:[#allocation3 + $0x78] sm:$0xff]
      %v1077 = vld [vmem:[#allocation3 + $0x80] sm:$0xff]
      %v1078 = vld [vmem:[#allocation3 + $0x88] sm:$0xff]
      %v1079 = vld [vmem:[#allocation3 + $0x90] sm:$0xff]
      %v1080 = vld [vmem:[#allocation3 + $0x98] sm:$0xff]
      %v1081 = vld [vmem:[#allocation3 + $0xa0] sm:$0xff]
      %v1082 = vld [vmem:[#allocation3 + $0xa8] sm:$0xff]
      %v1083 = vld [vmem:[#allocation3 + $0xb0] sm:$0xff]
      %v1084 = vld [vmem:[#allocation3 + $0xb8] sm:$0xff]
      %v1085 = vld [vmem:[#allocation3 + $0xc0] sm:$0xff]
      %v1086 = vld [vmem:[#allocation3 + $0xc8] sm:$0xff]
      %v1087 = vld [vmem:[#allocation3 + $0xd0] sm:$0xff]
      %v1088 = vld [vmem:[#allocation3 + $0xd8] sm:$0xff]
      %v1089 = vld [vmem:[#allocation3 + $0xe0] sm:$0xff]
      %v1090 = vld [vmem:[#allocation3 + $0xe8] sm:$0xff]
      %v1091 = vld [vmem:[#allocation3 + $0xf0] sm:$0xff]
      %v1092 = vld [vmem:[#allocation3 + $0xf8] sm:$0xff]
      %v1093 = vld [vmem:[#allocation3 + $0x100] sm:$0xff]
      %v1094 = vld [vmem:[#allocation3 + $0x108] sm:$0xff]
      %v1095 = vld [vmem:[#allocation3 + $0x110] sm:$0xff]
      %v1096 = vld [vmem:[#allocation3 + $0x118] sm:$0xff]
      %v1097 = vld [vmem:[#allocation3 + $0x120] sm:$0xff]
      %v1098 = vld [vmem:[#allocation3 + $0x128] sm:$0xff]
      %v1099 = vld [vmem:[#allocation3 + $0x130] sm:$0xff]
      %v1100 = vld [vmem:[#allocation3 + $0x138] sm:$0xff]
      %v1101 = vld [vmem:[#allocation3 + $0x140] sm:$0xff]
      %v1102 = vld [vmem:[#allocation3 + $0x148] sm:$0xff]
      %v1103 = vld [vmem:[#allocation3 + $0x150] sm:$0xff]
      %v1104 = vld [vmem:[#allocation3 + $0x158] sm:$0xff]
      %v1105 = vld [vmem:[#allocation3 + $0x160] sm:$0xff]
      %v1106 = vld [vmem:[#allocation3 + $0x168] sm:$0xff]
      %v1107 = vld [vmem:[#allocation3 + $0x170] sm:$0xff]
      %v1108 = vld [vmem:[#allocation3 + $0x178] sm:$0xff]
      %v1109 = vld [vmem:[#allocation3 + $0x180] sm:$0xff]
      %v1110 = vld [vmem:[#allocation3 + $0x188] sm:$0xff]
      %v1111 = vld [vmem:[#allocation3 + $0x190] sm:$0xff]
      %v1112 = vld [vmem:[#allocation3 + $0x198] sm:$0xff]
      %v1113 = vld [vmem:[#allocation3 + $0x1a0] sm:$0xff]
      %v1114 = vld [vmem:[#allocation3 + $0x1a8] sm:$0xff]
      %v1115 = vld [vmem:[#allocation3 + $0x1b0] sm:$0xff]
      %v1116 = vld [vmem:[#allocation3 + $0x1b8] sm:$0xff]
      %v1117 = vld [vmem:[#allocation3 + $0x1c0] sm:$0xff]
      %v1118 = vld [vmem:[#allocation3 + $0x1c8] sm:$0xff]
      %v1119 = vld [vmem:[#allocation3 + $0x1d0] sm:$0xff]
      %v1120 = vld [vmem:[#allocation3 + $0x1d8] sm:$0xff]
      %v1121 = vld [vmem:[#allocation3 + $0x1e0] sm:$0xff]
      %v1122 = vld [vmem:[#allocation3 + $0x1e8] sm:$0xff]
      %v1123 = vld [vmem:[#allocation3 + $0x1f0] sm:$0xff]
      %v1124 = vld [vmem:[#allocation3 + $0x1f8] sm:$0xff]
      %v1125 = vld [vmem:[#allocation3 + $0x200] sm:$0xff]
      %v1126 = vld [vmem:[#allocation3 + $0x208] sm:$0xff]
      %v1127 = vld [vmem:[#allocation3 + $0x210] sm:$0xff]
      %v1128 = vld [vmem:[#allocation3 + $0x218] sm:$0xff]
      %v1129 = vld [vmem:[#allocation3 + $0x220] sm:$0xff]
      %v1130 = vld [vmem:[#allocation3 + $0x228] sm:$0xff]
      %v1131 = vld [vmem:[#allocation3 + $0x230] sm:$0xff]
      %v1132 = vld [vmem:[#allocation3 + $0x238] sm:$0xff]
      %v1133 = vld [vmem:[#allocation3 + $0x240] sm:$0xff]
      %v1134 = vld [vmem:[#allocation3 + $0x248] sm:$0xff]
      %v1135 = vld [vmem:[#allocation3 + $0x250] sm:$0xff]
      %v1136 = vld [vmem:[#allocation3 + $0x258] sm:$0xff]
      %v1137 = vld [vmem:[#allocation3 + $0x260] sm:$0xff]
      %v1138 = vld [vmem:[#allocation3 + $0x268] sm:$0xff]
      %v1139 = vld [vmem:[#allocation3 + $0x270] sm:$0xff]
      %v1140 = vld [vmem:[#allocation3 + $0x278] sm:$0xff]
      %v1141 = vld [vmem:[#allocation3 + $0x280] sm:$0xff]
      %v1142 = vld [vmem:[#allocation3 + $0x288] sm:$0xff]
      %v1143 = vld [vmem:[#allocation3 + $0x290] sm:$0xff]
      %v1144 = vld [vmem:[#allocation3 + $0x298] sm:$0xff]
      %v1145 = vld [vmem:[#allocation3 + $0x2a0] sm:$0xff]
      %v1146 = vld [vmem:[#allocation3 + $0x2a8] sm:$0xff]
      %v1147 = vld [vmem:[#allocation3 + $0x2b0] sm:$0xff]
      %v1148 = vld [vmem:[#allocation3 + $0x2b8] sm:$0xff]
      %v1149 = vld [vmem:[#allocation3 + $0x2c0] sm:$0xff]
      %v1150 = vld [vmem:[#allocation3 + $0x2c8] sm:$0xff]
      %v1151 = vld [vmem:[#allocation3 + $0x2d0] sm:$0xff]
      %v1152 = vld [vmem:[#allocation3 + $0x2d8] sm:$0xff]
      %v1153 = vld [vmem:[#allocation3 + $0x2e0] sm:$0xff]
      %v1154 = vld [vmem:[#allocation3 + $0x2e8] sm:$0xff]
      %v1155 = vld [vmem:[#allocation3 + $0x2f0] sm:$0xff]
      %v1156 = vld [vmem:[#allocation3 + $0x2f8] sm:$0xff]
      %v1157 = vld [vmem:[#allocation3 + $0x300] sm:$0xff]
      %v1158 = vld [vmem:[#allocation3 + $0x308] sm:$0xff]
      %v1159 = vld [vmem:[#allocation3 + $0x310] sm:$0xff]
      %v1160 = vld [vmem:[#allocation3 + $0x318] sm:$0xff]
      %v1161 = vld [vmem:[#allocation3 + $0x320] sm:$0xff]
      %v1162 = vld [vmem:[#allocation3 + $0x328] sm:$0xff]
      %v1163 = vld [vmem:[#allocation3 + $0x330] sm:$0xff]
      %v1164 = vld [vmem:[#allocation3 + $0x338] sm:$0xff]
      %v1165 = vld [vmem:[#allocation3 + $0x340] sm:$0xff]
      %v1166 = vld [vmem:[#allocation3 + $0x348] sm:$0xff]
      %v1167 = vld [vmem:[#allocation3 + $0x350] sm:$0xff]
      %v1168 = vld [vmem:[#allocation3 + $0x358] sm:$0xff]
      %v1169 = vld [vmem:[#allocation3 + $0x360] sm:$0xff]
      %v1170 = vld [vmem:[#allocation3 + $0x368] sm:$0xff]
      %v1171 = vld [vmem:[#allocation3 + $0x370] sm:$0xff]
      %v1172 = vld [vmem:[#allocation3 + $0x378] sm:$0xff]
      %v1173 = vld [vmem:[#allocation3 + $0x380] sm:$0xff]
      %v1174 = vld [vmem:[#allocation3 + $0x388] sm:$0xff]
      %v1175 = vld [vmem:[#allocation3 + $0x390] sm:$0xff]
      %v1176 = vld [vmem:[#allocation3 + $0x398] sm:$0xff]
      %v1177 = vld [vmem:[#allocation3 + $0x3a0] sm:$0xff]
      %v1178 = vld [vmem:[#allocation3 + $0x3a8] sm:$0xff]
      %v1179 = vld [vmem:[#allocation3 + $0x3b0] sm:$0xff]
      %v1180 = vld [vmem:[#allocation3 + $0x3b8] sm:$0xff]
      %v1181 = vld [vmem:[#allocation3 + $0x3c0] sm:$0xff]
      %v1182 = vld [vmem:[#allocation3 + $0x3c8] sm:$0xff]
      %v1183 = vld [vmem:[#allocation3 + $0x3d0] sm:$0xff]
      %v1184 = vld [vmem:[#allocation3 + $0x3d8] sm:$0xff]
      %v1185 = vld [vmem:[#allocation3 + $0x3e0] sm:$0xff]
      %v1186 = vld [vmem:[#allocation3 + $0x3e8] sm:$0xff]
      %v1187 = vld [vmem:[#allocation3 + $0x3f0] sm:$0xff]
      %v1188 = vld [vmem:[#allocation3 + $0x3f8] sm:$0xff]
      %v1189 = vld [vmem:[#allocation3 + $0x400] sm:$0xff]
      %v1190 = vld [vmem:[#allocation3 + $0x408] sm:$0xff]
      %v1191 = vld [vmem:[#allocation3 + $0x410] sm:$0xff]
      %v1192 = vld [vmem:[#allocation3 + $0x418] sm:$0xff]
      %v1193 = vld [vmem:[#allocation3 + $0x420] sm:$0xff]
      %v1194 = vld [vmem:[#allocation3 + $0x428] sm:$0xff]
      %v1195 = vld [vmem:[#allocation3 + $0x430] sm:$0xff]
      %v1196 = vld [vmem:[#allocation3 + $0x438] sm:$0xff]
      %v1197 = vld [vmem:[#allocation3 + $0x440] sm:$0xff]
      %v1198 = vld [vmem:[#allocation3 + $0x448] sm:$0xff]
      %v1199 = vld [vmem:[#allocation3 + $0x450] sm:$0xff]
      %v1200 = vld [vmem:[#allocation3 + $0x458] sm:$0xff]
      %v1201 = vld [vmem:[#allocation3 + $0x460] sm:$0xff]
      %v1202 = vld [vmem:[#allocation3 + $0x468] sm:$0xff]
      %v1203 = vld [vmem:[#allocation3 + $0x470] sm:$0xff]
      %v1204 = vld [vmem:[#allocation3 + $0x478] sm:$0xff]
      %v1205 = vld [vmem:[%s3] sm:$0xf]
      %v1206 = vld [vmem:[%s3 + $0x4] sm:$0xf]
      %v1207 = vld [vmem:[%s3 + $0x8] sm:$0xf]
      %v1208 = vld [vmem:[%s3 + $0xc] sm:$0xf]
      %v1209 = vld [vmem:[%s3 + $0x10] sm:$0xf]
      %v1210 = vld [vmem:[%s3 + $0x14] sm:$0xf]
      %v1211 = vld [vmem:[%s3 + $0x18] sm:$0xf]
      %v1212 = vld [vmem:[%s3 + $0x1c] sm:$0xf]
      %v1213 = vld [vmem:[%s3 + $0x20] sm:$0xf]
      %v1214 = vld [vmem:[%s3 + $0x24] sm:$0xf]
      %v1215 = vld [vmem:[%s3 + $0x28] sm:$0xf]
      %v1216 = vld [vmem:[%s3 + $0x2c] sm:$0xf]
      %v1217 = vld [vmem:[%s3 + $0x30] sm:$0xf]
      %v1218 = vld [vmem:[%s3 + $0x34] sm:$0xf]
      %v1219 = vld [vmem:[%s3 + $0x38] sm:$0xf]
      %v1220 = vld [vmem:[%s3 + $0x3c] sm:$0xf]
      %v1221 = vld [vmem:[%s3 + $0x40] sm:$0xf]
      %v1222 = vld [vmem:[%s3 + $0x44] sm:$0xf]
      %v1223 = vld [vmem:[%s3 + $0x48] sm:$0xf]
      %v1224 = vld [vmem:[%s3 + $0x4c] sm:$0xf]
      %v1225 = vld [vmem:[%s3 + $0x50] sm:$0xf]
      %v1226 = vld [vmem:[%s3 + $0x54] sm:$0xf]
      %v1227 = vld [vmem:[%s3 + $0x58] sm:$0xf]
      %v1228 = vld [vmem:[%s3 + $0x5c] sm:$0xf]
      %v1229 = vld [vmem:[%s3 + $0x60] sm:$0xf]
      %v1230 = vld [vmem:[%s3 + $0x64] sm:$0xf]
      %v1231 = vld [vmem:[%s3 + $0x68] sm:$0xf]
      %v1232 = vld [vmem:[%s3 + $0x6c] sm:$0xf]
      %v1233 = vld [vmem:[%s3 + $0x70] sm:$0xf]
      %v1234 = vld [vmem:[%s3 + $0x74] sm:$0xf]
      %v1235 = vld [vmem:[%s3 + $0x78] sm:$0xf]
      %v1236 = vld [vmem:[%s3 + $0x7c] sm:$0xf]
      %v1237 = vld [vmem:[%s3 + $0x80] sm:$0xf]
      %v1238 = vld [vmem:[%s3 + $0x84] sm:$0xf]
      %v1239 = vld [vmem:[%s3 + $0x88] sm:$0xf]
      %v1240 = vld [vmem:[%s3 + $0x8c] sm:$0xf]
      %v1241 = vld [vmem:[%s3 + $0x90] sm:$0xf]
      %v1242 = vld [vmem:[%s3 + $0x94] sm:$0xf]
      %v1243 = vld [vmem:[%s3 + $0x98] sm:$0xf]
      %v1244 = vld [vmem:[%s3 + $0x9c] sm:$0xf]
      %v1245 = vld [vmem:[%s3 + $0xa0] sm:$0xf]
      %v1246 = vld [vmem:[%s3 + $0xa4] sm:$0xf]
      %v1247 = vld [vmem:[%s3 + $0xa8] sm:$0xf]
      %v1248 = vld [vmem:[%s3 + $0xac] sm:$0xf]
      %v1249 = vld [vmem:[%s3 + $0xb0] sm:$0xf]
      %v1250 = vld [vmem:[%s3 + $0xb4] sm:$0xf]
      %v1251 = vld [vmem:[%s3 + $0xb8] sm:$0xf]
      %v1252 = vld [vmem:[%s3 + $0xbc] sm:$0xf]
      %v1253 = vld [vmem:[%s3 + $0xc0] sm:$0xf]
      %v1254 = vld [vmem:[%s3 + $0xc4] sm:$0xf]
      %v1255 = vld [vmem:[%s3 + $0xc8] sm:$0xf]
      %v1256 = vld [vmem:[%s3 + $0xcc] sm:$0xf]
      %v1257 = vld [vmem:[%s3 + $0xd0] sm:$0xf]
      %v1258 = vld [vmem:[%s3 + $0xd4] sm:$0xf]
      %v1259 = vld [vmem:[%s3 + $0xd8] sm:$0xf]
      %v1260 = vld [vmem:[%s3 + $0xdc] sm:$0xf]
      %v1261 = vld [vmem:[%s3 + $0xe0] sm:$0xf]
      %v1262 = vld [vmem:[%s3 + $0xe4] sm:$0xf]
      %v1263 = vld [vmem:[%s3 + $0xe8] sm:$0xf]
      %v1264 = vld [vmem:[%s3 + $0xec] sm:$0xf]
      %v1265 = vld [vmem:[%s3 + $0xf0] sm:$0xf]
      %v1266 = vld [vmem:[%s3 + $0xf4] sm:$0xf]
      %v1267 = vld [vmem:[%s3 + $0xf8] sm:$0xf]
      %v1268 = vld [vmem:[%s3 + $0xfc] sm:$0xf]
      %v1269 = vld [vmem:[%s3 + $0x100] sm:$0xf]
      %v1270 = vld [vmem:[%s3 + $0x104] sm:$0xf]
      %v1271 = vld [vmem:[%s3 + $0x108] sm:$0xf]
      %v1272 = vld [vmem:[%s3 + $0x10c] sm:$0xf]
      %v1273 = vld [vmem:[%s3 + $0x110] sm:$0xf]
      %v1274 = vld [vmem:[%s3 + $0x114] sm:$0xf]
      %v1275 = vld [vmem:[%s3 + $0x118] sm:$0xf]
      %v1276 = vld [vmem:[%s3 + $0x11c] sm:$0xf]
      %v1277 = vld [vmem:[%s3 + $0x120] sm:$0xf]
      %v1278 = vld [vmem:[%s3 + $0x124] sm:$0xf]
      %v1279 = vld [vmem:[%s3 + $0x128] sm:$0xf]
      %v1280 = vld [vmem:[%s3 + $0x12c] sm:$0xf]
      %v1281 = vld [vmem:[%s3 + $0x130] sm:$0xf]
      %v1282 = vld [vmem:[%s3 + $0x134] sm:$0xf]
      %v1283 = vld [vmem:[%s3 + $0x138] sm:$0xf]
      %v1284 = vld [vmem:[%s3 + $0x13c] sm:$0xf]
      %v1285 = vld [vmem:[%s3 + $0x140] sm:$0xf]
      %v1286 = vld [vmem:[%s3 + $0x144] sm:$0xf]
      %v1287 = vld [vmem:[%s3 + $0x148] sm:$0xf]
      %v1288 = vld [vmem:[%s3 + $0x14c] sm:$0xf]
      %v1289 = vld [vmem:[%s3 + $0x150] sm:$0xf]
      %v1290 = vld [vmem:[%s3 + $0x154] sm:$0xf]
      %v1291 = vld [vmem:[%s3 + $0x158] sm:$0xf]
      %v1292 = vld [vmem:[%s3 + $0x15c] sm:$0xf]
      %v1293 = vld [vmem:[%s3 + $0x160] sm:$0xf]
      %v1294 = vld [vmem:[%s3 + $0x164] sm:$0xf]
      %v1295 = vld [vmem:[%s3 + $0x168] sm:$0xf]
      %v1296 = vld [vmem:[%s3 + $0x16c] sm:$0xf]
      %v1297 = vld [vmem:[%s3 + $0x170] sm:$0xf]
      %v1298 = vld [vmem:[%s3 + $0x174] sm:$0xf]
      %v1299 = vld [vmem:[%s3 + $0x178] sm:$0xf]
      %v1300 = vld [vmem:[%s3 + $0x17c] sm:$0xf]
      %v1301 = vld [vmem:[%s3 + $0x180] sm:$0xf]
      %v1302 = vld [vmem:[%s3 + $0x184] sm:$0xf]
      %v1303 = vld [vmem:[%s3 + $0x188] sm:$0xf]
      %v1304 = vld [vmem:[%s3 + $0x18c] sm:$0xf]
      %v1305 = vld [vmem:[%s3 + $0x190] sm:$0xf]
      %v1306 = vld [vmem:[%s3 + $0x194] sm:$0xf]
      %v1307 = vld [vmem:[%s3 + $0x198] sm:$0xf]
      %v1308 = vld [vmem:[%s3 + $0x19c] sm:$0xf]
      %v1309 = vld [vmem:[%s3 + $0x1a0] sm:$0xf]
      %v1310 = vld [vmem:[%s3 + $0x1a4] sm:$0xf]
      %v1311 = vld [vmem:[%s3 + $0x1a8] sm:$0xf]
      %v1312 = vld [vmem:[%s3 + $0x1ac] sm:$0xf]
      %v1313 = vld [vmem:[%s3 + $0x1b0] sm:$0xf]
      %v1314 = vld [vmem:[%s3 + $0x1b4] sm:$0xf]
      %v1315 = vld [vmem:[%s3 + $0x1b8] sm:$0xf]
      %v1316 = vld [vmem:[%s3 + $0x1bc] sm:$0xf]
      %v1317 = vld [vmem:[%s3 + $0x1c0] sm:$0xf]
      %v1318 = vld [vmem:[%s3 + $0x1c4] sm:$0xf]
      %v1319 = vld [vmem:[%s3 + $0x1c8] sm:$0xf]
      %v1320 = vld [vmem:[%s3 + $0x1cc] sm:$0xf]
      %v1321 = vld [vmem:[%s3 + $0x1d0] sm:$0xf]
      %v1322 = vld [vmem:[%s3 + $0x1d4] sm:$0xf]
      %v1323 = vld [vmem:[%s3 + $0x1d8] sm:$0xf]
      %v1324 = vld [vmem:[%s3 + $0x1dc] sm:$0xf]
      %v1325 = vld [vmem:[%s3 + $0x1e0] sm:$0xf]
      %v1326 = vld [vmem:[%s3 + $0x1e4] sm:$0xf]
      %v1327 = vld [vmem:[%s3 + $0x1e8] sm:$0xf]
      %v1328 = vld [vmem:[%s3 + $0x1ec] sm:$0xf]
      %v1329 = vld [vmem:[%s3 + $0x1f0] sm:$0xf]
      %v1330 = vld [vmem:[%s3 + $0x1f4] sm:$0xf]
      %v1331 = vld [vmem:[%s3 + $0x1f8] sm:$0xf]
      %v1332 = vld [vmem:[%s3 + $0x1fc] sm:$0xf]
      %v1333 = vld [vmem:[%s3 + $0x200] sm:$0xf]
      %v1334 = vld [vmem:[%s3 + $0x204] sm:$0xf]
      %v1335 = vld [vmem:[%s3 + $0x208] sm:$0xf]
      %v1336 = vld [vmem:[%s3 + $0x20c] sm:$0xf]
      %v1337 = vld [vmem:[%s3 + $0x210] sm:$0xf]
      %v1338 = vld [vmem:[%s3 + $0x214] sm:$0xf]
      %v1339 = vld [vmem:[%s3 + $0x218] sm:$0xf]
      %v1340 = vld [vmem:[%s3 + $0x21c] sm:$0xf]
      %v1341 = vld [vmem:[%s3 + $0x220] sm:$0xf]
      %v1342 = vld [vmem:[%s3 + $0x224] sm:$0xf]
      %v1343 = vld [vmem:[%s3 + $0x228] sm:$0xf]
      %v1344 = vld [vmem:[%s3 + $0x22c] sm:$0xf]
      %v1345 = vld [vmem:[%s3 + $0x230] sm:$0xf]
      %v1346 = vld [vmem:[%s3 + $0x234] sm:$0xf]
      %v1347 = vld [vmem:[%s3 + $0x238] sm:$0xf]
      %v1348 = vld [vmem:[%s3 + $0x23c] sm:$0xf]
      %v1493 = vunpack.c.l.b16 %v1205
      %v1494 = vunpack.c.l.b16 %v1206
      %v1495 = vunpack.c.l.b16 %v1207
      %v1496 = vunpack.c.l.b16 %v1208
      %v1497 = vunpack.c.l.b16 %v1209
      %v1498 = vunpack.c.l.b16 %v1210
      %v1499 = vunpack.c.l.b16 %v1211
      %v1500 = vunpack.c.l.b16 %v1212
      %v1501 = vunpack.c.l.b16 %v1213
      %v1502 = vunpack.c.l.b16 %v1214
      %v1503 = vunpack.c.l.b16 %v1215
      %v1504 = vunpack.c.l.b16 %v1216
      %v1505 = vunpack.c.l.b16 %v1217
      %v1506 = vunpack.c.l.b16 %v1218
      %v1507 = vunpack.c.l.b16 %v1219
      %v1508 = vunpack.c.l.b16 %v1220
      %v1509 = vunpack.c.l.b16 %v1221
      %v1510 = vunpack.c.l.b16 %v1222
      %v1511 = vunpack.c.l.b16 %v1223
      %v1512 = vunpack.c.l.b16 %v1224
      %v1513 = vunpack.c.l.b16 %v1225
      %v1514 = vunpack.c.l.b16 %v1226
      %v1515 = vunpack.c.l.b16 %v1227
      %v1516 = vunpack.c.l.b16 %v1228
      %v1517 = vunpack.c.l.b16 %v1229
      %v1518 = vunpack.c.l.b16 %v1230
      %v1519 = vunpack.c.l.b16 %v1231
      %v1520 = vunpack.c.l.b16 %v1232
      %v1521 = vunpack.c.l.b16 %v1233
      %v1522 = vunpack.c.l.b16 %v1234
      %v1523 = vunpack.c.l.b16 %v1235
      %v1524 = vunpack.c.l.b16 %v1236
      %v1525 = vunpack.c.l.b16 %v1237
      %v1526 = vunpack.c.l.b16 %v1238
      %v1527 = vunpack.c.l.b16 %v1239
      %v1528 = vunpack.c.l.b16 %v1240
      %v1529 = vunpack.c.l.b16 %v1241
      %v1530 = vunpack.c.l.b16 %v1242
      %v1531 = vunpack.c.l.b16 %v1243
      %v1532 = vunpack.c.l.b16 %v1244
      %v1533 = vunpack.c.l.b16 %v1245
      %v1534 = vunpack.c.l.b16 %v1246
      %v1535 = vunpack.c.l.b16 %v1247
      %v1536 = vunpack.c.l.b16 %v1248
      %v1537 = vunpack.c.l.b16 %v1249
      %v1538 = vunpack.c.l.b16 %v1250
      %v1539 = vunpack.c.l.b16 %v1251
      %v1540 = vunpack.c.l.b16 %v1252
      %v1541 = vunpack.c.l.b16 %v1253
      %v1542 = vunpack.c.l.b16 %v1254
      %v1543 = vunpack.c.l.b16 %v1255
      %v1544 = vunpack.c.l.b16 %v1256
      %v1545 = vunpack.c.l.b16 %v1257
      %v1546 = vunpack.c.l.b16 %v1258
      %v1547 = vunpack.c.l.b16 %v1259
      %v1548 = vunpack.c.l.b16 %v1260
      %v1549 = vunpack.c.l.b16 %v1261
      %v1550 = vunpack.c.l.b16 %v1262
      %v1551 = vunpack.c.l.b16 %v1263
      %v1552 = vunpack.c.l.b16 %v1264
      %v1553 = vunpack.c.l.b16 %v1265
      %v1554 = vunpack.c.l.b16 %v1266
      %v1555 = vunpack.c.l.b16 %v1267
      %v1556 = vunpack.c.l.b16 %v1268
      %v1557 = vunpack.c.l.b16 %v1269
      %v1558 = vunpack.c.l.b16 %v1270
      %v1559 = vunpack.c.l.b16 %v1271
      %v1560 = vunpack.c.l.b16 %v1272
      %v1561 = vunpack.c.l.b16 %v1273
      %v1562 = vunpack.c.l.b16 %v1274
      %v1563 = vunpack.c.l.b16 %v1275
      %v1564 = vunpack.c.l.b16 %v1276
      %v1565 = vunpack.c.l.b16 %v1277
      %v1566 = vunpack.c.l.b16 %v1278
      %v1567 = vunpack.c.l.b16 %v1279
      %v1568 = vunpack.c.l.b16 %v1280
      %v1569 = vunpack.c.l.b16 %v1281
      %v1570 = vunpack.c.l.b16 %v1282
      %v1571 = vunpack.c.l.b16 %v1283
      %v1572 = vunpack.c.l.b16 %v1284
      %v1573 = vunpack.c.l.b16 %v1285
      %v1574 = vunpack.c.l.b16 %v1286
      %v1575 = vunpack.c.l.b16 %v1287
      %v1576 = vunpack.c.l.b16 %v1288
      %v1577 = vunpack.c.l.b16 %v1289
      %v1578 = vunpack.c.l.b16 %v1290
      %v1579 = vunpack.c.l.b16 %v1291
      %v1580 = vunpack.c.l.b16 %v1292
      %v1581 = vunpack.c.l.b16 %v1293
      %v1582 = vunpack.c.l.b16 %v1294
      %v1583 = vunpack.c.l.b16 %v1295
      %v1584 = vunpack.c.l.b16 %v1296
      %v1585 = vunpack.c.l.b16 %v1297
      %v1586 = vunpack.c.l.b16 %v1298
      %v1587 = vunpack.c.l.b16 %v1299
      %v1588 = vunpack.c.l.b16 %v1300
      %v1589 = vunpack.c.l.b16 %v1301
      %v1590 = vunpack.c.l.b16 %v1302
      %v1591 = vunpack.c.l.b16 %v1303
      %v1592 = vunpack.c.l.b16 %v1304
      %v1593 = vunpack.c.l.b16 %v1305
      %v1594 = vunpack.c.l.b16 %v1306
      %v1595 = vunpack.c.l.b16 %v1307
      %v1596 = vunpack.c.l.b16 %v1308
      %v1597 = vunpack.c.l.b16 %v1309
      %v1598 = vunpack.c.l.b16 %v1310
      %v1599 = vunpack.c.l.b16 %v1311
      %v1600 = vunpack.c.l.b16 %v1312
      %v1601 = vunpack.c.l.b16 %v1313
      %v1602 = vunpack.c.l.b16 %v1314
      %v1603 = vunpack.c.l.b16 %v1315
      %v1604 = vunpack.c.l.b16 %v1316
      %v1605 = vunpack.c.l.b16 %v1317
      %v1606 = vunpack.c.l.b16 %v1318
      %v1607 = vunpack.c.l.b16 %v1319
      %v1608 = vunpack.c.l.b16 %v1320
      %v1609 = vunpack.c.l.b16 %v1321
      %v1610 = vunpack.c.l.b16 %v1322
      %v1611 = vunpack.c.l.b16 %v1323
      %v1612 = vunpack.c.l.b16 %v1324
      %v1613 = vunpack.c.l.b16 %v1325
      %v1614 = vunpack.c.l.b16 %v1326
      %v1615 = vunpack.c.l.b16 %v1327
      %v1616 = vunpack.c.l.b16 %v1328
      %v1617 = vunpack.c.l.b16 %v1329
      %v1618 = vunpack.c.l.b16 %v1330
      %v1619 = vunpack.c.l.b16 %v1331
      %v1620 = vunpack.c.l.b16 %v1332
      %v1621 = vunpack.c.l.b16 %v1333
      %v1622 = vunpack.c.l.b16 %v1334
      %v1623 = vunpack.c.l.b16 %v1335
      %v1624 = vunpack.c.l.b16 %v1336
      %v1625 = vunpack.c.l.b16 %v1337
      %v1626 = vunpack.c.l.b16 %v1338
      %v1627 = vunpack.c.l.b16 %v1339
      %v1628 = vunpack.c.l.b16 %v1340
      %v1629 = vunpack.c.l.b16 %v1341
      %v1630 = vunpack.c.l.b16 %v1342
      %v1631 = vunpack.c.l.b16 %v1343
      %v1632 = vunpack.c.l.b16 %v1344
      %v1633 = vunpack.c.l.b16 %v1345
      %v1634 = vunpack.c.l.b16 %v1346
      %v1635 = vunpack.c.l.b16 %v1347
      %v1636 = vunpack.c.l.b16 %v1348
      %v1637 = vpack.c.b16 %v1494, %v1493
      %v1638 = vpack.c.b16 %v1496, %v1495
      %v1639 = vpack.c.b16 %v1498, %v1497
      %v1640 = vpack.c.b16 %v1500, %v1499
      %v1641 = vpack.c.b16 %v1502, %v1501
      %v1642 = vpack.c.b16 %v1504, %v1503
      %v1643 = vpack.c.b16 %v1506, %v1505
      %v1644 = vpack.c.b16 %v1508, %v1507
      %v1645 = vpack.c.b16 %v1510, %v1509
      %v1646 = vpack.c.b16 %v1512, %v1511
      %v1647 = vpack.c.b16 %v1514, %v1513
      %v1648 = vpack.c.b16 %v1516, %v1515
      %v1649 = vpack.c.b16 %v1518, %v1517
      %v1650 = vpack.c.b16 %v1520, %v1519
      %v1651 = vpack.c.b16 %v1522, %v1521
      %v1652 = vpack.c.b16 %v1524, %v1523
      %v1653 = vpack.c.b16 %v1526, %v1525
      %v1654 = vpack.c.b16 %v1528, %v1527
      %v1655 = vpack.c.b16 %v1530, %v1529
      %v1656 = vpack.c.b16 %v1532, %v1531
      %v1657 = vpack.c.b16 %v1534, %v1533
      %v1658 = vpack.c.b16 %v1536, %v1535
      %v1659 = vpack.c.b16 %v1538, %v1537
      %v1660 = vpack.c.b16 %v1540, %v1539
      %v1661 = vpack.c.b16 %v1542, %v1541
      %v1662 = vpack.c.b16 %v1544, %v1543
      %v1663 = vpack.c.b16 %v1546, %v1545
      %v1664 = vpack.c.b16 %v1548, %v1547
      %v1665 = vpack.c.b16 %v1550, %v1549
      %v1666 = vpack.c.b16 %v1552, %v1551
      %v1667 = vpack.c.b16 %v1554, %v1553
      %v1668 = vpack.c.b16 %v1556, %v1555
      %v1669 = vpack.c.b16 %v1558, %v1557
      %v1670 = vpack.c.b16 %v1560, %v1559
      %v1671 = vpack.c.b16 %v1562, %v1561
      %v1672 = vpack.c.b16 %v1564, %v1563
      %v1673 = vpack.c.b16 %v1566, %v1565
      %v1674 = vpack.c.b16 %v1568, %v1567
      %v1675 = vpack.c.b16 %v1570, %v1569
      %v1676 = vpack.c.b16 %v1572, %v1571
      %v1677 = vpack.c.b16 %v1574, %v1573
      %v1678 = vpack.c.b16 %v1576, %v1575
      %v1679 = vpack.c.b16 %v1578, %v1577
      %v1680 = vpack.c.b16 %v1580, %v1579
      %v1681 = vpack.c.b16 %v1582, %v1581
      %v1682 = vpack.c.b16 %v1584, %v1583
      %v1683 = vpack.c.b16 %v1586, %v1585
      %v1684 = vpack.c.b16 %v1588, %v1587
      %v1685 = vpack.c.b16 %v1590, %v1589
      %v1686 = vpack.c.b16 %v1592, %v1591
      %v1687 = vpack.c.b16 %v1594, %v1593
      %v1688 = vpack.c.b16 %v1596, %v1595
      %v1689 = vpack.c.b16 %v1598, %v1597
      %v1690 = vpack.c.b16 %v1600, %v1599
      %v1691 = vpack.c.b16 %v1602, %v1601
      %v1692 = vpack.c.b16 %v1604, %v1603
      %v1693 = vpack.c.b16 %v1606, %v1605
      %v1694 = vpack.c.b16 %v1608, %v1607
      %v1695 = vpack.c.b16 %v1610, %v1609
      %v1696 = vpack.c.b16 %v1612, %v1611
      %v1697 = vpack.c.b16 %v1614, %v1613
      %v1698 = vpack.c.b16 %v1616, %v1615
      %v1699 = vpack.c.b16 %v1618, %v1617
      %v1700 = vpack.c.b16 %v1620, %v1619
      %v1701 = vpack.c.b16 %v1622, %v1621
      %v1702 = vpack.c.b16 %v1624, %v1623
      %v1703 = vpack.c.b16 %v1626, %v1625
      %v1704 = vpack.c.b16 %v1628, %v1627
      %v1705 = vpack.c.b16 %v1630, %v1629
      %v1706 = vpack.c.b16 %v1632, %v1631
      %v1707 = vpack.c.b16 %v1634, %v1633
      %v1708 = vpack.c.b16 %v1636, %v1635
      %1781 = vmatprep.subr.bf16.mxu0 0
      %1782 = vmatpush1.bf16.msra.mxu0 %v1637
      %1783 = vmatprep.subr.bf16.mxu0 0
      %1784 = vmatpush1.bf16.msra.mxu0 %v1638
      %1785 = vmatprep.subr.bf16.mxu0 0
      %1786 = vmatpush1.bf16.msra.mxu0 %v1639
      %1787 = vmatprep.subr.bf16.mxu0 0
      %1788 = vmatpush1.bf16.msra.mxu0 %v1640
      %1789 = vmatprep.subr.bf16.mxu0 0
      %1790 = vmatpush1.bf16.msra.mxu0 %v1641
      %1791 = vmatprep.subr.bf16.mxu0 0
      %1792 = vmatpush1.bf16.msra.mxu0 %v1642
      %1793 = vmatprep.subr.bf16.mxu0 0
      %1794 = vmatpush1.bf16.msra.mxu0 %v1643
      %1795 = vmatprep.subr.bf16.mxu0 0
      %1796 = vmatpush1.bf16.msra.mxu0 %v1644
      %1797 = vmatprep.subr.bf16.mxu0 0
      %1798 = vmatpush1.bf16.msra.mxu0 %v1645
      %1799 = vmatprep.subr.bf16.mxu0 0
      %1800 = vmatpush1.bf16.msra.mxu0 %v1646
      %1801 = vmatprep.subr.bf16.mxu0 0
      %1802 = vmatpush1.bf16.msra.mxu0 %v1647
      %1803 = vmatprep.subr.bf16.mxu0 0
      %1804 = vmatpush1.bf16.msra.mxu0 %v1648
      %1805 = vmatprep.subr.bf16.mxu0 0
      %1806 = vmatpush1.bf16.msra.mxu0 %v1649
      %1807 = vmatprep.subr.bf16.mxu0 0
      %1808 = vmatpush1.bf16.msra.mxu0 %v1650
      %1809 = vmatprep.subr.bf16.mxu0 0
      %1810 = vmatpush1.bf16.msra.mxu0 %v1651
      %1811 = vmatprep.subr.bf16.mxu0 0
      %1812 = vmatpush1.bf16.msra.mxu0 %v1652
      %1813 = vmatprep.mubr.bf16.mxu0 %v1062
      %1814 = vmatmul.mubr.bf16.gmra.mrb[0].mxu0 %v1061
      %v1815 = vpop.f32.mrb[0].mxu0
      %v1816 = vadd.f32 0.0, %v1815
      %v1817 = vpop.f32.mrb[0].mxu0
      %v1818 = vpop.f32.mrb[0].mxu0
      %v1819 = vadd.f32 0.0, %v1818
      %v1820 = vpop.f32.mrb[0].mxu0
      %1821 = vmatprep.mubr.bf16.mxu0 %v1071
      %1822 = vmatmul.mubr.bf16.gmra.mrb[0].mxu0 %v1070
      %v1823 = vpop.f32.mrb[0].mxu0
      %v1824 = vadd.f32 0.0, %v1823
      %v1825 = vpop.f32.mrb[0].mxu0
      %v1826 = vpop.f32.mrb[0].mxu0
      %v1827 = vadd.f32 0.0, %v1826
      %v1828 = vpop.f32.mrb[0].mxu0
      %1829 = vmatprep.mubr.bf16.mxu0 %v1080
      %1830 = vmatmul.mubr.bf16.gmra.mrb[0].mxu0 %v1079
      %v1831 = vpop.f32.mrb[0].mxu0
      %v1832 = vadd.f32 0.0, %v1831
      %v1833 = vpop.f32.mrb[0].mxu0
      %v1834 = vpop.f32.mrb[0].mxu0
      %v1835 = vadd.f32 0.0, %v1834
      %v1836 = vpop.f32.mrb[0].mxu0
      %1837 = vmatprep.mubr.bf16.mxu0 %v1089
      %1838 = vmatmul.mubr.bf16.gmra.mrb[0].mxu0 %v1088
      %v1839 = vpop.f32.mrb[0].mxu0
      %v1840 = vadd.f32 0.0, %v1839
      %v1841 = vpop.f32.mrb[0].mxu0
      %v1842 = vpop.f32.mrb[0].mxu0
      %v1843 = vadd.f32 0.0, %v1842
      %v1844 = vpop.f32.mrb[0].mxu0
      %1845 = vmatprep.mubr.bf16.mxu0 %v1098
      %1846 = vmatmul.mubr.bf16.gmra.mrb[0].mxu0 %v1097
      %v1847 = vpop.f32.mrb[0].mxu0
      %v1848 = vadd.f32 0.0, %v1847
      %v1849 = vpop.f32.mrb[0].mxu0
      %v1850 = vpop.f32.mrb[0].mxu0
      %v1851 = vadd.f32 0.0, %v1850
      %v1852 = vpop.f32.mrb[0].mxu0
      %1853 = vmatprep.mubr.bf16.mxu0 %v1107
      %1854 = vmatmul.mubr.bf16.gmra.mrb[0].mxu0 %v1106
      %v1855 = vpop.f32.mrb[0].mxu0
      %v1856 = vadd.f32 0.0, %v1855
      %v1857 = vpop.f32.mrb[0].mxu0
      %v1858 = vpop.f32.mrb[0].mxu0
      %v1859 = vadd.f32 0.0, %v1858
      %v1860 = vpop.f32.mrb[0].mxu0
      %1861 = vmatprep.mubr.bf16.mxu0 %v1116
      %1862 = vmatmul.mubr.bf16.gmra.mrb[0].mxu0 %v1115
      %v1863 = vpop.f32.mrb[0].mxu0
      %v1864 = vadd.f32 0.0, %v1863
      %v1865 = vpop.f32.mrb[0].mxu0
      %v1866 = vpop.f32.mrb[0].mxu0
      %v1867 = vadd.f32 0.0, %v1866
      %v1868 = vpop.f32.mrb[0].mxu0
      %1869 = vmatprep.mubr.bf16.mxu0 %v1125
      %1870 = vmatmul.mubr.bf16.gmra.mrb[0].mxu0 %v1124
      %v1871 = vpop.f32.mrb[0].mxu0
      %v1872 = vadd.f32 0.0, %v1871
      %v1873 = vpop.f32.mrb[0].mxu0
      %v1874 = vpop.f32.mrb[0].mxu0
      %v1875 = vadd.f32 0.0, %v1874
      %v1876 = vpop.f32.mrb[0].mxu0
      %1877 = vmatprep.mubr.bf16.mxu0 %v1134
      %1878 = vmatmul.mubr.bf16.gmra.mrb[0].mxu0 %v1133
      %v1879 = vpop.f32.mrb[0].mxu0
      %v1880 = vadd.f32 0.0, %v1879
      %v1881 = vpop.f32.mrb[0].mxu0
      %v1882 = vpop.f32.mrb[0].mxu0
      %v1883 = vadd.f32 0.0, %v1882
      %v1884 = vpop.f32.mrb[0].mxu0
      %1885 = vmatprep.mubr.bf16.mxu0 %v1143
      %1886 = vmatmul.mubr.bf16.gmra.mrb[0].mxu0 %v1142
      %v1887 = vpop.f32.mrb[0].mxu0
      %v1888 = vadd.f32 0.0, %v1887
      %v1889 = vpop.f32.mrb[0].mxu0
      %v1890 = vpop.f32.mrb[0].mxu0
      %v1891 = vadd.f32 0.0, %v1890
      %v1892 = vpop.f32.mrb[0].mxu0
      %1893 = vmatprep.mubr.bf16.mxu0 %v1152
      %1894 = vmatmul.mubr.bf16.gmra.mrb[0].mxu0 %v1151
      %v1895 = vpop.f32.mrb[0].mxu0
      %v1896 = vadd.f32 0.0, %v1895
      %v1897 = vpop.f32.mrb[0].mxu0
      %v1898 = vpop.f32.mrb[0].mxu0
      %v1899 = vadd.f32 0.0, %v1898
      %v1900 = vpop.f32.mrb[0].mxu0
      %1901 = vmatprep.mubr.bf16.mxu0 %v1161
      %1902 = vmatmul.mubr.bf16.gmra.mrb[0].mxu0 %v1160
      %v1903 = vpop.f32.mrb[0].mxu0
      %v1904 = vadd.f32 0.0, %v1903
      %v1905 = vpop.f32.mrb[0].mxu0
      %v1906 = vpop.f32.mrb[0].mxu0
      %v1907 = vadd.f32 0.0, %v1906
      %v1908 = vpop.f32.mrb[0].mxu0
      %1909 = vmatprep.mubr.bf16.mxu0 %v1170
      %1910 = vmatmul.mubr.bf16.gmra.mrb[0].mxu0 %v1169
      %v1911 = vpop.f32.mrb[0].mxu0
      %v1912 = vadd.f32 0.0, %v1911
      %v1913 = vpop.f32.mrb[0].mxu0
      %v1914 = vpop.f32.mrb[0].mxu0
      %v1915 = vadd.f32 0.0, %v1914
      %v1916 = vpop.f32.mrb[0].mxu0
      %1917 = vmatprep.mubr.bf16.mxu0 %v1179
      %1918 = vmatmul.mubr.bf16.gmra.mrb[0].mxu0 %v1178
      %v1919 = vpop.f32.mrb[0].mxu0
      %v1920 = vadd.f32 0.0, %v1919
      %v1921 = vpop.f32.mrb[0].mxu0
      %v1922 = vpop.f32.mrb[0].mxu0
      %v1923 = vadd.f32 0.0, %v1922
      %v1924 = vpop.f32.mrb[0].mxu0
      %1925 = vmatprep.mubr.bf16.mxu0 %v1188
      %1926 = vmatmul.mubr.bf16.gmra.mrb[0].mxu0 %v1187
      %v1927 = vpop.f32.mrb[0].mxu0
      %v1928 = vadd.f32 0.0, %v1927
      %v1929 = vpop.f32.mrb[0].mxu0
      %v1930 = vpop.f32.mrb[0].mxu0
      %v1931 = vadd.f32 0.0, %v1930
      %v1932 = vpop.f32.mrb[0].mxu0
      %1933 = vmatprep.mubr.bf16.mxu0 %v1197
      %1934 = vmatmul.mubr.bf16.gmra.mrb[0].mxu0 %v1196
      %v1935 = vpop.f32.mrb[0].mxu0
      %v1936 = vadd.f32 0.0, %v1935
      %v1937 = vpop.f32.mrb[0].mxu0
      %v1938 = vpop.f32.mrb[0].mxu0
      %v1939 = vadd.f32 0.0, %v1938
      %v1940 = vpop.f32.mrb[0].mxu0
      %1941 = vdwg.mxu0
      %1942 = vmatprep.subr.bf16.mxu0 0
      %1943 = vmatpush1.bf16.msra.mxu0 %v1653
      %1944 = vmatprep.subr.bf16.mxu0 0
      %1945 = vmatpush1.bf16.msra.mxu0 %v1654
      %1946 = vmatprep.subr.bf16.mxu0 0
      %1947 = vmatpush1.bf16.msra.mxu0 %v1655
      %1948 = vmatprep.subr.bf16.mxu0 0
      %1949 = vmatpush1.bf16.msra.mxu0 %v1656
      %1950 = vmatprep.subr.bf16.mxu0 0
      %1951 = vmatpush1.bf16.msra.mxu0 %v1657
      %1952 = vmatprep.subr.bf16.mxu0 0
      %1953 = vmatpush1.bf16.msra.mxu0 %v1658
      %1954 = vmatprep.subr.bf16.mxu0 0
      %1955 = vmatpush1.bf16.msra.mxu0 %v1659
      %1956 = vmatprep.subr.bf16.mxu0 0
      %1957 = vmatpush1.bf16.msra.mxu0 %v1660
      %1958 = vmatprep.subr.bf16.mxu0 0
      %1959 = vmatpush1.bf16.msra.mxu0 %v1661
      %1960 = vmatprep.subr.bf16.mxu0 0
      %1961 = vmatpush1.bf16.msra.mxu0 %v1662
      %1962 = vmatprep.subr.bf16.mxu0 0
      %1963 = vmatpush1.bf16.msra.mxu0 %v1663
      %1964 = vmatprep.subr.bf16.mxu0 0
      %1965 = vmatpush1.bf16.msra.mxu0 %v1664
      %1966 = vmatprep.subr.bf16.mxu0 0
      %1967 = vmatpush1.bf16.msra.mxu0 %v1665
      %1968 = vmatprep.subr.bf16.mxu0 0
      %1969 = vmatpush1.bf16.msra.mxu0 %v1666
      %1970 = vmatprep.subr.bf16.mxu0 0
      %1971 = vmatpush1.bf16.msra.mxu0 %v1667
      %1972 = vmatprep.subr.bf16.mxu0 0
      %1973 = vmatpush1.bf16.msra.mxu0 %v1668
      %1974 = vmatprep.mubr.bf16.mxu0 %v1064
      %1975 = vmatmul.mubr.bf16.gmra.mrb[0].mxu0 %v1063
      %v1976 = vpop.f32.mrb[0].mxu0
      %v1977 = vadd.f32 %v1816, %v1976
      %v1978 = vpop.f32.mrb[0].mxu0
      %v1979 = vpop.f32.mrb[0].mxu0
      %v1980 = vadd.f32 %v1819, %v1979
      %v1981 = vpop.f32.mrb[0].mxu0
      %1982 = vmatprep.mubr.bf16.mxu0 %v1073
      %1983 = vmatmul.mubr.bf16.gmra.mrb[0].mxu0 %v1072
      %v1984 = vpop.f32.mrb[0].mxu0
      %v1985 = vadd.f32 %v1824, %v1984
      %v1986 = vpop.f32.mrb[0].mxu0
      %v1987 = vpop.f32.mrb[0].mxu0
      %v1988 = vadd.f32 %v1827, %v1987
      %v1989 = vpop.f32.mrb[0].mxu0
      %1990 = vmatprep.mubr.bf16.mxu0 %v1082
      %1991 = vmatmul.mubr.bf16.gmra.mrb[0].mxu0 %v1081
      %v1992 = vpop.f32.mrb[0].mxu0
      %v1993 = vadd.f32 %v1832, %v1992
      %v1994 = vpop.f32.mrb[0].mxu0
      %v1995 = vpop.f32.mrb[0].mxu0
      %v1996 = vadd.f32 %v1835, %v1995
      %v1997 = vpop.f32.mrb[0].mxu0
      %1998 = vmatprep.mubr.bf16.mxu0 %v1091
      %1999 = vmatmul.mubr.bf16.gmra.mrb[0].mxu0 %v1090
      %v2000 = vpop.f32.mrb[0].mxu0
      %v2001 = vadd.f32 %v1840, %v2000
      %v2002 = vpop.f32.mrb[0].mxu0
      %v2003 = vpop.f32.mrb[0].mxu0
      %v2004 = vadd.f32 %v1843, %v2003
      %v2005 = vpop.f32.mrb[0].mxu0
      %2006 = vmatprep.mubr.bf16.mxu0 %v1100
      %2007 = vmatmul.mubr.bf16.gmra.mrb[0].mxu0 %v1099
      %v2008 = vpop.f32.mrb[0].mxu0
      %v2009 = vadd.f32 %v1848, %v2008
      %v2010 = vpop.f32.mrb[0].mxu0
      %v2011 = vpop.f32.mrb[0].mxu0
      %v2012 = vadd.f32 %v1851, %v2011
      %v2013 = vpop.f32.mrb[0].mxu0
      %2014 = vmatprep.mubr.bf16.mxu0 %v1109
      %2015 = vmatmul.mubr.bf16.gmra.mrb[0].mxu0 %v1108
      %v2016 = vpop.f32.mrb[0].mxu0
      %v2017 = vadd.f32 %v1856, %v2016
      %v2018 = vpop.f32.mrb[0].mxu0
      %v2019 = vpop.f32.mrb[0].mxu0
      %v2020 = vadd.f32 %v1859, %v2019
      %v2021 = vpop.f32.mrb[0].mxu0
      %2022 = vmatprep.mubr.bf16.mxu0 %v1118
      %2023 = vmatmul.mubr.bf16.gmra.mrb[0].mxu0 %v1117
      %v2024 = vpop.f32.mrb[0].mxu0
      %v2025 = vadd.f32 %v1864, %v2024
      %v2026 = vpop.f32.mrb[0].mxu0
      %v2027 = vpop.f32.mrb[0].mxu0
      %v2028 = vadd.f32 %v1867, %v2027
      %v2029 = vpop.f32.mrb[0].mxu0
      %2030 = vmatprep.mubr.bf16.mxu0 %v1127
      %2031 = vmatmul.mubr.bf16.gmra.mrb[0].mxu0 %v1126
      %v2032 = vpop.f32.mrb[0].mxu0
      %v2033 = vadd.f32 %v1872, %v2032
      %v2034 = vpop.f32.mrb[0].mxu0
      %v2035 = vpop.f32.mrb[0].mxu0
      %v2036 = vadd.f32 %v1875, %v2035
      %v2037 = vpop.f32.mrb[0].mxu0
      %2038 = vmatprep.mubr.bf16.mxu0 %v1136
      %2039 = vmatmul.mubr.bf16.gmra.mrb[0].mxu0 %v1135
      %v2040 = vpop.f32.mrb[0].mxu0
      %v2041 = vadd.f32 %v1880, %v2040
      %v2042 = vpop.f32.mrb[0].mxu0
      %v2043 = vpop.f32.mrb[0].mxu0
      %v2044 = vadd.f32 %v1883, %v2043
      %v2045 = vpop.f32.mrb[0].mxu0
      %2046 = vmatprep.mubr.bf16.mxu0 %v1145
      %2047 = vmatmul.mubr.bf16.gmra.mrb[0].mxu0 %v1144
      %v2048 = vpop.f32.mrb[0].mxu0
      %v2049 = vadd.f32 %v1888, %v2048
      %v2050 = vpop.f32.mrb[0].mxu0
      %v2051 = vpop.f32.mrb[0].mxu0
      %v2052 = vadd.f32 %v1891, %v2051
      %v2053 = vpop.f32.mrb[0].mxu0
      %2054 = vmatprep.mubr.bf16.mxu0 %v1154
      %2055 = vmatmul.mubr.bf16.gmra.mrb[0].mxu0 %v1153
      %v2056 = vpop.f32.mrb[0].mxu0
      %v2057 = vadd.f32 %v1896, %v2056
      %v2058 = vpop.f32.mrb[0].mxu0
      %v2059 = vpop.f32.mrb[0].mxu0
      %v2060 = vadd.f32 %v1899, %v2059
      %v2061 = vpop.f32.mrb[0].mxu0
      %2062 = vmatprep.mubr.bf16.mxu0 %v1163
      %2063 = vmatmul.mubr.bf16.gmra.mrb[0].mxu0 %v1162
      %v2064 = vpop.f32.mrb[0].mxu0
      %v2065 = vadd.f32 %v1904, %v2064
      %v2066 = vpop.f32.mrb[0].mxu0
      %v2067 = vpop.f32.mrb[0].mxu0
      %v2068 = vadd.f32 %v1907, %v2067
      %v2069 = vpop.f32.mrb[0].mxu0
      %2070 = vmatprep.mubr.bf16.mxu0 %v1172
      %2071 = vmatmul.mubr.bf16.gmra.mrb[0].mxu0 %v1171
      %v2072 = vpop.f32.mrb[0].mxu0
      %v2073 = vadd.f32 %v1912, %v2072
      %v2074 = vpop.f32.mrb[0].mxu0
      %v2075 = vpop.f32.mrb[0].mxu0
      %v2076 = vadd.f32 %v1915, %v2075
      %v2077 = vpop.f32.mrb[0].mxu0
      %2078 = vmatprep.mubr.bf16.mxu0 %v1181
      %2079 = vmatmul.mubr.bf16.gmra.mrb[0].mxu0 %v1180
      %v2080 = vpop.f32.mrb[0].mxu0
      %v2081 = vadd.f32 %v1920, %v2080
      %v2082 = vpop.f32.mrb[0].mxu0
      %v2083 = vpop.f32.mrb[0].mxu0
      %v2084 = vadd.f32 %v1923, %v2083
      %v2085 = vpop.f32.mrb[0].mxu0
      %2086 = vmatprep.mubr.bf16.mxu0 %v1190
      %2087 = vmatmul.mubr.bf16.gmra.mrb[0].mxu0 %v1189
      %v2088 = vpop.f32.mrb[0].mxu0
      %v2089 = vadd.f32 %v1928, %v2088
      %v2090 = vpop.f32.mrb[0].mxu0
      %v2091 = vpop.f32.mrb[0].mxu0
      %v2092 = vadd.f32 %v1931, %v2091
      %v2093 = vpop.f32.mrb[0].mxu0
      %2094 = vmatprep.mubr.bf16.mxu0 %v1199
      %2095 = vmatmul.mubr.bf16.gmra.mrb[0].mxu0 %v1198
      %v2096 = vpop.f32.mrb[0].mxu0
      %v2097 = vadd.f32 %v1936, %v2096
      %v2098 = vpop.f32.mrb[0].mxu0
      %v2099 = vpop.f32.mrb[0].mxu0
      %v2100 = vadd.f32 %v1939, %v2099
      %v2101 = vpop.f32.mrb[0].mxu0
      %2102 = vdwg.mxu0
      %2103 = vmatprep.subr.bf16.mxu0 0
      %2104 = vmatpush1.bf16.msra.mxu0 %v1669
      %2105 = vmatprep.subr.bf16.mxu0 0
      %2106 = vmatpush1.bf16.msra.mxu0 %v1670
      %2107 = vmatprep.subr.bf16.mxu0 0
      %2108 = vmatpush1.bf16.msra.mxu0 %v1671
      %2109 = vmatprep.subr.bf16.mxu0 0
      %2110 = vmatpush1.bf16.msra.mxu0 %v1672
      %2111 = vmatprep.subr.bf16.mxu0 0
      %2112 = vmatpush1.bf16.msra.mxu0 %v1673
      %2113 = vmatprep.subr.bf16.mxu0 0
      %2114 = vmatpush1.bf16.msra.mxu0 %v1674
      %2115 = vmatprep.subr.bf16.mxu0 0
      %2116 = vmatpush1.bf16.msra.mxu0 %v1675
      %2117 = vmatprep.subr.bf16.mxu0 0
      %2118 = vmatpush1.bf16.msra.mxu0 %v1676
      %2119 = vmatprep.subr.bf16.mxu0 0
      %2120 = vmatpush1.bf16.msra.mxu0 %v1677
      %2121 = vmatprep.subr.bf16.mxu0 0
      %2122 = vmatpush1.bf16.msra.mxu0 %v1678
      %2123 = vmatprep.subr.bf16.mxu0 0
      %2124 = vmatpush1.bf16.msra.mxu0 %v1679
      %2125 = vmatprep.subr.bf16.mxu0 0
      %2126 = vmatpush1.bf16.msra.mxu0 %v1680
      %2127 = vmatprep.subr.bf16.mxu0 0
      %2128 = vmatpush1.bf16.msra.mxu0 %v1681
      %2129 = vmatprep.subr.bf16.mxu0 0
      %2130 = vmatpush1.bf16.msra.mxu0 %v1682
      %2131 = vmatprep.subr.bf16.mxu0 0
      %2132 = vmatpush1.bf16.msra.mxu0 %v1683
      %2133 = vmatprep.subr.bf16.mxu0 0
      %2134 = vmatpush1.bf16.msra.mxu0 %v1684
      %2135 = vmatprep.mubr.bf16.mxu0 %v1066
      %2136 = vmatmul.mubr.bf16.gmra.mrb[0].mxu0 %v1065
      %v2137 = vpop.f32.mrb[0].mxu0
      %v2138 = vadd.f32 %v1977, %v2137
      %v2139 = vpop.f32.mrb[0].mxu0
      %v2140 = vpop.f32.mrb[0].mxu0
      %v2141 = vadd.f32 %v1980, %v2140
      %v2142 = vpop.f32.mrb[0].mxu0
      %2143 = vmatprep.mubr.bf16.mxu0 %v1075
      %2144 = vmatmul.mubr.bf16.gmra.mrb[0].mxu0 %v1074
      %v2145 = vpop.f32.mrb[0].mxu0
      %v2146 = vadd.f32 %v1985, %v2145
      %v2147 = vpop.f32.mrb[0].mxu0
      %v2148 = vpop.f32.mrb[0].mxu0
      %v2149 = vadd.f32 %v1988, %v2148
      %v2150 = vpop.f32.mrb[0].mxu0
      %2151 = vmatprep.mubr.bf16.mxu0 %v1084
      %2152 = vmatmul.mubr.bf16.gmra.mrb[0].mxu0 %v1083
      %v2153 = vpop.f32.mrb[0].mxu0
      %v2154 = vadd.f32 %v1993, %v2153
      %v2155 = vpop.f32.mrb[0].mxu0
      %v2156 = vpop.f32.mrb[0].mxu0
      %v2157 = vadd.f32 %v1996, %v2156
      %v2158 = vpop.f32.mrb[0].mxu0
      %2159 = vmatprep.mubr.bf16.mxu0 %v1093
      %2160 = vmatmul.mubr.bf16.gmra.mrb[0].mxu0 %v1092
      %v2161 = vpop.f32.mrb[0].mxu0
      %v2162 = vadd.f32 %v2001, %v2161
      %v2163 = vpop.f32.mrb[0].mxu0
      %v2164 = vpop.f32.mrb[0].mxu0
      %v2165 = vadd.f32 %v2004, %v2164
      %v2166 = vpop.f32.mrb[0].mxu0
      %2167 = vmatprep.mubr.bf16.mxu0 %v1102
      %2168 = vmatmul.mubr.bf16.gmra.mrb[0].mxu0 %v1101
      %v2169 = vpop.f32.mrb[0].mxu0
      %v2170 = vadd.f32 %v2009, %v2169
      %v2171 = vpop.f32.mrb[0].mxu0
      %v2172 = vpop.f32.mrb[0].mxu0
      %v2173 = vadd.f32 %v2012, %v2172
      %v2174 = vpop.f32.mrb[0].mxu0
      %2175 = vmatprep.mubr.bf16.mxu0 %v1111
      %2176 = vmatmul.mubr.bf16.gmra.mrb[0].mxu0 %v1110
      %v2177 = vpop.f32.mrb[0].mxu0
      %v2178 = vadd.f32 %v2017, %v2177
      %v2179 = vpop.f32.mrb[0].mxu0
      %v2180 = vpop.f32.mrb[0].mxu0
      %v2181 = vadd.f32 %v2020, %v2180
      %v2182 = vpop.f32.mrb[0].mxu0
      %2183 = vmatprep.mubr.bf16.mxu0 %v1120
      %2184 = vmatmul.mubr.bf16.gmra.mrb[0].mxu0 %v1119
      %v2185 = vpop.f32.mrb[0].mxu0
      %v2186 = vadd.f32 %v2025, %v2185
      %v2187 = vpop.f32.mrb[0].mxu0
      %v2188 = vpop.f32.mrb[0].mxu0
      %v2189 = vadd.f32 %v2028, %v2188
      %v2190 = vpop.f32.mrb[0].mxu0
      %2191 = vmatprep.mubr.bf16.mxu0 %v1129
      %2192 = vmatmul.mubr.bf16.gmra.mrb[0].mxu0 %v1128
      %v2193 = vpop.f32.mrb[0].mxu0
      %v2194 = vadd.f32 %v2033, %v2193
      %v2195 = vpop.f32.mrb[0].mxu0
      %v2196 = vpop.f32.mrb[0].mxu0
      %v2197 = vadd.f32 %v2036, %v2196
      %v2198 = vpop.f32.mrb[0].mxu0
      %2199 = vmatprep.mubr.bf16.mxu0 %v1138
      %2200 = vmatmul.mubr.bf16.gmra.mrb[0].mxu0 %v1137
      %v2201 = vpop.f32.mrb[0].mxu0
      %v2202 = vadd.f32 %v2041, %v2201
      %v2203 = vpop.f32.mrb[0].mxu0
      %v2204 = vpop.f32.mrb[0].mxu0
      %v2205 = vadd.f32 %v2044, %v2204
      %v2206 = vpop.f32.mrb[0].mxu0
      %2207 = vmatprep.mubr.bf16.mxu0 %v1147
      %2208 = vmatmul.mubr.bf16.gmra.mrb[0].mxu0 %v1146
      %v2209 = vpop.f32.mrb[0].mxu0
      %v2210 = vadd.f32 %v2049, %v2209
      %v2211 = vpop.f32.mrb[0].mxu0
      %v2212 = vpop.f32.mrb[0].mxu0
      %v2213 = vadd.f32 %v2052, %v2212
      %v2214 = vpop.f32.mrb[0].mxu0
      %2215 = vmatprep.mubr.bf16.mxu0 %v1156
      %2216 = vmatmul.mubr.bf16.gmra.mrb[0].mxu0 %v1155
      %v2217 = vpop.f32.mrb[0].mxu0
      %v2218 = vadd.f32 %v2057, %v2217
      %v2219 = vpop.f32.mrb[0].mxu0
      %v2220 = vpop.f32.mrb[0].mxu0
      %v2221 = vadd.f32 %v2060, %v2220
      %v2222 = vpop.f32.mrb[0].mxu0
      %2223 = vmatprep.mubr.bf16.mxu0 %v1165
      %2224 = vmatmul.mubr.bf16.gmra.mrb[0].mxu0 %v1164
      %v2225 = vpop.f32.mrb[0].mxu0
      %v2226 = vadd.f32 %v2065, %v2225
      %v2227 = vpop.f32.mrb[0].mxu0
      %v2228 = vpop.f32.mrb[0].mxu0
      %v2229 = vadd.f32 %v2068, %v2228
      %v2230 = vpop.f32.mrb[0].mxu0
      %2231 = vmatprep.mubr.bf16.mxu0 %v1174
      %2232 = vmatmul.mubr.bf16.gmra.mrb[0].mxu0 %v1173
      %v2233 = vpop.f32.mrb[0].mxu0
      %v2234 = vadd.f32 %v2073, %v2233
      %v2235 = vpop.f32.mrb[0].mxu0
      %v2236 = vpop.f32.mrb[0].mxu0
      %v2237 = vadd.f32 %v2076, %v2236
      %v2238 = vpop.f32.mrb[0].mxu0
      %2239 = vmatprep.mubr.bf16.mxu0 %v1183
      %2240 = vmatmul.mubr.bf16.gmra.mrb[0].mxu0 %v1182
      %v2241 = vpop.f32.mrb[0].mxu0
      %v2242 = vadd.f32 %v2081, %v2241
      %v2243 = vpop.f32.mrb[0].mxu0
      %v2244 = vpop.f32.mrb[0].mxu0
      %v2245 = vadd.f32 %v2084, %v2244
      %v2246 = vpop.f32.mrb[0].mxu0
      %2247 = vmatprep.mubr.bf16.mxu0 %v1192
      %2248 = vmatmul.mubr.bf16.gmra.mrb[0].mxu0 %v1191
      %v2249 = vpop.f32.mrb[0].mxu0
      %v2250 = vadd.f32 %v2089, %v2249
      %v2251 = vpop.f32.mrb[0].mxu0
      %v2252 = vpop.f32.mrb[0].mxu0
      %v2253 = vadd.f32 %v2092, %v2252
      %v2254 = vpop.f32.mrb[0].mxu0
      %2255 = vmatprep.mubr.bf16.mxu0 %v1201
      %2256 = vmatmul.mubr.bf16.gmra.mrb[0].mxu0 %v1200
      %v2257 = vpop.f32.mrb[0].mxu0
      %v2258 = vadd.f32 %v2097, %v2257
      %v2259 = vpop.f32.mrb[0].mxu0
      %v2260 = vpop.f32.mrb[0].mxu0
      %v2261 = vadd.f32 %v2100, %v2260
      %v2262 = vpop.f32.mrb[0].mxu0
      %2263 = vdwg.mxu0
      %2264 = vmatprep.subr.bf16.mxu0 0
      %2265 = vmatpush1.bf16.msra.mxu0 %v1685
      %2266 = vmatprep.subr.bf16.mxu0 0
      %2267 = vmatpush1.bf16.msra.mxu0 %v1686
      %2268 = vmatprep.subr.bf16.mxu0 0
      %2269 = vmatpush1.bf16.msra.mxu0 %v1687
      %2270 = vmatprep.subr.bf16.mxu0 0
      %2271 = vmatpush1.bf16.msra.mxu0 %v1688
      %2272 = vmatprep.subr.bf16.mxu0 0
      %2273 = vmatpush1.bf16.msra.mxu0 %v1689
      %2274 = vmatprep.subr.bf16.mxu0 0
      %2275 = vmatpush1.bf16.msra.mxu0 %v1690
      %2276 = vmatprep.subr.bf16.mxu0 0
      %2277 = vmatpush1.bf16.msra.mxu0 %v1691
      %2278 = vmatprep.subr.bf16.mxu0 0
      %2279 = vmatpush1.bf16.msra.mxu0 %v1692
      %2280 = vmatprep.subr.bf16.mxu0 0
      %2281 = vmatpush1.bf16.msra.mxu0 %v1693
      %2282 = vmatprep.subr.bf16.mxu0 0
      %2283 = vmatpush1.bf16.msra.mxu0 %v1694
      %2284 = vmatprep.subr.bf16.mxu0 0
      %2285 = vmatpush1.bf16.msra.mxu0 %v1695
      %2286 = vmatprep.subr.bf16.mxu0 0
      %2287 = vmatpush1.bf16.msra.mxu0 %v1696
      %2288 = vmatprep.subr.bf16.mxu0 0
      %2289 = vmatpush1.bf16.msra.mxu0 %v1697
      %2290 = vmatprep.subr.bf16.mxu0 0
      %2291 = vmatpush1.bf16.msra.mxu0 %v1698
      %2292 = vmatprep.subr.bf16.mxu0 0
      %2293 = vmatpush1.bf16.msra.mxu0 %v1699
      %2294 = vmatprep.subr.bf16.mxu0 0
      %2295 = vmatpush1.bf16.msra.mxu0 %v1700
      %2296 = vmatprep.mubr.bf16.mxu0 %v1068
      %2297 = vmatmul.mubr.bf16.gmra.mrb[0].mxu0 %v1067
      %v2298 = vpop.f32.mrb[0].mxu0
      %v2299 = vadd.f32 %v2138, %v2298
      %v2300 = vpop.f32.mrb[0].mxu0
      %v2301 = vpop.f32.mrb[0].mxu0
      %v2302 = vadd.f32 %v2141, %v2301
      %v2303 = vpop.f32.mrb[0].mxu0
      %2304 = vmatprep.mubr.bf16.mxu0 %v1077
      %2305 = vmatmul.mubr.bf16.gmra.mrb[0].mxu0 %v1076
      %v2306 = vpop.f32.mrb[0].mxu0
      %v2307 = vadd.f32 %v2146, %v2306
      %v2308 = vpop.f32.mrb[0].mxu0
      %v2309 = vpop.f32.mrb[0].mxu0
      %v2310 = vadd.f32 %v2149, %v2309
      %v2311 = vpop.f32.mrb[0].mxu0
      %2312 = vmatprep.mubr.bf16.mxu0 %v1086
      %2313 = vmatmul.mubr.bf16.gmra.mrb[0].mxu0 %v1085
      %v2314 = vpop.f32.mrb[0].mxu0
      %v2315 = vadd.f32 %v2154, %v2314
      %v2316 = vpop.f32.mrb[0].mxu0
      %v2317 = vpop.f32.mrb[0].mxu0
      %v2318 = vadd.f32 %v2157, %v2317
      %v2319 = vpop.f32.mrb[0].mxu0
      %2320 = vmatprep.mubr.bf16.mxu0 %v1095
      %2321 = vmatmul.mubr.bf16.gmra.mrb[0].mxu0 %v1094
      %v2322 = vpop.f32.mrb[0].mxu0
      %v2323 = vadd.f32 %v2162, %v2322
      %v2324 = vpop.f32.mrb[0].mxu0
      %v2325 = vpop.f32.mrb[0].mxu0
      %v2326 = vadd.f32 %v2165, %v2325
      %v2327 = vpop.f32.mrb[0].mxu0
      %2328 = vmatprep.mubr.bf16.mxu0 %v1104
      %2329 = vmatmul.mubr.bf16.gmra.mrb[0].mxu0 %v1103
      %v2330 = vpop.f32.mrb[0].mxu0
      %v2331 = vadd.f32 %v2170, %v2330
      %v2332 = vpop.f32.mrb[0].mxu0
      %v2333 = vpop.f32.mrb[0].mxu0
      %v2334 = vadd.f32 %v2173, %v2333
      %v2335 = vpop.f32.mrb[0].mxu0
      %2336 = vmatprep.mubr.bf16.mxu0 %v1113
      %2337 = vmatmul.mubr.bf16.gmra.mrb[0].mxu0 %v1112
      %v2338 = vpop.f32.mrb[0].mxu0
      %v2339 = vadd.f32 %v2178, %v2338
      %v2340 = vpop.f32.mrb[0].mxu0
      %v2341 = vpop.f32.mrb[0].mxu0
      %v2342 = vadd.f32 %v2181, %v2341
      %v2343 = vpop.f32.mrb[0].mxu0
      %2344 = vmatprep.mubr.bf16.mxu0 %v1122
      %2345 = vmatmul.mubr.bf16.gmra.mrb[0].mxu0 %v1121
      %v2346 = vpop.f32.mrb[0].mxu0
      %v2347 = vadd.f32 %v2186, %v2346
      %v2348 = vpop.f32.mrb[0].mxu0
      %v2349 = vpop.f32.mrb[0].mxu0
      %v2350 = vadd.f32 %v2189, %v2349
      %v2351 = vpop.f32.mrb[0].mxu0
      %2352 = vmatprep.mubr.bf16.mxu0 %v1131
      %2353 = vmatmul.mubr.bf16.gmra.mrb[0].mxu0 %v1130
      %v2354 = vpop.f32.mrb[0].mxu0
      %v2355 = vadd.f32 %v2194, %v2354
      %v2356 = vpop.f32.mrb[0].mxu0
      %v2357 = vpop.f32.mrb[0].mxu0
      %v2358 = vadd.f32 %v2197, %v2357
      %v2359 = vpop.f32.mrb[0].mxu0
      %2360 = vmatprep.mubr.bf16.mxu0 %v1140
      %2361 = vmatmul.mubr.bf16.gmra.mrb[0].mxu0 %v1139
      %v2362 = vpop.f32.mrb[0].mxu0
      %v2363 = vadd.f32 %v2202, %v2362
      %v2364 = vpop.f32.mrb[0].mxu0
      %v2365 = vpop.f32.mrb[0].mxu0
      %v2366 = vadd.f32 %v2205, %v2365
      %v2367 = vpop.f32.mrb[0].mxu0
      %2368 = vmatprep.mubr.bf16.mxu0 %v1149
      %2369 = vmatmul.mubr.bf16.gmra.mrb[0].mxu0 %v1148
      %v2370 = vpop.f32.mrb[0].mxu0
      %v2371 = vadd.f32 %v2210, %v2370
      %v2372 = vpop.f32.mrb[0].mxu0
      %v2373 = vpop.f32.mrb[0].mxu0
      %v2374 = vadd.f32 %v2213, %v2373
      %v2375 = vpop.f32.mrb[0].mxu0
      %2376 = vmatprep.mubr.bf16.mxu0 %v1158
      %2377 = vmatmul.mubr.bf16.gmra.mrb[0].mxu0 %v1157
      %v2378 = vpop.f32.mrb[0].mxu0
      %v2379 = vadd.f32 %v2218, %v2378
      %v2380 = vpop.f32.mrb[0].mxu0
      %v2381 = vpop.f32.mrb[0].mxu0
      %v2382 = vadd.f32 %v2221, %v2381
      %v2383 = vpop.f32.mrb[0].mxu0
      %2384 = vmatprep.mubr.bf16.mxu0 %v1167
      %2385 = vmatmul.mubr.bf16.gmra.mrb[0].mxu0 %v1166
      %v2386 = vpop.f32.mrb[0].mxu0
      %v2387 = vadd.f32 %v2226, %v2386
      %v2388 = vpop.f32.mrb[0].mxu0
      %v2389 = vpop.f32.mrb[0].mxu0
      %v2390 = vadd.f32 %v2229, %v2389
      %v2391 = vpop.f32.mrb[0].mxu0
      %2392 = vmatprep.mubr.bf16.mxu0 %v1176
      %2393 = vmatmul.mubr.bf16.gmra.mrb[0].mxu0 %v1175
      %v2394 = vpop.f32.mrb[0].mxu0
      %v2395 = vadd.f32 %v2234, %v2394
      %v2396 = vpop.f32.mrb[0].mxu0
      %v2397 = vpop.f32.mrb[0].mxu0
      %v2398 = vadd.f32 %v2237, %v2397
      %v2399 = vpop.f32.mrb[0].mxu0
      %2400 = vmatprep.mubr.bf16.mxu0 %v1185
      %2401 = vmatmul.mubr.bf16.gmra.mrb[0].mxu0 %v1184
      %v2402 = vpop.f32.mrb[0].mxu0
      %v2403 = vadd.f32 %v2242, %v2402
      %v2404 = vpop.f32.mrb[0].mxu0
      %v2405 = vpop.f32.mrb[0].mxu0
      %v2406 = vadd.f32 %v2245, %v2405
      %v2407 = vpop.f32.mrb[0].mxu0
      %2408 = vmatprep.mubr.bf16.mxu0 %v1194
      %2409 = vmatmul.mubr.bf16.gmra.mrb[0].mxu0 %v1193
      %v2410 = vpop.f32.mrb[0].mxu0
      %v2411 = vadd.f32 %v2250, %v2410
      %v2412 = vpop.f32.mrb[0].mxu0
      %v2413 = vpop.f32.mrb[0].mxu0
      %v2414 = vadd.f32 %v2253, %v2413
      %v2415 = vpop.f32.mrb[0].mxu0
      %2416 = vmatprep.mubr.bf16.mxu0 %v1203
      %2417 = vmatmul.mubr.bf16.gmra.mrb[0].mxu0 %v1202
      %v2418 = vpop.f32.mrb[0].mxu0
      %v2419 = vadd.f32 %v2258, %v2418
      %v2420 = vpop.f32.mrb[0].mxu0
      %v2421 = vpop.f32.mrb[0].mxu0
      %v2422 = vadd.f32 %v2261, %v2421
      %v2423 = vpop.f32.mrb[0].mxu0
      %2424 = vdwg.mxu0
      %2425 = vmatprep.subr.bf16.mxu0 0
      %2426 = vmatpush1.bf16.msra.mxu0 %v1701
      %2427 = vmatprep.subr.bf16.mxu0 0
      %2428 = vmatpush1.bf16.msra.mxu0 %v1702
      %2429 = vmatprep.subr.bf16.mxu0 0
      %2430 = vmatpush1.bf16.msra.mxu0 %v1703
      %2431 = vmatprep.subr.bf16.mxu0 0
      %2432 = vmatpush1.bf16.msra.mxu0 %v1704
      %2433 = vmatprep.subr.bf16.mxu0 0
      %2434 = vmatpush1.bf16.msra.mxu0 %v1705
      %2435 = vmatprep.subr.bf16.mxu0 0
      %2436 = vmatpush1.bf16.msra.mxu0 %v1706
      %2437 = vmatprep.subr.bf16.mxu0 0
      %2438 = vmatpush1.bf16.msra.mxu0 %v1707
      %2439 = vmatprep.subr.bf16.mxu0 0
      %2440 = vmatpush1.bf16.msra.mxu0 %v1708
      %2441 = vmatprep.subr.bf16.mxu0 0
      %2442 = vmatpush1.bf16.msra.mxu0 0
      %2443 = vmatprep.subr.bf16.mxu0 0
      %2444 = vmatpush1.bf16.msra.mxu0 0
      %2445 = vmatprep.subr.bf16.mxu0 0
      %2446 = vmatpush1.bf16.msra.mxu0 0
      %2447 = vmatprep.subr.bf16.mxu0 0
      %2448 = vmatpush1.bf16.msra.mxu0 0
      %2449 = vmatprep.subr.bf16.mxu0 0
      %2450 = vmatpush1.bf16.msra.mxu0 0
      %2451 = vmatprep.subr.bf16.mxu0 0
      %2452 = vmatpush1.bf16.msra.mxu0 0
      %2453 = vmatprep.subr.bf16.mxu0 0
      %2454 = vmatpush1.bf16.msra.mxu0 0
      %2455 = vmatprep.subr.bf16.mxu0 0
      %2456 = vmatpush1.bf16.msra.mxu0 0
      %2457 = vmatprep.mubr.bf16.mxu0 0
      %2458 = vmatmul.mubr.bf16.gmra.mrb[0].mxu0 %v1069
      %v2459 = vpop.f32.mrb[0].mxu0
      %v2460 = vadd.f32 %v2299, %v2459
      %v2461 = vpop.f32.mrb[0].mxu0
      %v2462 = vpop.f32.mrb[0].mxu0
      %v2463 = vadd.f32 %v2302, %v2462
      %v2464 = vpop.f32.mrb[0].mxu0
      %2465 = vmatprep.mubr.bf16.mxu0 0
      %2466 = vmatmul.mubr.bf16.gmra.mrb[0].mxu0 %v1078
      %v2467 = vpop.f32.mrb[0].mxu0
      %v2468 = vadd.f32 %v2307, %v2467
      %v2469 = vpop.f32.mrb[0].mxu0
      %v2470 = vpop.f32.mrb[0].mxu0
      %v2471 = vadd.f32 %v2310, %v2470
      %v2472 = vpop.f32.mrb[0].mxu0
      %2473 = vmatprep.mubr.bf16.mxu0 0
      %2474 = vmatmul.mubr.bf16.gmra.mrb[0].mxu0 %v1087
      %v2475 = vpop.f32.mrb[0].mxu0
      %v2476 = vadd.f32 %v2315, %v2475
      %v2477 = vpop.f32.mrb[0].mxu0
      %v2478 = vpop.f32.mrb[0].mxu0
      %v2479 = vadd.f32 %v2318, %v2478
      %v2480 = vpop.f32.mrb[0].mxu0
      %2481 = vmatprep.mubr.bf16.mxu0 0
      %2482 = vmatmul.mubr.bf16.gmra.mrb[0].mxu0 %v1096
      %v2483 = vpop.f32.mrb[0].mxu0
      %v2484 = vadd.f32 %v2323, %v2483
      %v2485 = vpop.f32.mrb[0].mxu0
      %v2486 = vpop.f32.mrb[0].mxu0
      %v2487 = vadd.f32 %v2326, %v2486
      %v2488 = vpop.f32.mrb[0].mxu0
      %2489 = vmatprep.mubr.bf16.mxu0 0
      %2490 = vmatmul.mubr.bf16.gmra.mrb[0].mxu0 %v1105
      %v2491 = vpop.f32.mrb[0].mxu0
      %v2492 = vadd.f32 %v2331, %v2491
      %v2493 = vpop.f32.mrb[0].mxu0
      %v2494 = vpop.f32.mrb[0].mxu0
      %v2495 = vadd.f32 %v2334, %v2494
      %v2496 = vpop.f32.mrb[0].mxu0
      %2497 = vmatprep.mubr.bf16.mxu0 0
      %2498 = vmatmul.mubr.bf16.gmra.mrb[0].mxu0 %v1114
      %v2499 = vpop.f32.mrb[0].mxu0
      %v2500 = vadd.f32 %v2339, %v2499
      %v2501 = vpop.f32.mrb[0].mxu0
      %v2502 = vpop.f32.mrb[0].mxu0
      %v2503 = vadd.f32 %v2342, %v2502
      %v2504 = vpop.f32.mrb[0].mxu0
      %2505 = vmatprep.mubr.bf16.mxu0 0
      %2506 = vmatmul.mubr.bf16.gmra.mrb[0].mxu0 %v1123
      %v2507 = vpop.f32.mrb[0].mxu0
      %v2508 = vadd.f32 %v2347, %v2507
      %v2509 = vpop.f32.mrb[0].mxu0
      %v2510 = vpop.f32.mrb[0].mxu0
      %v2511 = vadd.f32 %v2350, %v2510
      %v2512 = vpop.f32.mrb[0].mxu0
      %2513 = vmatprep.mubr.bf16.mxu0 0
      %2514 = vmatmul.mubr.bf16.gmra.mrb[0].mxu0 %v1132
      %v2515 = vpop.f32.mrb[0].mxu0
      %v2516 = vadd.f32 %v2355, %v2515
      %v2517 = vpop.f32.mrb[0].mxu0
      %v2518 = vpop.f32.mrb[0].mxu0
      %v2519 = vadd.f32 %v2358, %v2518
      %v2520 = vpop.f32.mrb[0].mxu0
      %2521 = vmatprep.mubr.bf16.mxu0 0
      %2522 = vmatmul.mubr.bf16.gmra.mrb[0].mxu0 %v1141
      %v2523 = vpop.f32.mrb[0].mxu0
      %v2524 = vadd.f32 %v2363, %v2523
      %v2525 = vpop.f32.mrb[0].mxu0
      %v2526 = vpop.f32.mrb[0].mxu0
      %v2527 = vadd.f32 %v2366, %v2526
      %v2528 = vpop.f32.mrb[0].mxu0
      %2529 = vmatprep.mubr.bf16.mxu0 0
      %2530 = vmatmul.mubr.bf16.gmra.mrb[0].mxu0 %v1150
      %v2531 = vpop.f32.mrb[0].mxu0
      %v2532 = vadd.f32 %v2371, %v2531
      %v2533 = vpop.f32.mrb[0].mxu0
      %v2534 = vpop.f32.mrb[0].mxu0
      %v2535 = vadd.f32 %v2374, %v2534
      %v2536 = vpop.f32.mrb[0].mxu0
      %2537 = vmatprep.mubr.bf16.mxu0 0
      %2538 = vmatmul.mubr.bf16.gmra.mrb[0].mxu0 %v1159
      %v2539 = vpop.f32.mrb[0].mxu0
      %v2540 = vadd.f32 %v2379, %v2539
      %v2541 = vpop.f32.mrb[0].mxu0
      %v2542 = vpop.f32.mrb[0].mxu0
      %v2543 = vadd.f32 %v2382, %v2542
      %v2544 = vpop.f32.mrb[0].mxu0
      %2545 = vmatprep.mubr.bf16.mxu0 0
      %2546 = vmatmul.mubr.bf16.gmra.mrb[0].mxu0 %v1168
      %v2547 = vpop.f32.mrb[0].mxu0
      %v2548 = vadd.f32 %v2387, %v2547
      %v2549 = vpop.f32.mrb[0].mxu0
      %v2550 = vpop.f32.mrb[0].mxu0
      %v2551 = vadd.f32 %v2390, %v2550
      %v2552 = vpop.f32.mrb[0].mxu0
      %2553 = vmatprep.mubr.bf16.mxu0 0
      %2554 = vmatmul.mubr.bf16.gmra.mrb[0].mxu0 %v1177
      %v2555 = vpop.f32.mrb[0].mxu0
      %v2556 = vadd.f32 %v2395, %v2555
      %v2557 = vpop.f32.mrb[0].mxu0
      %v2558 = vpop.f32.mrb[0].mxu0
      %v2559 = vadd.f32 %v2398, %v2558
      %v2560 = vpop.f32.mrb[0].mxu0
      %2561 = vmatprep.mubr.bf16.mxu0 0
      %2562 = vmatmul.mubr.bf16.gmra.mrb[0].mxu0 %v1186
      %v2563 = vpop.f32.mrb[0].mxu0
      %v2564 = vadd.f32 %v2403, %v2563
      %v2565 = vpop.f32.mrb[0].mxu0
      %v2566 = vpop.f32.mrb[0].mxu0
      %v2567 = vadd.f32 %v2406, %v2566
      %v2568 = vpop.f32.mrb[0].mxu0
      %2569 = vmatprep.mubr.bf16.mxu0 0
      %2570 = vmatmul.mubr.bf16.gmra.mrb[0].mxu0 %v1195
      %v2571 = vpop.f32.mrb[0].mxu0
      %v2572 = vadd.f32 %v2411, %v2571
      %v2573 = vpop.f32.mrb[0].mxu0
      %v2574 = vpop.f32.mrb[0].mxu0
      %v2575 = vadd.f32 %v2414, %v2574
      %v2576 = vpop.f32.mrb[0].mxu0
      %2577 = vmatprep.mubr.bf16.mxu0 0
      %2578 = vmatmul.mubr.bf16.gmra.mrb[0].mxu0 %v1204
      %v2579 = vpop.f32.mrb[0].mxu0
      %v2580 = vadd.f32 %v2419, %v2579
      %v2581 = vpop.f32.mrb[0].mxu0
      %v2582 = vpop.f32.mrb[0].mxu0
      %v2583 = vadd.f32 %v2422, %v2582
      %v2584 = vpop.f32.mrb[0].mxu0
      %2585 = vdwg.mxu0
      %2586 = vst [vmem:[%s262] sm:$0xff] %v2460
      %2587 = vst [vmem:[%s262 + $0x8] sm:$0xff] %v2463
      %2588 = vst [vmem:[%s262 + $0x10] sm:$0xff] %v2468
      %2589 = vst [vmem:[%s262 + $0x18] sm:$0xff] %v2471
      %2590 = vst [vmem:[%s262 + $0x20] sm:$0xff] %v2476
      %2591 = vst [vmem:[%s262 + $0x28] sm:$0xff] %v2479
      %2592 = vst [vmem:[%s262 + $0x30] sm:$0xff] %v2484
      %2593 = vst [vmem:[%s262 + $0x38] sm:$0xff] %v2487
      %2594 = vst [vmem:[%s262 + $0x40] sm:$0xff] %v2492
      %2595 = vst [vmem:[%s262 + $0x48] sm:$0xff] %v2495
      %2596 = vst [vmem:[%s262 + $0x50] sm:$0xff] %v2500
      %2597 = vst [vmem:[%s262 + $0x58] sm:$0xff] %v2503
      %2598 = vst [vmem:[%s262 + $0x60] sm:$0xff] %v2508
      %2599 = vst [vmem:[%s262 + $0x68] sm:$0xff] %v2511
      %2600 = vst [vmem:[%s262 + $0x70] sm:$0xff] %v2516
      %2601 = vst [vmem:[%s262 + $0x78] sm:$0xff] %v2519
      %2602 = vst [vmem:[%s262 + $0x80] sm:$0xff] %v2524
      %2603 = vst [vmem:[%s262 + $0x88] sm:$0xff] %v2527
      %2604 = vst [vmem:[%s262 + $0x90] sm:$0xff] %v2532
      %2605 = vst [vmem:[%s262 + $0x98] sm:$0xff] %v2535
      %2606 = vst [vmem:[%s262 + $0xa0] sm:$0xff] %v2540
      %2607 = vst [vmem:[%s262 + $0xa8] sm:$0xff] %v2543
      %2608 = vst [vmem:[%s262 + $0xb0] sm:$0xff] %v2548
      %2609 = vst [vmem:[%s262 + $0xb8] sm:$0xff] %v2551
      %2610 = vst [vmem:[%s262 + $0xc0] sm:$0xff] %v2556
      %2611 = vst [vmem:[%s262 + $0xc8] sm:$0xff] %v2559
      %2612 = vst [vmem:[%s262 + $0xd0] sm:$0xff] %v2564
      %2613 = vst [vmem:[%s262 + $0xd8] sm:$0xff] %v2567
      %2614 = vst [vmem:[%s262 + $0xe0] sm:$0xff] %v2572
      %2615 = vst [vmem:[%s262 + $0xe8] sm:$0xff] %v2575
      %2616 = vst [vmem:[%s262 + $0xf0] sm:$0xff] %v2580
      %2617 = vst [vmem:[%s262 + $0xf8] sm:$0xff] %v2583
      %v2618 = vadd.f32 %v2460, %v2463
      %v2619 = vadd.f32 %v2618, %v2468
      %v2620 = vadd.f32 %v2619, %v2471
      %v2621 = vadd.f32 %v2620, %v2476
      %v2622 = vadd.f32 %v2621, %v2479
      %v2623 = vadd.f32 %v2622, %v2484
      %v2624 = vadd.f32 %v2623, %v2487
      %v2625 = vadd.f32 %v2624, %v2492
      %v2626 = vadd.f32 %v2625, %v2495
      %v2627 = vadd.f32 %v2626, %v2500
      %v2628 = vadd.f32 %v2627, %v2503
      %v2629 = vadd.f32 %v2628, %v2508
      %v2630 = vadd.f32 %v2629, %v2511
      %v2631 = vadd.f32 %v2630, %v2516
      %v2632 = vadd.f32 %v2631, %v2519
      %v2633 = vadd.f32 %v2632, %v2524
      %v2634 = vadd.f32 %v2633, %v2527
      %v2635 = vadd.f32 %v2634, %v2532
      %v2636 = vadd.f32 %v2635, %v2535
      %v2637 = vadd.f32 %v2636, %v2540
      %v2638 = vadd.f32 %v2637, %v2543
      %v2639 = vadd.f32 %v2638, %v2548
      %v2640 = vadd.f32 %v2639, %v2551
      %v2641 = vadd.f32 %v2640, %v2556
      %v2642 = vadd.f32 %v2641, %v2559
      %v2643 = vadd.f32 %v2642, %v2564
      %v2644 = vadd.f32 %v2643, %v2567
      %v2645 = vadd.f32 %v2644, %v2572
      %v2646 = vadd.f32 %v2645, %v2575
      %v2647 = vadd.f32 %v2646, %v2580
      %v2648 = vadd.f32 %v2647, %v2583
      %v2649 = vrot.slane %v2648, 4
      %v2650 = vadd.f32 %v2648, %v2649
      %v2651 = vrot.slane %v2650, 2
      %v2652 = vadd.f32 %v2650, %v2651
      %v2653 = vrot.slane %v2652, 1
      %v2654 = vadd.f32 %v2652, %v2653
      %2655 = vst [vmem:[%s265] sm:$0x1] %v2654
      %v2656 = vmul.f32 %v2460, %v2460
      %v2657 = vmul.f32 %v2463, %v2463
      %v2658 = vmul.f32 %v2468, %v2468
      %v2659 = vmul.f32 %v2471, %v2471
      %v2660 = vmul.f32 %v2476, %v2476
      %v2661 = vmul.f32 %v2479, %v2479
      %v2662 = vmul.f32 %v2484, %v2484
      %v2663 = vmul.f32 %v2487, %v2487
      %v2664 = vmul.f32 %v2492, %v2492
      %v2665 = vmul.f32 %v2495, %v2495
      %v2666 = vmul.f32 %v2500, %v2500
      %v2667 = vmul.f32 %v2503, %v2503
      %v2668 = vmul.f32 %v2508, %v2508
      %v2669 = vmul.f32 %v2511, %v2511
      %v2670 = vmul.f32 %v2516, %v2516
      %v2671 = vmul.f32 %v2519, %v2519
      %v2672 = vmul.f32 %v2524, %v2524
      %v2673 = vmul.f32 %v2527, %v2527
      %v2674 = vmul.f32 %v2532, %v2532
      %v2675 = vmul.f32 %v2535, %v2535
      %v2676 = vmul.f32 %v2540, %v2540
      %v2677 = vmul.f32 %v2543, %v2543
      %v2678 = vmul.f32 %v2548, %v2548
      %v2679 = vmul.f32 %v2551, %v2551
      %v2680 = vmul.f32 %v2556, %v2556
      %v2681 = vmul.f32 %v2559, %v2559
      %v2682 = vmul.f32 %v2564, %v2564
      %v2683 = vmul.f32 %v2567, %v2567
      %v2684 = vmul.f32 %v2572, %v2572
      %v2685 = vmul.f32 %v2575, %v2575
      %v2686 = vmul.f32 %v2580, %v2580
      %v2687 = vmul.f32 %v2583, %v2583
      %v2688 = vadd.f32 %v2656, %v2657
      %v2689 = vadd.f32 %v2688, %v2658
      %v2690 = vadd.f32 %v2689, %v2659
      %v2691 = vadd.f32 %v2690, %v2660
      %v2692 = vadd.f32 %v2691, %v2661
      %v2693 = vadd.f32 %v2692, %v2662
      %v2694 = vadd.f32 %v2693, %v2663
      %v2695 = vadd.f32 %v2694, %v2664
      %v2696 = vadd.f32 %v2695, %v2665
      %v2697 = vadd.f32 %v2696, %v2666
      %v2698 = vadd.f32 %v2697, %v2667
      %v2699 = vadd.f32 %v2698, %v2668
      %v2700 = vadd.f32 %v2699, %v2669
      %v2701 = vadd.f32 %v2700, %v2670
      %v2702 = vadd.f32 %v2701, %v2671
      %v2703 = vadd.f32 %v2702, %v2672
      %v2704 = vadd.f32 %v2703, %v2673
      %v2705 = vadd.f32 %v2704, %v2674
      %v2706 = vadd.f32 %v2705, %v2675
      %v2707 = vadd.f32 %v2706, %v2676
      %v2708 = vadd.f32 %v2707, %v2677
      %v2709 = vadd.f32 %v2708, %v2678
      %v2710 = vadd.f32 %v2709, %v2679
      %v2711 = vadd.f32 %v2710, %v2680
      %v2712 = vadd.f32 %v2711, %v2681
      %v2713 = vadd.f32 %v2712, %v2682
      %v2714 = vadd.f32 %v2713, %v2683
      %v2715 = vadd.f32 %v2714, %v2684
      %v2716 = vadd.f32 %v2715, %v2685
      %v2717 = vadd.f32 %v2716, %v2686
      %v2718 = vadd.f32 %v2717, %v2687
      %v2719 = vrot.slane %v2718, 4
      %v2720 = vadd.f32 %v2718, %v2719
      %v2721 = vrot.slane %v2720, 2
      %v2722 = vadd.f32 %v2720, %v2721
      %v2723 = vrot.slane %v2722, 1
      %v2724 = vadd.f32 %v2722, %v2723
      %2725 = vst [vmem:[%s268] sm:$0x1] %v2724
      %p2726 = scmp.lt.s32.totalorder %s18, 1
      %s2727 = scalar_select %p2726, %s18, 1
      %s2728 = smul.addr %s2727, 32
      %s2729 = smul.addr %s2728, 8
      %s2730 = scalar_lea.vmem %s4, %s2729
      %p2731 = scmp.lt.s32.totalorder %s18, 1
      %s2732 = scalar_select %p2731, %s18, 1
      %s2733 = scalar_lea.vmem %s5, %s2732
      %p2734 = scmp.lt.s32.totalorder %s18, 1
      %s2735 = scalar_select %p2734, %s18, 1
      %s2736 = scalar_lea.vmem %s6, %s2735
      // Predicated region
      $region37: #{resblock_forward.4} parent=35 // pred_check
        %p2737 = pneg %p125
      $region38: #{resblock_forward.4} parent=35 // pred_check_branch
        %2739 = sbr.rel (%p2737) target = $region40
      $region39: #{resblock_forward.4} parent=35 // pred_region
        _
      $region40: #{resblock_forward.4} parent=35 // pred_fallthru
        _
      // Predicated region
      $region41: #{resblock_forward.4} parent=35 // pred_check
        %p2740 = pneg %p151
      $region42: #{resblock_forward.4} parent=35 // pred_check_branch
        %2742 = sbr.rel (%p2740) target = $region44
      $region43: #{resblock_forward.4} parent=35 // pred_region
        _
      $region44: #{resblock_forward.4} parent=35 // pred_fallthru
        _
      // Predicated region
      $region45: #{resblock_forward.4} parent=35 // pred_check
        %p2743 = pneg %p177
      $region46: #{resblock_forward.4} parent=35 // pred_check_branch
        %2745 = sbr.rel (%p2743) target = $region48
      $region47: #{resblock_forward.4} parent=35 // pred_region
        _
      $region48: #{resblock_forward.4} parent=35 // pred_fallthru
        _
    $region36: #{resblock_forward.4} parent=5 // pred_fallthru
      _
    %p2746 = scmp.le.s32.totalorder 2, %s13
    // Predicated region
    $region49: #{resblock_forward.4} parent=5 // pred_check
      %p2747 = pneg %p2746
    $region50: #{resblock_forward.4} parent=5 // pred_check_branch
      %2749 = sbr.rel (%p2747) target = $region52
    $region51: #{resblock_forward.4} parent=5 // pred_region
      %s2750 = ssub.s32 %s13, 2
      // Predicated region
      $region53: #{resblock_forward.4} parent=51 // pred_check
        %p2751 = pneg %p131
      $region54: #{resblock_forward.4} parent=51 // pred_check_branch
        %2753 = sbr.rel (%p2751) target = $region56
      $region55: #{resblock_forward.4} parent=51 // pred_region
        %p2754 = scmp.lt.s32.totalorder %s19, 1
        %s2755 = scalar_select %p2754, %s19, 1
        %s2756 = smul.addr %s2755, 32
        %s2757 = smul.addr %s2756, 8
        %s2758 = scalar_lea.vmem %s4, %s2757
      $region56: #{resblock_forward.4} parent=51 // pred_fallthru
        _
      // Predicated region
      $region57: #{resblock_forward.4} parent=51 // pred_check
        %p2759 = pneg %p157
      $region58: #{resblock_forward.4} parent=51 // pred_check_branch
        %2761 = sbr.rel (%p2759) target = $region60
      $region59: #{resblock_forward.4} parent=51 // pred_region
        %p2762 = scmp.lt.s32.totalorder %s19, 1
        %s2763 = scalar_select %p2762, %s19, 1
        %s2764 = scalar_lea.vmem %s5, %s2763
      $region60: #{resblock_forward.4} parent=51 // pred_fallthru
        _
      // Predicated region
      $region61: #{resblock_forward.4} parent=51 // pred_check
        %p2765 = pneg %p183
      $region62: #{resblock_forward.4} parent=51 // pred_check_branch
        %2767 = sbr.rel (%p2765) target = $region64
      $region63: #{resblock_forward.4} parent=51 // pred_region
        %p2768 = scmp.lt.s32.totalorder %s19, 1
        %s2769 = scalar_select %p2768, %s19, 1
        %s2770 = scalar_lea.vmem %s6, %s2769
      $region64: #{resblock_forward.4} parent=51 // pred_fallthru
        _
    $region52: #{resblock_forward.4} parent=5 // pred_fallthru
      _
  $region6: #{resblock_forward.4} parent=0 // loop_footer
    %s17 = sadd.s32 1, %s13
  $region7: #{resblock_forward.4} parent=0 // loop_footer_branch
    %12 = sbr.rel target = $region3
  $region8: #{resblock_forward.4} parent=0 // loop_exit
    _

</llo_original>
